<compile_context>
chip_gen: v7x
topology: tpu7x:2x2x1
jax: 0.10.0
libtpu: 0.0.40
codegen_flags: <defaults>
</compile_context>

<pallas_src>
import functools
import math

import jax
import jax.numpy as jnp
from jax.experimental import pallas as pl
from jax.experimental.pallas import tpu as pltpu


# ----------------------------------------------------------------------------
# Small helpers.
# ----------------------------------------------------------------------------
def _round_up(x, m):
    return ((x + m - 1) // m) * m


def _seq_chunk(seq_len, target=8):
    """Largest divisor of seq_len that is <= target (worst case 1)."""
    c = max(1, min(target, seq_len))
    while seq_len % c:
        c -= 1
    return c


def _mosaic_params(semantics, est_bytes):
    limit = int(min(max(int(est_bytes * 1.5) + (2 << 20), 32 << 20), 96 << 20))
    return pltpu.CompilerParams(dimension_semantics=semantics,
                                vmem_limit_bytes=limit)


def _permute_gate_cols(m, H):
    """Columns [i | f | g | o] (PyTorch order) -> [i | f | o | g]."""
    return jnp.concatenate([m[:, :2 * H], m[:, 3 * H:4 * H], m[:, 2 * H:3 * H]],
                           axis=1)


# ----------------------------------------------------------------------------
# Kernel 1: hoisted input projection  gates_x = X @ W_ih + b   (bf16 out).
# Row-tiled, fully parallel grid.
# ----------------------------------------------------------------------------
def _input_proj_kernel(x_ref, wih_ref, b_ref, gx_ref):
    gx_ref[...] = (jnp.dot(x_ref[...].astype(jnp.bfloat16), wih_ref[...],
                           preferred_element_type=jnp.float32)
                   + b_ref[...]).astype(gx_ref.dtype)


def input_projection(x2d, wih, b, *, tm_target=256):
    """x2d: (N, Nin); wih: (Nin, 4H) bf16; b: (1, 4H) f32 -> (N, 4H) bf16."""
    N, Nin = x2d.shape
    G = wih.shape[-1]
    tm = min(tm_target, _round_up(N, 16))
    grid = (pl.cdiv(N, tm),)
    est = 2 * (tm * Nin * x2d.dtype.itemsize + Nin * G * 2 + G * 4 + tm * G * 2)
    return pl.pallas_call(
        _input_proj_kernel,
        out_shape=jax.ShapeDtypeStruct((N, G), jnp.bfloat16),
        grid_spec=pltpu.PrefetchScalarGridSpec(
            num_scalar_prefetch=0,
            grid=grid,
            in_specs=[pl.BlockSpec((tm, Nin), lambda i: (i, 0)),
                      pl.BlockSpec((Nin, G), lambda i: (0, 0)),
                      pl.BlockSpec((1, G), lambda i: (0, 0))],
            out_specs=pl.BlockSpec((tm, G), lambda i: (i, 0))),
        compiler_params=_mosaic_params(("parallel",), est),
    )(x2d, wih, b)


# ----------------------------------------------------------------------------
# Kernel 2: LSTM recurrence over sequence chunks.
#   gx: (S, B, 4H) bf16 (already has X@W_ih + b), whh: (H, 4H) bf16,
#   h0/c0: (B, H) f32  ->  y: (S, B, H) bf16, hN/cN: (B, H) f32.
# Grid = (S/chunk,) "arbitrary"; h/c persist in scratch across grid steps.
# ----------------------------------------------------------------------------
def _lstm_recurrence_kernel(gx_ref, whh_ref, h0_ref, c0_ref,
                            y_ref, hN_ref, cN_ref,
                            h_sc, c_sc, *, chunk, hidden):
    H = hidden

    @pl.when(pl.program_id(0) == 0)
    def _():
        h_sc[...] = h0_ref[...].astype(jnp.bfloat16)
        c_sc[...] = c0_ref[...]

    whh = whh_ref[...]  # loop-invariant (constant block index => DMA'd once)

    def step(t, carry):
        gates = gx_ref[t].astype(jnp.float32) + jnp.dot(
            h_sc[...], whh, preferred_element_type=jnp.float32)   # (B, 4H) f32

        # Permuted gate layout [i | f | o | g]: one sigmoid, one tanh per step.
        ifo = jax.nn.sigmoid(gates[:, :3 * H])
        g = jnp.tanh(gates[:, 3 * H:])
        i = ifo[:, 0 * H:1 * H]
        f = ifo[:, 1 * H:2 * H]
        o = ifo[:, 2 * H:3 * H]

        c_new = f * c_sc[...] + i * g
        h_new = o * jnp.tanh(c_new)

        c_sc[...] = c_new
        h_bf = h_new.astype(jnp.bfloat16)
        h_sc[...] = h_bf
        y_ref[t] = h_bf
        return carry

    jax.lax.fori_loop(0, chunk, step, 0, unroll=True)

    # Resident (constant-index) outputs: written back once, after the grid.
    hN_ref[...] = h_sc[...].astype(hN_ref.dtype)
    cN_ref[...] = c_sc[...]


def lstm_recurrence(gx3, whh, h0, c0, *, chunk_target=8):
    """gx3: (S, B, 4H) bf16; whh: (H, 4H) bf16; h0/c0: (B, H) f32."""
    S, B, G = gx3.shape
    H = h0.shape[-1]
    chunk = _seq_chunk(S, chunk_target)
    n_chunks = S // chunk
    kernel = functools.partial(_lstm_recurrence_kernel, chunk=chunk, hidden=H)
    est = (2 * chunk * B * G * 2      # gx blocks (bf16, double-buffered)
           + 2 * H * G * 2            # whh (bf16)
           + 2 * chunk * B * H * 2    # y blocks (bf16)
           + 8 * B * H * 4            # h0, c0, hN, cN blocks
           + B * H * (2 + 4))         # scratch h (bf16) + c (f32)
    return pl.pallas_call(
        kernel,
        out_shape=(jax.ShapeDtypeStruct((S, B, H), jnp.bfloat16),
                   jax.ShapeDtypeStruct((B, H), jnp.float32),
                   jax.ShapeDtypeStruct((B, H), jnp.float32)),
        grid_spec=pltpu.PrefetchScalarGridSpec(
            num_scalar_prefetch=0,
            grid=(n_chunks,),
            in_specs=[pl.BlockSpec((chunk, B, G), lambda c: (c, 0, 0)),
                      pl.BlockSpec((H, G), lambda c: (0, 0)),
                      pl.BlockSpec((B, H), lambda c: (0, 0)),
                      pl.BlockSpec((B, H), lambda c: (0, 0))],
            out_specs=(pl.BlockSpec((chunk, B, H), lambda c: (c, 0, 0)),
                       pl.BlockSpec((B, H), lambda c: (0, 0)),
                       pl.BlockSpec((B, H), lambda c: (0, 0))),
            scratch_shapes=[pltpu.VMEM((B, H), jnp.bfloat16),   # h state
                            pltpu.VMEM((B, H), jnp.float32)]),  # c state
        compiler_params=_mosaic_params(("arbitrary",), est),
    )(gx3, whh, h0, c0)


# ----------------------------------------------------------------------------
# Kernel 3: decoder (Linear): (N, H) @ (H, V) + bias, cdiv-tiled parallel grid.
# ----------------------------------------------------------------------------
def _decoder_kernel(x_ref, w_ref, b_ref, o_ref):
    o_ref[...] = (jnp.dot(x_ref[...].astype(jnp.bfloat16), w_ref[...],
                          preferred_element_type=jnp.float32)
                  + b_ref[...]).astype(o_ref.dtype)


def decoder(x2d, w, b, *, tm_target=256, tv_target=512):
    """x2d: (N, H); w: (H, V) bf16; b: (1, V) f32 -> (N, V) f32 logits."""
    N, H = x2d.shape
    V = w.shape[-1]
    tm = min(tm_target, _round_up(N, 16))
    tv = min(tv_target, _round_up(V, 128))
    grid = (pl.cdiv(N, tm), pl.cdiv(V, tv))
    est = 2 * (tm * H * x2d.dtype.itemsize + H * tv * 2 + tv * 4 + tm * tv * 4)
    return pl.pallas_call(
        _decoder_kernel,
        out_shape=jax.ShapeDtypeStruct((N, V), jnp.float32),
        grid_spec=pltpu.PrefetchScalarGridSpec(
            num_scalar_prefetch=0,
            grid=grid,
            in_specs=[pl.BlockSpec((tm, H), lambda i, j: (i, 0)),
                      pl.BlockSpec((H, tv), lambda i, j: (0, j)),
                      pl.BlockSpec((1, tv), lambda i, j: (0, j))],
            out_specs=pl.BlockSpec((tm, tv), lambda i, j: (i, j))),
        compiler_params=_mosaic_params(("parallel", "parallel"), est),
    )(x2d, w, b)


# ----------------------------------------------------------------------------
# Parameter init (mirrors the PyTorch init scheme/shapes; weights pre-
# transposed to (in, out), gate columns permuted to [i|f|o|g], bf16 matmul
# weights).
# ----------------------------------------------------------------------------
def init_params(key, ntoken, ninp, nhid, nlayers):
    params = {}
    key, k_enc, k_dec = jax.random.split(key, 3)
    initrange = 0.1
    params["encoder_w"] = jax.random.uniform(
        k_enc, (ntoken, ninp), jnp.float32, -initrange, initrange)
    params["decoder_w"] = jax.random.uniform(
        k_dec, (ntoken, nhid), jnp.float32, -initrange, initrange
    ).T.astype(jnp.bfloat16)                                     # (H, V) bf16
    params["decoder_b"] = jnp.zeros((1, ntoken), jnp.float32)

    k = 1.0 / math.sqrt(nhid)
    layers = []
    for l in range(nlayers):
        in_size = ninp if l == 0 else nhid
        key, k1, k2, k3, k4 = jax.random.split(key, 5)
        w_ih = jax.random.uniform(k1, (4 * nhid, in_size), jnp.float32, -k, k)
        w_hh = jax.random.uniform(k2, (4 * nhid, nhid), jnp.float32, -k, k)
        b_ih = jax.random.uniform(k3, (4 * nhid,), jnp.float32, -k, k)
        b_hh = jax.random.uniform(k4, (4 * nhid,), jnp.float32, -k, k)
        layers.append({
            "w_ih_t": _permute_gate_cols(w_ih.T, nhid).astype(jnp.bfloat16),
            "w_hh_t": _permute_gate_cols(w_hh.T, nhid).astype(jnp.bfloat16),
            "b": _permute_gate_cols((b_ih + b_hh).reshape(1, -1), nhid),  # f32
        })
    params["lstm"] = layers
    return params


# ----------------------------------------------------------------------------
# Full RNNModel forward (eval-mode dropout == identity).
# ----------------------------------------------------------------------------
@functools.partial(jax.jit, static_argnames=("nlayers",))
def rnn_model_forward(params, tokens, h0, c0, *, nlayers):
    S, B = tokens.shape
    nhid = h0.shape[-1]
    ntoken = params["decoder_w"].shape[-1]

    # Embedding lookup (gather) — XLA glue; bf16 activations between kernels.
    x = jnp.take(params["encoder_w"], tokens.reshape(-1), axis=0)
    x = x.astype(jnp.bfloat16)                                   # (S*B, ninp)

    h_finals, c_finals = [], []
    for l in range(nlayers):
        lp = params["lstm"][l]
        gx = input_projection(x, lp["w_ih_t"], lp["b"])          # (S*B, 4H) bf16
        gx3 = gx.reshape(S, B, 4 * nhid)                         # free reshape
        y3, h_n, c_n = lstm_recurrence(gx3, lp["w_hh_t"], h0[l], c0[l])
        x = y3.reshape(S * B, nhid)                              # bf16
        h_finals.append(h_n)
        c_finals.append(c_n)

    decoded = decoder(x, params["decoder_w"], params["decoder_b"])
    decoded = decoded.reshape(S, B, ntoken)
    return decoded, (jnp.stack(h_finals), jnp.stack(c_finals))


# ----------------------------------------------------------------------------
# Pure-JAX f32 reference (same permuted-gate parameterisation) for validation.
# ----------------------------------------------------------------------------
def reference_forward(params, tokens, h0, c0, nlayers):
    S, B = tokens.shape
    H = h0.shape[-1]
    x = jnp.take(params["encoder_w"], tokens.reshape(-1), axis=0)
    x = x.astype(jnp.float32).reshape(S, B, -1)
    hs, cs = [], []
    for l in range(nlayers):
        lp = params["lstm"][l]
        wih = lp["w_ih_t"].astype(jnp.float32)
        whh = lp["w_hh_t"].astype(jnp.float32)
        b = lp["b"][0]

        def step(carry, xt, wih=wih, whh=whh, b=b):
            h, c = carry
            gates = xt @ wih + h @ whh + b
            i = jax.nn.sigmoid(gates[:, 0 * H:1 * H])
            f = jax.nn.sigmoid(gates[:, 1 * H:2 * H])
            o = jax.nn.sigmoid(gates[:, 2 * H:3 * H])
            g = jnp.tanh(gates[:, 3 * H:4 * H])
            c_new = f * c + i * g
            h_new = o * jnp.tanh(c_new)
            return (h_new, c_new), h_new

        (h_n, c_n), ys = jax.lax.scan(step, (h0[l], c0[l]), x)
        x = ys
        hs.append(h_n)
        cs.append(c_n)
    dec = (x.reshape(S * B, H) @ params["decoder_w"].astype(jnp.float32)
           + params["decoder_b"][0])
    return dec.reshape(S, B, -1), (jnp.stack(hs), jnp.stack(cs))


if __name__ == "__main__":
    # Small shapes consistent with the module's forward; nhid/ninp multiples of
    # 128 so gate slices and output slabs are lane-aligned.
    ntoken, ninp, nhid, nlayers = 256, 128, 128, 2
    seq_len, bsz = 16, 8

    key = jax.random.PRNGKey(0)
    key, k_params, k_tok = jax.random.split(key, 3)
    params = init_params(k_params, ntoken, ninp, nhid, nlayers)

    tokens = jax.random.randint(k_tok, (seq_len, bsz), 0, ntoken, jnp.int32)
    h0 = jnp.zeros((nlayers, bsz, nhid), jnp.float32)   # init_hidden: zeros
    c0 = jnp.zeros((nlayers, bsz, nhid), jnp.float32)

    decoded, (h_n, c_n) = rnn_model_forward(params, tokens, h0, c0,
                                            nlayers=nlayers)
    jax.block_until_ready(decoded)
    jax.block_until_ready(h_n)
    jax.block_until_ready(c_n)

    assert decoded.shape == (seq_len, bsz, ntoken)
    assert h_n.shape == (nlayers, bsz, nhid)
    assert c_n.shape == (nlayers, bsz, nhid)
    assert bool(jnp.all(jnp.isfinite(decoded)))
    assert bool(jnp.all(jnp.isfinite(h_n)))
    assert bool(jnp.all(jnp.isfinite(c_n)))

    # Numerical sanity vs. pure-JAX f32 reference (bf16 activations => loose tol).
    ref_dec, (ref_h, ref_c) = reference_forward(params, tokens, h0, c0, nlayers)
    assert bool(jnp.allclose(decoded, ref_dec, rtol=5e-2, atol=5e-2))
    assert bool(jnp.allclose(h_n, ref_h, rtol=5e-2, atol=5e-2))
    assert bool(jnp.allclose(c_n, ref_c, rtol=5e-2, atol=5e-2))

    print("KERNEL_OK")
</pallas_src>

<mosaic_0001>
module attributes {stable_mosaic.version = 11 : i64} {
  func.func @_decoder_kernel(%arg0: i32, %arg1: i32, %arg2: memref<128x128xbf16, #tpu.memory_space<vmem>>, %arg3: memref<128x256xbf16, #tpu.memory_space<vmem>>, %arg4: memref<1x256xf32, #tpu.memory_space<vmem>>, %arg5: memref<128x256xf32, #tpu.memory_space<vmem>>) attributes {dimension_semantics = [#tpu.dimension_semantics<parallel>, #tpu.dimension_semantics<parallel>], iteration_bounds = array<i64: 1, 1>, scalar_prefetch = 0 : i64, scratch_operands = 0 : i64, tpu.core_type = #tpu.core_type<tc>, window_params = [{transform_indices = @transform_0, window_bounds = array<i64: 128, 128>}, {transform_indices = @transform_1, window_bounds = array<i64: 128, 256>}, {transform_indices = @transform_2, window_bounds = array<i64: 1, 256>}, {transform_indices = @transform_3, window_bounds = array<i64: 128, 256>}]} {
    %c0 = arith.constant 0 : index
    %c0_0 = arith.constant 0 : index
    %0 = vector.load %arg2[%c0, %c0_0] : memref<128x128xbf16, #tpu.memory_space<vmem>>, vector<128x128xbf16>
    %c0_1 = arith.constant 0 : index
    %c0_2 = arith.constant 0 : index
    %1 = vector.load %arg3[%c0_1, %c0_2] : memref<128x256xbf16, #tpu.memory_space<vmem>>, vector<128x256xbf16>
    %cst = arith.constant dense<0.000000e+00> : vector<128x256xf32>
    %2 = tpu.matmul %0, %1, %cst {dimension_numbers = #tpu.dot_dimension_numbers<[1], [0], [0], [1], [0, 0, 1, 1], [], []>} : vector<128x128xbf16>, vector<128x256xbf16>, vector<128x256xf32> -> vector<128x256xf32>
    %c0_3 = arith.constant 0 : index
    %c0_4 = arith.constant 0 : index
    %3 = vector.load %arg4[%c0_3, %c0_4] : memref<1x256xf32, #tpu.memory_space<vmem>>, vector<1x256xf32>
    %4 = vector.broadcast %3 : vector<1x256xf32> to vector<128x256xf32>
    %5 = arith.addf %2, %4 : vector<128x256xf32>
    %c0_5 = arith.constant 0 : index
    %c0_6 = arith.constant 0 : index
    %6 = vector.load %arg5[%c0_5, %c0_6] : memref<128x256xf32, #tpu.memory_space<vmem>>, vector<128x256xf32>
    tpu.vector_store %arg5[%c0_5, %c0_6], %5 {strides = array<i32>} : memref<128x256xf32, #tpu.memory_space<vmem>>, vector<128x256xf32>,
    return
  }
  func.func @transform_0(%arg0: i32, %arg1: i32) -> (i32, i32) {
    %c0_i32 = arith.constant 0 : i32
    %c0_i32_0 = arith.constant 0 : i32
    return %arg0, %c0_i32 : i32, i32
  }
  func.func @transform_1(%arg0: i32, %arg1: i32) -> (i32, i32) {
    %c0_i32 = arith.constant 0 : i32
    %c0_i32_0 = arith.constant 0 : i32
    return %c0_i32, %arg1 : i32, i32
  }
  func.func @transform_2(%arg0: i32, %arg1: i32) -> (i32, i32) {
    %c0_i32 = arith.constant 0 : i32
    %c0_i32_0 = arith.constant 0 : i32
    return %c0_i32, %arg1 : i32, i32
  }
  func.func @transform_3(%arg0: i32, %arg1: i32) -> (i32, i32) {
    %c0_i32 = arith.constant 0 : i32
    return %arg0, %arg1 : i32, i32
  }
}

module attributes {stable_mosaic.version = 11 : i64} {
  func.func @_lstm_recurrence_kernel(%arg0: i32, %arg1: memref<8x8x512xbf16, #tpu.memory_space<vmem>>, %arg2: memref<128x512xbf16, #tpu.memory_space<vmem>>, %arg3: memref<8x128xf32, #tpu.memory_space<vmem>>, %arg4: memref<8x128xf32, #tpu.memory_space<vmem>>, %arg5: memref<8x8x128xbf16, #tpu.memory_space<vmem>>, %arg6: memref<8x128xf32, #tpu.memory_space<vmem>>, %arg7: memref<8x128xf32, #tpu.memory_space<vmem>>, %arg8: memref<8x128xbf16, #tpu.memory_space<vmem>>, %arg9: memref<8x128xf32, #tpu.memory_space<vmem>>) attributes {dimension_semantics = [#tpu.dimension_semantics<arbitrary>], iteration_bounds = array<i64: 2>, scalar_prefetch = 0 : i64, scratch_operands = 2 : i64, tpu.core_type = #tpu.core_type<tc>, window_params = [{transform_indices = @transform_0, window_bounds = array<i64: 8, 8, 512>}, {pipeline_mode = #tpu.pipeline_mode<synchronous>, transform_indices = @transform_1, window_bounds = array<i64: 128, 512>}, {pipeline_mode = #tpu.pipeline_mode<synchronous>, transform_indices = @transform_2, window_bounds = array<i64: 8, 128>}, {pipeline_mode = #tpu.pipeline_mode<synchronous>, transform_indices = @transform_3, window_bounds = array<i64: 8, 128>}, {transform_indices = @transform_4, window_bounds = array<i64: 8, 8, 128>}, {pipeline_mode = #tpu.pipeline_mode<synchronous>, transform_indices = @transform_5, window_bounds = array<i64: 8, 128>}, {pipeline_mode = #tpu.pipeline_mode<synchronous>, transform_indices = @transform_6, window_bounds = array<i64: 8, 128>}]} {
    %c0_i32 = arith.constant 0 : i32
    %0 = arith.cmpi eq, %arg0, %c0_i32 : i32
    %1 = arith.extui %0 : i1 to i32
    %c0_i32_0 = arith.constant 0 : i32
    %2 = arith.cmpi ne, %1, %c0_i32_0 : i32
    scf.if %2 {
      %c0_122 = arith.constant 0 : index
      %c0_123 = arith.constant 0 : index
      %257 = vector.load %arg3[%c0_122, %c0_123] : memref<8x128xf32, #tpu.memory_space<vmem>>, vector<8x128xf32>
      %258 = arith.truncf %257 : vector<8x128xf32> to vector<8x128xbf16>
      %c0_124 = arith.constant 0 : index
      %c0_125 = arith.constant 0 : index
      %259 = vector.load %arg8[%c0_124, %c0_125] : memref<8x128xbf16, #tpu.memory_space<vmem>>, vector<8x128xbf16>
      tpu.vector_store %arg8[%c0_124, %c0_125], %258 {strides = array<i32>} : memref<8x128xbf16, #tpu.memory_space<vmem>>, vector<8x128xbf16>,
      %c0_126 = arith.constant 0 : index
      %c0_127 = arith.constant 0 : index
      %260 = vector.load %arg4[%c0_126, %c0_127] : memref<8x128xf32, #tpu.memory_space<vmem>>, vector<8x128xf32>
      %c0_128 = arith.constant 0 : index
      %c0_129 = arith.constant 0 : index
      %261 = vector.load %arg9[%c0_128, %c0_129] : memref<8x128xf32, #tpu.memory_space<vmem>>, vector<8x128xf32>
      tpu.vector_store %arg9[%c0_128, %c0_129], %260 {strides = array<i32>} : memref<8x128xf32, #tpu.memory_space<vmem>>, vector<8x128xf32>,
    } else {
    }
    %c0 = arith.constant 0 : index
    %c0_1 = arith.constant 0 : index
    %3 = vector.load %arg2[%c0, %c0_1] : memref<128x512xbf16, #tpu.memory_space<vmem>>, vector<128x512xbf16>
    %c0_i32_2 = arith.constant 0 : i32
    %4 = arith.index_cast %c0_i32_2 : i32 to index
    %c0_3 = arith.constant 0 : index
    %c0_4 = arith.constant 0 : index
    %5 = vector.load %arg1[%4, %c0_3, %c0_4] : memref<8x8x512xbf16, #tpu.memory_space<vmem>>, vector<1x8x512xbf16>
    %6 = vector.shape_cast %5 : vector<1x8x512xbf16> to vector<8x512xbf16>
    %7 = arith.extf %6 : vector<8x512xbf16> to vector<8x512xf32>
    %c0_5 = arith.constant 0 : index
    %c0_6 = arith.constant 0 : index
    %8 = vector.load %arg8[%c0_5, %c0_6] : memref<8x128xbf16, #tpu.memory_space<vmem>>, vector<8x128xbf16>
    %cst = arith.constant dense<0.000000e+00> : vector<8x512xf32>
    %9 = tpu.matmul %8, %3, %cst {dimension_numbers = #tpu.dot_dimension_numbers<[1], [0], [0], [1], [0, 0, 1, 1], [], []>} : vector<8x128xbf16>, vector<128x512xbf16>, vector<8x512xf32> -> vector<8x512xf32>
    %10 = arith.addf %7, %9 : vector<8x512xf32>
    %11 = vector.extract_strided_slice %10 {offsets = [0, 0], sizes = [8, 384], strides = [1, 1]} : vector<8x512xf32> to vector<8x384xf32>
    %12 = arith.negf %11 : vector<8x384xf32>
    %13 = math.exp %12 : vector<8x384xf32>
    %cst_7 = arith.constant 1.000000e+00 : f32
    %14 = vector.broadcast %cst_7 : f32 to vector<8x384xf32>
    %15 = arith.addf %14, %13 : vector<8x384xf32>
    %16 = arith.divf %14, %15 : vector<8x384xf32>
    %17 = vector.extract_strided_slice %10 {offsets = [0, 384], sizes = [8, 128], strides = [1, 1]} : vector<8x512xf32> to vector<8x128xf32>
    %18 = math.tanh %17 : vector<8x128xf32>
    %19 = vector.extract_strided_slice %16 {offsets = [0, 0], sizes = [8, 128], strides = [1, 1]} : vector<8x384xf32> to vector<8x128xf32>
    %20 = vector.extract_strided_slice %16 {offsets = [0, 128], sizes = [8, 128], strides = [1, 1]} : vector<8x384xf32> to vector<8x128xf32>
    %21 = vector.extract_strided_slice %16 {offsets = [0, 256], sizes = [8, 128], strides = [1, 1]} : vector<8x384xf32> to vector<8x128xf32>
    %c0_8 = arith.constant 0 : index
    %c0_9 = arith.constant 0 : index
    %22 = vector.load %arg9[%c0_8, %c0_9] : memref<8x128xf32, #tpu.memory_space<vmem>>, vector<8x128xf32>
    %23 = arith.mulf %20, %22 : vector<8x128xf32>
    %24 = arith.mulf %19, %18 : vector<8x128xf32>
    %25 = arith.addf %23, %24 : vector<8x128xf32>
    %26 = math.tanh %25 : vector<8x128xf32>
    %27 = arith.mulf %21, %26 : vector<8x128xf32>
    %c0_10 = arith.constant 0 : index
    %c0_11 = arith.constant 0 : index
    %28 = vector.load %arg9[%c0_10, %c0_11] : memref<8x128xf32, #tpu.memory_space<vmem>>, vector<8x128xf32>
    tpu.vector_store %arg9[%c0_10, %c0_11], %25 {strides = array<i32>} : memref<8x128xf32, #tpu.memory_space<vmem>>, vector<8x128xf32>,
    %29 = arith.truncf %27 : vector<8x128xf32> to vector<8x128xbf16>
    %c0_12 = arith.constant 0 : index
    %c0_13 = arith.constant 0 : index
    %30 = vector.load %arg8[%c0_12, %c0_13] : memref<8x128xbf16, #tpu.memory_space<vmem>>, vector<8x128xbf16>
    tpu.vector_store %arg8[%c0_12, %c0_13], %29 {strides = array<i32>} : memref<8x128xbf16, #tpu.memory_space<vmem>>, vector<8x128xbf16>,
    %31 = arith.index_cast %c0_i32_2 : i32 to index
    %c0_14 = arith.constant 0 : index
    %c0_15 = arith.constant 0 : index
    %32 = vector.load %arg5[%31, %c0_14, %c0_15] : memref<8x8x128xbf16, #tpu.memory_space<vmem>>, vector<1x8x128xbf16>
    %33 = vector.shape_cast %32 : vector<1x8x128xbf16> to vector<8x128xbf16>
    %34 = vector.shape_cast %29 : vector<8x128xbf16> to vector<1x8x128xbf16>
    tpu.vector_store %arg5[%31, %c0_14, %c0_15], %34 {strides = array<i32>} : memref<8x8x128xbf16, #tpu.memory_space<vmem>>, vector<1x8x128xbf16>,
    %c1_i32 = arith.constant 1 : i32
    %35 = arith.index_cast %c1_i32 : i32 to index
    %c0_16 = arith.constant 0 : index
    %c0_17 = arith.constant 0 : index
    %36 = vector.load %arg1[%35, %c0_16, %c0_17] : memref<8x8x512xbf16, #tpu.memory_space<vmem>>, vector<1x8x512xbf16>
    %37 = vector.shape_cast %36 : vector<1x8x512xbf16> to vector<8x512xbf16>
    %38 = arith.extf %37 : vector<8x512xbf16> to vector<8x512xf32>
    %c0_18 = arith.constant 0 : index
    %c0_19 = arith.constant 0 : index
    %39 = vector.load %arg8[%c0_18, %c0_19] : memref<8x128xbf16, #tpu.memory_space<vmem>>, vector<8x128xbf16>
    %cst_20 = arith.constant dense<0.000000e+00> : vector<8x512xf32>
    %40 = tpu.matmul %39, %3, %cst_20 {dimension_numbers = #tpu.dot_dimension_numbers<[1], [0], [0], [1], [0, 0, 1, 1], [], []>} : vector<8x128xbf16>, vector<128x512xbf16>, vector<8x512xf32> -> vector<8x512xf32>
    %41 = arith.addf %38, %40 : vector<8x512xf32>
    %42 = vector.extract_strided_slice %41 {offsets = [0, 0], sizes = [8, 384], strides = [1, 1]} : vector<8x512xf32> to vector<8x384xf32>
    %43 = arith.negf %42 : vector<8x384xf32>
    %44 = math.exp %43 : vector<8x384xf32>
    %cst_21 = arith.constant 1.000000e+00 : f32
    %45 = vector.broadcast %cst_21 : f32 to vector<8x384xf32>
    %46 = arith.addf %45, %44 : vector<8x384xf32>
    %47 = arith.divf %45, %46 : vector<8x384xf32>
    %48 = vector.extract_strided_slice %41 {offsets = [0, 384], sizes = [8, 128], strides = [1, 1]} : vector<8x512xf32> to vector<8x128xf32>
    %49 = math.tanh %48 : vector<8x128xf32>
    %50 = vector.extract_strided_slice %47 {offsets = [0, 0], sizes = [8, 128], strides = [1, 1]} : vector<8x384xf32> to vector<8x128xf32>
    %51 = vector.extract_strided_slice %47 {offsets = [0, 128], sizes = [8, 128], strides = [1, 1]} : vector<8x384xf32> to vector<8x128xf32>
    %52 = vector.extract_strided_slice %47 {offsets = [0, 256], sizes = [8, 128], strides = [1, 1]} : vector<8x384xf32> to vector<8x128xf32>
    %c0_22 = arith.constant 0 : index
    %c0_23 = arith.constant 0 : index
    %53 = vector.load %arg9[%c0_22, %c0_23] : memref<8x128xf32, #tpu.memory_space<vmem>>, vector<8x128xf32>
    %54 = arith.mulf %51, %53 : vector<8x128xf32>
    %55 = arith.mulf %50, %49 : vector<8x128xf32>
    %56 = arith.addf %54, %55 : vector<8x128xf32>
    %57 = math.tanh %56 : vector<8x128xf32>
    %58 = arith.mulf %52, %57 : vector<8x128xf32>
    %c0_24 = arith.constant 0 : index
    %c0_25 = arith.constant 0 : index
    %59 = vector.load %arg9[%c0_24, %c0_25] : memref<8x128xf32, #tpu.memory_space<vmem>>, vector<8x128xf32>
    tpu.vector_store %arg9[%c0_24, %c0_25], %56 {strides = array<i32>} : memref<8x128xf32, #tpu.memory_space<vmem>>, vector<8x128xf32>,
    %60 = arith.truncf %58 : vector<8x128xf32> to vector<8x128xbf16>
    %c0_26 = arith.constant 0 : index
    %c0_27 = arith.constant 0 : index
    %61 = vector.load %arg8[%c0_26, %c0_27] : memref<8x128xbf16, #tpu.memory_space<vmem>>, vector<8x128xbf16>
    tpu.vector_store %arg8[%c0_26, %c0_27], %60 {strides = array<i32>} : memref<8x128xbf16, #tpu.memory_space<vmem>>, vector<8x128xbf16>,
    %62 = arith.index_cast %c1_i32 : i32 to index
    %c0_28 = arith.constant 0 : index
    %c0_29 = arith.constant 0 : index
    %63 = vector.load %arg5[%62, %c0_28, %c0_29] : memref<8x8x128xbf16, #tpu.memory_space<vmem>>, vector<1x8x128xbf16>
    %64 = vector.shape_cast %63 : vector<1x8x128xbf16> to vector<8x128xbf16>
    %65 = vector.shape_cast %60 : vector<8x128xbf16> to vector<1x8x128xbf16>
    tpu.vector_store %arg5[%62, %c0_28, %c0_29], %65 {strides = array<i32>} : memref<8x8x128xbf16, #tpu.memory_space<vmem>>, vector<1x8x128xbf16>,
    %c2_i32 = arith.constant 2 : i32
    %66 = arith.index_cast %c2_i32 : i32 to index
    %c0_30 = arith.constant 0 : index
    %c0_31 = arith.constant 0 : index
    %67 = vector.load %arg1[%66, %c0_30, %c0_31] : memref<8x8x512xbf16, #tpu.memory_space<vmem>>, vector<1x8x512xbf16>
    %68 = vector.shape_cast %67 : vector<1x8x512xbf16> to vector<8x512xbf16>
    %69 = arith.extf %68 : vector<8x512xbf16> to vector<8x512xf32>
    %c0_32 = arith.constant 0 : index
    %c0_33 = arith.constant 0 : index
    %70 = vector.load %arg8[%c0_32, %c0_33] : memref<8x128xbf16, #tpu.memory_space<vmem>>, vector<8x128xbf16>
    %cst_34 = arith.constant dense<0.000000e+00> : vector<8x512xf32>
    %71 = tpu.matmul %70, %3, %cst_34 {dimension_numbers = #tpu.dot_dimension_numbers<[1], [0], [0], [1], [0, 0, 1, 1], [], []>} : vector<8x128xbf16>, vector<128x512xbf16>, vector<8x512xf32> -> vector<8x512xf32>
    %72 = arith.addf %69, %71 : vector<8x512xf32>
    %73 = vector.extract_strided_slice %72 {offsets = [0, 0], sizes = [8, 384], strides = [1, 1]} : vector<8x512xf32> to vector<8x384xf32>
    %74 = arith.negf %73 : vector<8x384xf32>
    %75 = math.exp %74 : vector<8x384xf32>
    %cst_35 = arith.constant 1.000000e+00 : f32
    %76 = vector.broadcast %cst_35 : f32 to vector<8x384xf32>
    %77 = arith.addf %76, %75 : vector<8x384xf32>
    %78 = arith.divf %76, %77 : vector<8x384xf32>
    %79 = vector.extract_strided_slice %72 {offsets = [0, 384], sizes = [8, 128], strides = [1, 1]} : vector<8x512xf32> to vector<8x128xf32>
    %80 = math.tanh %79 : vector<8x128xf32>
    %81 = vector.extract_strided_slice %78 {offsets = [0, 0], sizes = [8, 128], strides = [1, 1]} : vector<8x384xf32> to vector<8x128xf32>
    %82 = vector.extract_strided_slice %78 {offsets = [0, 128], sizes = [8, 128], strides = [1, 1]} : vector<8x384xf32> to vector<8x128xf32>
    %83 = vector.extract_strided_slice %78 {offsets = [0, 256], sizes = [8, 128], strides = [1, 1]} : vector<8x384xf32> to vector<8x128xf32>
    %c0_36 = arith.constant 0 : index
    %c0_37 = arith.constant 0 : index
    %84 = vector.load %arg9[%c0_36, %c0_37] : memref<8x128xf32, #tpu.memory_space<vmem>>, vector<8x128xf32>
    %85 = arith.mulf %82, %84 : vector<8x128xf32>
    %86 = arith.mulf %81, %80 : vector<8x128xf32>
    %87 = arith.addf %85, %86 : vector<8x128xf32>
    %88 = math.tanh %87 : vector<8x128xf32>
    %89 = arith.mulf %83, %88 : vector<8x128xf32>
    %c0_38 = arith.constant 0 : index
    %c0_39 = arith.constant 0 : index
    %90 = vector.load %arg9[%c0_38, %c0_39] : memref<8x128xf32, #tpu.memory_space<vmem>>, vector<8x128xf32>
    tpu.vector_store %arg9[%c0_38, %c0_39], %87 {strides = array<i32>} : memref<8x128xf32, #tpu.memory_space<vmem>>, vector<8x128xf32>,
    %91 = arith.truncf %89 : vector<8x128xf32> to vector<8x128xbf16>
    %c0_40 = arith.constant 0 : index
    %c0_41 = arith.constant 0 : index
    %92 = vector.load %arg8[%c0_40, %c0_41] : memref<8x128xbf16, #tpu.memory_space<vmem>>, vector<8x128xbf16>
    tpu.vector_store %arg8[%c0_40, %c0_41], %91 {strides = array<i32>} : memref<8x128xbf16, #tpu.memory_space<vmem>>, vector<8x128xbf16>,
    %93 = arith.index_cast %c2_i32 : i32 to index
    %c0_42 = arith.constant 0 : index
    %c0_43 = arith.constant 0 : index
    %94 = vector.load %arg5[%93, %c0_42, %c0_43] : memref<8x8x128xbf16, #tpu.memory_space<vmem>>, vector<1x8x128xbf16>
    %95 = vector.shape_cast %94 : vector<1x8x128xbf16> to vector<8x128xbf16>
    %96 = vector.shape_cast %91 : vector<8x128xbf16> to vector<1x8x128xbf16>
    tpu.vector_store %arg5[%93, %c0_42, %c0_43], %96 {strides = array<i32>} : memref<8x8x128xbf16, #tpu.memory_space<vmem>>, vector<1x8x128xbf16>,
    %c3_i32 = arith.constant 3 : i32
    %97 = arith.index_cast %c3_i32 : i32 to index
    %c0_44 = arith.constant 0 : index
    %c0_45 = arith.constant 0 : index
    %98 = vector.load %arg1[%97, %c0_44, %c0_45] : memref<8x8x512xbf16, #tpu.memory_space<vmem>>, vector<1x8x512xbf16>
    %99 = vector.shape_cast %98 : vector<1x8x512xbf16> to vector<8x512xbf16>
    %100 = arith.extf %99 : vector<8x512xbf16> to vector<8x512xf32>
    %c0_46 = arith.constant 0 : index
    %c0_47 = arith.constant 0 : index
    %101 = vector.load %arg8[%c0_46, %c0_47] : memref<8x128xbf16, #tpu.memory_space<vmem>>, vector<8x128xbf16>
    %cst_48 = arith.constant dense<0.000000e+00> : vector<8x512xf32>
    %102 = tpu.matmul %101, %3, %cst_48 {dimension_numbers = #tpu.dot_dimension_numbers<[1], [0], [0], [1], [0, 0, 1, 1], [], []>} : vector<8x128xbf16>, vector<128x512xbf16>, vector<8x512xf32> -> vector<8x512xf32>
    %103 = arith.addf %100, %102 : vector<8x512xf32>
    %104 = vector.extract_strided_slice %103 {offsets = [0, 0], sizes = [8, 384], strides = [1, 1]} : vector<8x512xf32> to vector<8x384xf32>
    %105 = arith.negf %104 : vector<8x384xf32>
    %106 = math.exp %105 : vector<8x384xf32>
    %cst_49 = arith.constant 1.000000e+00 : f32
    %107 = vector.broadcast %cst_49 : f32 to vector<8x384xf32>
    %108 = arith.addf %107, %106 : vector<8x384xf32>
    %109 = arith.divf %107, %108 : vector<8x384xf32>
    %110 = vector.extract_strided_slice %103 {offsets = [0, 384], sizes = [8, 128], strides = [1, 1]} : vector<8x512xf32> to vector<8x128xf32>
    %111 = math.tanh %110 : vector<8x128xf32>
    %112 = vector.extract_strided_slice %109 {offsets = [0, 0], sizes = [8, 128], strides = [1, 1]} : vector<8x384xf32> to vector<8x128xf32>
    %113 = vector.extract_strided_slice %109 {offsets = [0, 128], sizes = [8, 128], strides = [1, 1]} : vector<8x384xf32> to vector<8x128xf32>
    %114 = vector.extract_strided_slice %109 {offsets = [0, 256], sizes = [8, 128], strides = [1, 1]} : vector<8x384xf32> to vector<8x128xf32>
    %c0_50 = arith.constant 0 : index
    %c0_51 = arith.constant 0 : index
    %115 = vector.load %arg9[%c0_50, %c0_51] : memref<8x128xf32, #tpu.memory_space<vmem>>, vector<8x128xf32>
    %116 = arith.mulf %113, %115 : vector<8x128xf32>
    %117 = arith.mulf %112, %111 : vector<8x128xf32>
    %118 = arith.addf %116, %117 : vector<8x128xf32>
    %119 = math.tanh %118 : vector<8x128xf32>
    %120 = arith.mulf %114, %119 : vector<8x128xf32>
    %c0_52 = arith.constant 0 : index
    %c0_53 = arith.constant 0 : index
    %121 = vector.load %arg9[%c0_52, %c0_53] : memref<8x128xf32, #tpu.memory_space<vmem>>, vector<8x128xf32>
    tpu.vector_store %arg9[%c0_52, %c0_53], %118 {strides = array<i32>} : memref<8x128xf32, #tpu.memory_space<vmem>>, vector<8x128xf32>,
    %122 = arith.truncf %120 : vector<8x128xf32> to vector<8x128xbf16>
    %c0_54 = arith.constant 0 : index
    %c0_55 = arith.constant 0 : index
    %123 = vector.load %arg8[%c0_54, %c0_55] : memref<8x128xbf16, #tpu.memory_space<vmem>>, vector<8x128xbf16>
    tpu.vector_store %arg8[%c0_54, %c0_55], %122 {strides = array<i32>} : memref<8x128xbf16, #tpu.memory_space<vmem>>, vector<8x128xbf16>,
    %124 = arith.index_cast %c3_i32 : i32 to index
    %c0_56 = arith.constant 0 : index
    %c0_57 = arith.constant 0 : index
    %125 = vector.load %arg5[%124, %c0_56, %c0_57] : memref<8x8x128xbf16, #tpu.memory_space<vmem>>, vector<1x8x128xbf16>
    %126 = vector.shape_cast %125 : vector<1x8x128xbf16> to vector<8x128xbf16>
    %127 = vector.shape_cast %122 : vector<8x128xbf16> to vector<1x8x128xbf16>
    tpu.vector_store %arg5[%124, %c0_56, %c0_57], %127 {strides = array<i32>} : memref<8x8x128xbf16, #tpu.memory_space<vmem>>, vector<1x8x128xbf16>,
    %c4_i32 = arith.constant 4 : i32
    %128 = arith.index_cast %c4_i32 : i32 to index
    %c0_58 = arith.constant 0 : index
    %c0_59 = arith.constant 0 : index
    %129 = vector.load %arg1[%128, %c0_58, %c0_59] : memref<8x8x512xbf16, #tpu.memory_space<vmem>>, vector<1x8x512xbf16>
    %130 = vector.shape_cast %129 : vector<1x8x512xbf16> to vector<8x512xbf16>
    %131 = arith.extf %130 : vector<8x512xbf16> to vector<8x512xf32>
    %c0_60 = arith.constant 0 : index
    %c0_61 = arith.constant 0 : index
    %132 = vector.load %arg8[%c0_60, %c0_61] : memref<8x128xbf16, #tpu.memory_space<vmem>>, vector<8x128xbf16>
    %cst_62 = arith.constant dense<0.000000e+00> : vector<8x512xf32>
    %133 = tpu.matmul %132, %3, %cst_62 {dimension_numbers = #tpu.dot_dimension_numbers<[1], [0], [0], [1], [0, 0, 1, 1], [], []>} : vector<8x128xbf16>, vector<128x512xbf16>, vector<8x512xf32> -> vector<8x512xf32>
    %134 = arith.addf %131, %133 : vector<8x512xf32>
    %135 = vector.extract_strided_slice %134 {offsets = [0, 0], sizes = [8, 384], strides = [1, 1]} : vector<8x512xf32> to vector<8x384xf32>
    %136 = arith.negf %135 : vector<8x384xf32>
    %137 = math.exp %136 : vector<8x384xf32>
    %cst_63 = arith.constant 1.000000e+00 : f32
    %138 = vector.broadcast %cst_63 : f32 to vector<8x384xf32>
    %139 = arith.addf %138, %137 : vector<8x384xf32>
    %140 = arith.divf %138, %139 : vector<8x384xf32>
    %141 = vector.extract_strided_slice %134 {offsets = [0, 384], sizes = [8, 128], strides = [1, 1]} : vector<8x512xf32> to vector<8x128xf32>
    %142 = math.tanh %141 : vector<8x128xf32>
    %143 = vector.extract_strided_slice %140 {offsets = [0, 0], sizes = [8, 128], strides = [1, 1]} : vector<8x384xf32> to vector<8x128xf32>
    %144 = vector.extract_strided_slice %140 {offsets = [0, 128], sizes = [8, 128], strides = [1, 1]} : vector<8x384xf32> to vector<8x128xf32>
    %145 = vector.extract_strided_slice %140 {offsets = [0, 256], sizes = [8, 128], strides = [1, 1]} : vector<8x384xf32> to vector<8x128xf32>
    %c0_64 = arith.constant 0 : index
    %c0_65 = arith.constant 0 : index
    %146 = vector.load %arg9[%c0_64, %c0_65] : memref<8x128xf32, #tpu.memory_space<vmem>>, vector<8x128xf32>
    %147 = arith.mulf %144, %146 : vector<8x128xf32>
    %148 = arith.mulf %143, %142 : vector<8x128xf32>
    %149 = arith.addf %147, %148 : vector<8x128xf32>
    %150 = math.tanh %149 : vector<8x128xf32>
    %151 = arith.mulf %145, %150 : vector<8x128xf32>
    %c0_66 = arith.constant 0 : index
    %c0_67 = arith.constant 0 : index
    %152 = vector.load %arg9[%c0_66, %c0_67] : memref<8x128xf32, #tpu.memory_space<vmem>>, vector<8x128xf32>
    tpu.vector_store %arg9[%c0_66, %c0_67], %149 {strides = array<i32>} : memref<8x128xf32, #tpu.memory_space<vmem>>, vector<8x128xf32>,
    %153 = arith.truncf %151 : vector<8x128xf32> to vector<8x128xbf16>
    %c0_68 = arith.constant 0 : index
    %c0_69 = arith.constant 0 : index
    %154 = vector.load %arg8[%c0_68, %c0_69] : memref<8x128xbf16, #tpu.memory_space<vmem>>, vector<8x128xbf16>
    tpu.vector_store %arg8[%c0_68, %c0_69], %153 {strides = array<i32>} : memref<8x128xbf16, #tpu.memory_space<vmem>>, vector<8x128xbf16>,
    %155 = arith.index_cast %c4_i32 : i32 to index
    %c0_70 = arith.constant 0 : index
    %c0_71 = arith.constant 0 : index
    %156 = vector.load %arg5[%155, %c0_70, %c0_71] : memref<8x8x128xbf16, #tpu.memory_space<vmem>>, vector<1x8x128xbf16>
    %157 = vector.shape_cast %156 : vector<1x8x128xbf16> to vector<8x128xbf16>
    %158 = vector.shape_cast %153 : vector<8x128xbf16> to vector<1x8x128xbf16>
    tpu.vector_store %arg5[%155, %c0_70, %c0_71], %158 {strides = array<i32>} : memref<8x8x128xbf16, #tpu.memory_space<vmem>>, vector<1x8x128xbf16>,
    %c5_i32 = arith.constant 5 : i32
    %159 = arith.index_cast %c5_i32 : i32 to index
    %c0_72 = arith.constant 0 : index
    %c0_73 = arith.constant 0 : index
    %160 = vector.load %arg1[%159, %c0_72, %c0_73] : memref<8x8x512xbf16, #tpu.memory_space<vmem>>, vector<1x8x512xbf16>
    %161 = vector.shape_cast %160 : vector<1x8x512xbf16> to vector<8x512xbf16>
    %162 = arith.extf %161 : vector<8x512xbf16> to vector<8x512xf32>
    %c0_74 = arith.constant 0 : index
    %c0_75 = arith.constant 0 : index
    %163 = vector.load %arg8[%c0_74, %c0_75] : memref<8x128xbf16, #tpu.memory_space<vmem>>, vector<8x128xbf16>
    %cst_76 = arith.constant dense<0.000000e+00> : vector<8x512xf32>
    %164 = tpu.matmul %163, %3, %cst_76 {dimension_numbers = #tpu.dot_dimension_numbers<[1], [0], [0], [1], [0, 0, 1, 1], [], []>} : vector<8x128xbf16>, vector<128x512xbf16>, vector<8x512xf32> -> vector<8x512xf32>
    %165 = arith.addf %162, %164 : vector<8x512xf32>
    %166 = vector.extract_strided_slice %165 {offsets = [0, 0], sizes = [8, 384], strides = [1, 1]} : vector<8x512xf32> to vector<8x384xf32>
    %167 = arith.negf %166 : vector<8x384xf32>
    %168 = math.exp %167 : vector<8x384xf32>
    %cst_77 = arith.constant 1.000000e+00 : f32
    %169 = vector.broadcast %cst_77 : f32 to vector<8x384xf32>
    %170 = arith.addf %169, %168 : vector<8x384xf32>
    %171 = arith.divf %169, %170 : vector<8x384xf32>
    %172 = vector.extract_strided_slice %165 {offsets = [0, 384], sizes = [8, 128], strides = [1, 1]} : vector<8x512xf32> to vector<8x128xf32>
    %173 = math.tanh %172 : vector<8x128xf32>
    %174 = vector.extract_strided_slice %171 {offsets = [0, 0], sizes = [8, 128], strides = [1, 1]} : vector<8x384xf32> to vector<8x128xf32>
    %175 = vector.extract_strided_slice %171 {offsets = [0, 128], sizes = [8, 128], strides = [1, 1]} : vector<8x384xf32> to vector<8x128xf32>
    %176 = vector.extract_strided_slice %171 {offsets = [0, 256], sizes = [8, 128], strides = [1, 1]} : vector<8x384xf32> to vector<8x128xf32>
    %c0_78 = arith.constant 0 : index
    %c0_79 = arith.constant 0 : index
    %177 = vector.load %arg9[%c0_78, %c0_79] : memref<8x128xf32, #tpu.memory_space<vmem>>, vector<8x128xf32>
    %178 = arith.mulf %175, %177 : vector<8x128xf32>
    %179 = arith.mulf %174, %173 : vector<8x128xf32>
    %180 = arith.addf %178, %179 : vector<8x128xf32>
    %181 = math.tanh %180 : vector<8x128xf32>
    %182 = arith.mulf %176, %181 : vector<8x128xf32>
    %c0_80 = arith.constant 0 : index
    %c0_81 = arith.constant 0 : index
    %183 = vector.load %arg9[%c0_80, %c0_81] : memref<8x128xf32, #tpu.memory_space<vmem>>, vector<8x128xf32>
    tpu.vector_store %arg9[%c0_80, %c0_81], %180 {strides = array<i32>} : memref<8x128xf32, #tpu.memory_space<vmem>>, vector<8x128xf32>,
    %184 = arith.truncf %182 : vector<8x128xf32> to vector<8x128xbf16>
    %c0_82 = arith.constant 0 : index
    %c0_83 = arith.constant 0 : index
    %185 = vector.load %arg8[%c0_82, %c0_83] : memref<8x128xbf16, #tpu.memory_space<vmem>>, vector<8x128xbf16>
    tpu.vector_store %arg8[%c0_82, %c0_83], %184 {strides = array<i32>} : memref<8x128xbf16, #tpu.memory_space<vmem>>, vector<8x128xbf16>,
    %186 = arith.index_cast %c5_i32 : i32 to index
    %c0_84 = arith.constant 0 : index
    %c0_85 = arith.constant 0 : index
    %187 = vector.load %arg5[%186, %c0_84, %c0_85] : memref<8x8x128xbf16, #tpu.memory_space<vmem>>, vector<1x8x128xbf16>
    %188 = vector.shape_cast %187 : vector<1x8x128xbf16> to vector<8x128xbf16>
    %189 = vector.shape_cast %184 : vector<8x128xbf16> to vector<1x8x128xbf16>
    tpu.vector_store %arg5[%186, %c0_84, %c0_85], %189 {strides = array<i32>} : memref<8x8x128xbf16, #tpu.memory_space<vmem>>, vector<1x8x128xbf16>,
    %c6_i32 = arith.constant 6 : i32
    %190 = arith.index_cast %c6_i32 : i32 to index
    %c0_86 = arith.constant 0 : index
    %c0_87 = arith.constant 0 : index
    %191 = vector.load %arg1[%190, %c0_86, %c0_87] : memref<8x8x512xbf16, #tpu.memory_space<vmem>>, vector<1x8x512xbf16>
    %192 = vector.shape_cast %191 : vector<1x8x512xbf16> to vector<8x512xbf16>
    %193 = arith.extf %192 : vector<8x512xbf16> to vector<8x512xf32>
    %c0_88 = arith.constant 0 : index
    %c0_89 = arith.constant 0 : index
    %194 = vector.load %arg8[%c0_88, %c0_89] : memref<8x128xbf16, #tpu.memory_space<vmem>>, vector<8x128xbf16>
    %cst_90 = arith.constant dense<0.000000e+00> : vector<8x512xf32>
    %195 = tpu.matmul %194, %3, %cst_90 {dimension_numbers = #tpu.dot_dimension_numbers<[1], [0], [0], [1], [0, 0, 1, 1], [], []>} : vector<8x128xbf16>, vector<128x512xbf16>, vector<8x512xf32> -> vector<8x512xf32>
    %196 = arith.addf %193, %195 : vector<8x512xf32>
    %197 = vector.extract_strided_slice %196 {offsets = [0, 0], sizes = [8, 384], strides = [1, 1]} : vector<8x512xf32> to vector<8x384xf32>
    %198 = arith.negf %197 : vector<8x384xf32>
    %199 = math.exp %198 : vector<8x384xf32>
    %cst_91 = arith.constant 1.000000e+00 : f32
    %200 = vector.broadcast %cst_91 : f32 to vector<8x384xf32>
    %201 = arith.addf %200, %199 : vector<8x384xf32>
    %202 = arith.divf %200, %201 : vector<8x384xf32>
    %203 = vector.extract_strided_slice %196 {offsets = [0, 384], sizes = [8, 128], strides = [1, 1]} : vector<8x512xf32> to vector<8x128xf32>
    %204 = math.tanh %203 : vector<8x128xf32>
    %205 = vector.extract_strided_slice %202 {offsets = [0, 0], sizes = [8, 128], strides = [1, 1]} : vector<8x384xf32> to vector<8x128xf32>
    %206 = vector.extract_strided_slice %202 {offsets = [0, 128], sizes = [8, 128], strides = [1, 1]} : vector<8x384xf32> to vector<8x128xf32>
    %207 = vector.extract_strided_slice %202 {offsets = [0, 256], sizes = [8, 128], strides = [1, 1]} : vector<8x384xf32> to vector<8x128xf32>
    %c0_92 = arith.constant 0 : index
    %c0_93 = arith.constant 0 : index
    %208 = vector.load %arg9[%c0_92, %c0_93] : memref<8x128xf32, #tpu.memory_space<vmem>>, vector<8x128xf32>
    %209 = arith.mulf %206, %208 : vector<8x128xf32>
    %210 = arith.mulf %205, %204 : vector<8x128xf32>
    %211 = arith.addf %209, %210 : vector<8x128xf32>
    %212 = math.tanh %211 : vector<8x128xf32>
    %213 = arith.mulf %207, %212 : vector<8x128xf32>
    %c0_94 = arith.constant 0 : index
    %c0_95 = arith.constant 0 : index
    %214 = vector.load %arg9[%c0_94, %c0_95] : memref<8x128xf32, #tpu.memory_space<vmem>>, vector<8x128xf32>
    tpu.vector_store %arg9[%c0_94, %c0_95], %211 {strides = array<i32>} : memref<8x128xf32, #tpu.memory_space<vmem>>, vector<8x128xf32>,
    %215 = arith.truncf %213 : vector<8x128xf32> to vector<8x128xbf16>
    %c0_96 = arith.constant 0 : index
    %c0_97 = arith.constant 0 : index
    %216 = vector.load %arg8[%c0_96, %c0_97] : memref<8x128xbf16, #tpu.memory_space<vmem>>, vector<8x128xbf16>
    tpu.vector_store %arg8[%c0_96, %c0_97], %215 {strides = array<i32>} : memref<8x128xbf16, #tpu.memory_space<vmem>>, vector<8x128xbf16>,
    %217 = arith.index_cast %c6_i32 : i32 to index
    %c0_98 = arith.constant 0 : index
    %c0_99 = arith.constant 0 : index
    %218 = vector.load %arg5[%217, %c0_98, %c0_99] : memref<8x8x128xbf16, #tpu.memory_space<vmem>>, vector<1x8x128xbf16>
    %219 = vector.shape_cast %218 : vector<1x8x128xbf16> to vector<8x128xbf16>
    %220 = vector.shape_cast %215 : vector<8x128xbf16> to vector<1x8x128xbf16>
    tpu.vector_store %arg5[%217, %c0_98, %c0_99], %220 {strides = array<i32>} : memref<8x8x128xbf16, #tpu.memory_space<vmem>>, vector<1x8x128xbf16>,
    %c7_i32 = arith.constant 7 : i32
    %221 = arith.index_cast %c7_i32 : i32 to index
    %c0_100 = arith.constant 0 : index
    %c0_101 = arith.constant 0 : index
    %222 = vector.load %arg1[%221, %c0_100, %c0_101] : memref<8x8x512xbf16, #tpu.memory_space<vmem>>, vector<1x8x512xbf16>
    %223 = vector.shape_cast %222 : vector<1x8x512xbf16> to vector<8x512xbf16>
    %224 = arith.extf %223 : vector<8x512xbf16> to vector<8x512xf32>
    %c0_102 = arith.constant 0 : index
    %c0_103 = arith.constant 0 : index
    %225 = vector.load %arg8[%c0_102, %c0_103] : memref<8x128xbf16, #tpu.memory_space<vmem>>, vector<8x128xbf16>
    %cst_104 = arith.constant dense<0.000000e+00> : vector<8x512xf32>
    %226 = tpu.matmul %225, %3, %cst_104 {dimension_numbers = #tpu.dot_dimension_numbers<[1], [0], [0], [1], [0, 0, 1, 1], [], []>} : vector<8x128xbf16>, vector<128x512xbf16>, vector<8x512xf32> -> vector<8x512xf32>
    %227 = arith.addf %224, %226 : vector<8x512xf32>
    %228 = vector.extract_strided_slice %227 {offsets = [0, 0], sizes = [8, 384], strides = [1, 1]} : vector<8x512xf32> to vector<8x384xf32>
    %229 = arith.negf %228 : vector<8x384xf32>
    %230 = math.exp %229 : vector<8x384xf32>
    %cst_105 = arith.constant 1.000000e+00 : f32
    %231 = vector.broadcast %cst_105 : f32 to vector<8x384xf32>
    %232 = arith.addf %231, %230 : vector<8x384xf32>
    %233 = arith.divf %231, %232 : vector<8x384xf32>
    %234 = vector.extract_strided_slice %227 {offsets = [0, 384], sizes = [8, 128], strides = [1, 1]} : vector<8x512xf32> to vector<8x128xf32>
    %235 = math.tanh %234 : vector<8x128xf32>
    %236 = vector.extract_strided_slice %233 {offsets = [0, 0], sizes = [8, 128], strides = [1, 1]} : vector<8x384xf32> to vector<8x128xf32>
    %237 = vector.extract_strided_slice %233 {offsets = [0, 128], sizes = [8, 128], strides = [1, 1]} : vector<8x384xf32> to vector<8x128xf32>
    %238 = vector.extract_strided_slice %233 {offsets = [0, 256], sizes = [8, 128], strides = [1, 1]} : vector<8x384xf32> to vector<8x128xf32>
    %c0_106 = arith.constant 0 : index
    %c0_107 = arith.constant 0 : index
    %239 = vector.load %arg9[%c0_106, %c0_107] : memref<8x128xf32, #tpu.memory_space<vmem>>, vector<8x128xf32>
    %240 = arith.mulf %237, %239 : vector<8x128xf32>
    %241 = arith.mulf %236, %235 : vector<8x128xf32>
    %242 = arith.addf %240, %241 : vector<8x128xf32>
    %243 = math.tanh %242 : vector<8x128xf32>
    %244 = arith.mulf %238, %243 : vector<8x128xf32>
    %c0_108 = arith.constant 0 : index
    %c0_109 = arith.constant 0 : index
    %245 = vector.load %arg9[%c0_108, %c0_109] : memref<8x128xf32, #tpu.memory_space<vmem>>, vector<8x128xf32>
    tpu.vector_store %arg9[%c0_108, %c0_109], %242 {strides = array<i32>} : memref<8x128xf32, #tpu.memory_space<vmem>>, vector<8x128xf32>,
    %246 = arith.truncf %244 : vector<8x128xf32> to vector<8x128xbf16>
    %c0_110 = arith.constant 0 : index
    %c0_111 = arith.constant 0 : index
    %247 = vector.load %arg8[%c0_110, %c0_111] : memref<8x128xbf16, #tpu.memory_space<vmem>>, vector<8x128xbf16>
    tpu.vector_store %arg8[%c0_110, %c0_111], %246 {strides = array<i32>} : memref<8x128xbf16, #tpu.memory_space<vmem>>, vector<8x128xbf16>,
    %248 = arith.index_cast %c7_i32 : i32 to index
    %c0_112 = arith.constant 0 : index
    %c0_113 = arith.constant 0 : index
    %249 = vector.load %arg5[%248, %c0_112, %c0_113] : memref<8x8x128xbf16, #tpu.memory_space<vmem>>, vector<1x8x128xbf16>
    %250 = vector.shape_cast %249 : vector<1x8x128xbf16> to vector<8x128xbf16>
    %251 = vector.shape_cast %246 : vector<8x128xbf16> to vector<1x8x128xbf16>
    tpu.vector_store %arg5[%248, %c0_112, %c0_113], %251 {strides = array<i32>} : memref<8x8x128xbf16, #tpu.memory_space<vmem>>, vector<1x8x128xbf16>,
    %c8_i32 = arith.constant 8 : i32
    %c0_114 = arith.constant 0 : index
    %c0_115 = arith.constant 0 : index
    %252 = vector.load %arg8[%c0_114, %c0_115] : memref<8x128xbf16, #tpu.memory_space<vmem>>, vector<8x128xbf16>
    %253 = arith.extf %252 : vector<8x128xbf16> to vector<8x128xf32>
    %c0_116 = arith.constant 0 : index
    %c0_117 = arith.constant 0 : index
    %254 = vector.load %arg6[%c0_116, %c0_117] : memref<8x128xf32, #tpu.memory_space<vmem>>, vector<8x128xf32>
    tpu.vector_store %arg6[%c0_116, %c0_117], %253 {strides = array<i32>} : memref<8x128xf32, #tpu.memory_space<vmem>>, vector<8x128xf32>,
    %c0_118 = arith.constant 0 : index
    %c0_119 = arith.constant 0 : index
    %255 = vector.load %arg9[%c0_118, %c0_119] : memref<8x128xf32, #tpu.memory_space<vmem>>, vector<8x128xf32>
    %c0_120 = arith.constant 0 : index
    %c0_121 = arith.constant 0 : index
    %256 = vector.load %arg7[%c0_120, %c0_121] : memref<8x128xf32, #tpu.memory_space<vmem>>, vector<8x128xf32>
    tpu.vector_store %arg7[%c0_120, %c0_121], %255 {strides = array<i32>} : memref<8x128xf32, #tpu.memory_space<vmem>>, vector<8x128xf32>,
    return
  }
  func.func @transform_0(%arg0: i32) -> (i32, i32, i32) {
    %c0_i32 = arith.constant 0 : i32
    %c0_i32_0 = arith.constant 0 : i32
    %c0_i32_1 = arith.constant 0 : i32
    return %arg0, %c0_i32, %c0_i32_0 : i32, i32, i32
  }
  func.func @transform_1(%arg0: i32) -> (i32, i32) {
    %c0_i32 = arith.constant 0 : i32
    %c0_i32_0 = arith.constant 0 : i32
    %c0_i32_1 = arith.constant 0 : i32
    return %c0_i32, %c0_i32_0 : i32, i32
  }
  func.func @transform_2(%arg0: i32) -> (i32, i32) {
    %c0_i32 = arith.constant 0 : i32
    %c0_i32_0 = arith.constant 0 : i32
    %c0_i32_1 = arith.constant 0 : i32
    return %c0_i32, %c0_i32_0 : i32, i32
  }
  func.func @transform_3(%arg0: i32) -> (i32, i32) {
    %c0_i32 = arith.constant 0 : i32
    %c0_i32_0 = arith.constant 0 : i32
    %c0_i32_1 = arith.constant 0 : i32
    return %c0_i32, %c0_i32_0 : i32, i32
  }
  func.func @transform_4(%arg0: i32) -> (i32, i32, i32) {
    %c0_i32 = arith.constant 0 : i32
    %c0_i32_0 = arith.constant 0 : i32
    %c0_i32_1 = arith.constant 0 : i32
    return %arg0, %c0_i32, %c0_i32_0 : i32, i32, i32
  }
  func.func @transform_5(%arg0: i32) -> (i32, i32) {
    %c0_i32 = arith.constant 0 : i32
    %c0_i32_0 = arith.constant 0 : i32
    %c0_i32_1 = arith.constant 0 : i32
    return %c0_i32, %c0_i32_0 : i32, i32
  }
  func.func @transform_6(%arg0: i32) -> (i32, i32) {
    %c0_i32 = arith.constant 0 : i32
    %c0_i32_0 = arith.constant 0 : i32
    %c0_i32_1 = arith.constant 0 : i32
    return %c0_i32, %c0_i32_0 : i32, i32
  }
}

module attributes {stable_mosaic.version = 11 : i64} {
  func.func @_input_proj_kernel(%arg0: i32, %arg1: memref<128x128xbf16, #tpu.memory_space<vmem>>, %arg2: memref<128x512xbf16, #tpu.memory_space<vmem>>, %arg3: memref<1x512xf32, #tpu.memory_space<vmem>>, %arg4: memref<128x512xbf16, #tpu.memory_space<vmem>>) attributes {dimension_semantics = [#tpu.dimension_semantics<parallel>], iteration_bounds = array<i64: 1>, scalar_prefetch = 0 : i64, scratch_operands = 0 : i64, tpu.core_type = #tpu.core_type<tc>, window_params = [{transform_indices = @transform_0, window_bounds = array<i64: 128, 128>}, {pipeline_mode = #tpu.pipeline_mode<synchronous>, transform_indices = @transform_1, window_bounds = array<i64: 128, 512>}, {pipeline_mode = #tpu.pipeline_mode<synchronous>, transform_indices = @transform_2, window_bounds = array<i64: 1, 512>}, {transform_indices = @transform_3, window_bounds = array<i64: 128, 512>}]} {
    %c0 = arith.constant 0 : index
    %c0_0 = arith.constant 0 : index
    %0 = vector.load %arg1[%c0, %c0_0] : memref<128x128xbf16, #tpu.memory_space<vmem>>, vector<128x128xbf16>
    %c0_1 = arith.constant 0 : index
    %c0_2 = arith.constant 0 : index
    %1 = vector.load %arg2[%c0_1, %c0_2] : memref<128x512xbf16, #tpu.memory_space<vmem>>, vector<128x512xbf16>
    %cst = arith.constant dense<0.000000e+00> : vector<128x512xf32>
    %2 = tpu.matmul %0, %1, %cst {dimension_numbers = #tpu.dot_dimension_numbers<[1], [0], [0], [1], [0, 0, 1, 1], [], []>} : vector<128x128xbf16>, vector<128x512xbf16>, vector<128x512xf32> -> vector<128x512xf32>
    %c0_3 = arith.constant 0 : index
    %c0_4 = arith.constant 0 : index
    %3 = vector.load %arg3[%c0_3, %c0_4] : memref<1x512xf32, #tpu.memory_space<vmem>>, vector<1x512xf32>
    %4 = vector.broadcast %3 : vector<1x512xf32> to vector<128x512xf32>
    %5 = arith.addf %2, %4 : vector<128x512xf32>
    %6 = arith.truncf %5 : vector<128x512xf32> to vector<128x512xbf16>
    %c0_5 = arith.constant 0 : index
    %c0_6 = arith.constant 0 : index
    %7 = vector.load %arg4[%c0_5, %c0_6] : memref<128x512xbf16, #tpu.memory_space<vmem>>, vector<128x512xbf16>
    tpu.vector_store %arg4[%c0_5, %c0_6], %6 {strides = array<i32>} : memref<128x512xbf16, #tpu.memory_space<vmem>>, vector<128x512xbf16>,
    return
  }
  func.func @transform_0(%arg0: i32) -> (i32, i32) {
    %c0_i32 = arith.constant 0 : i32
    %c0_i32_0 = arith.constant 0 : i32
    return %arg0, %c0_i32 : i32, i32
  }
  func.func @transform_1(%arg0: i32) -> (i32, i32) {
    %c0_i32 = arith.constant 0 : i32
    %c0_i32_0 = arith.constant 0 : i32
    %c0_i32_1 = arith.constant 0 : i32
    return %c0_i32, %c0_i32_0 : i32, i32
  }
  func.func @transform_2(%arg0: i32) -> (i32, i32) {
    %c0_i32 = arith.constant 0 : i32
    %c0_i32_0 = arith.constant 0 : i32
    %c0_i32_1 = arith.constant 0 : i32
    return %c0_i32, %c0_i32_0 : i32, i32
  }
  func.func @transform_3(%arg0: i32) -> (i32, i32) {
    %c0_i32 = arith.constant 0 : i32
    %c0_i32_0 = arith.constant 0 : i32
    return %arg0, %c0_i32 : i32, i32
  }
}

</mosaic_0001>

<llo_original>
// kernel: rnn_model_forward.9
$region0: #{rnn_model_forward.9}
  #allocation0 [shape = 'u32[]', space=smem, size = 0x4, offset = 0x4, fixed_abs, tag = 'smem constant byte address 0x4 - core index']
  #allocation1 [shape = 'u32[144,128]{1,0:T(1,128)}', space=vmem, size = 0x12000, scoped, tag = 'internal scratch']
  %s0 = inlined_call_operand.vmem [shape: bf16[128,128], index: 0, kind: input, shape index: {}]
  %s1 = inlined_call_operand.vmem [shape: bf16[128,256], index: 1, kind: input, shape index: {}]
  %s2 = inlined_call_operand.vmem [shape: f32[1,256], index: 2, kind: input, shape index: {}]
  %s3 = inlined_call_operand.hbm [shape: f32[128,256], index: 3, kind: output, shape index: {}]
  %s4 = sld [smem:[#allocation0]]
  $region22: #{rnn_model_forward.9} parent=0
    _
  %s6 = ssub.s32 1, %s4
  %s7 = scalar_select 0, %s6, %s4
  $region1: #{rnn_model_forward.9} parent=0
    #allocation2 [shape = 'u8[131072]{0}', space=vmem, size = 0x20000, scoped, tag = 'output window, operand 0, single buffered']
    #allocation3 [shape = 's32[1]{0}', space=sflag, size = 0x4, scoped, tag = 'scoped memory for rnn_model_forward.9']
    %8 = vsyncpa [#allocation3], 0
    // Predicated region
    $region2: #{rnn_model_forward.9} parent=1 // pred_check
      _
    $region3: #{rnn_model_forward.9} parent=1 // pred_check_branch
      %10 = sbr.rel (0) target = $region5
    $region4: #{rnn_model_forward.9} parent=1 // pred_region
      _
    $region5: #{rnn_model_forward.9} parent=1 // pred_fallthru
      _
    // Predicated region
    $region6: #{rnn_model_forward.9} parent=1 // pred_check
      _
    $region7: #{rnn_model_forward.9} parent=1 // pred_check_branch
      %12 = sbr.rel (0) target = $region9
    $region8: #{rnn_model_forward.9} parent=1 // pred_region
      _
    $region9: #{rnn_model_forward.9} parent=1 // pred_fallthru
      _
    // Predicated region
    $region10: #{rnn_model_forward.9} parent=1 // pred_check
      _
    $region11: #{rnn_model_forward.9} parent=1 // pred_check_branch
      %14 = sbr.rel (0) target = $region13
    $region12: #{rnn_model_forward.9} parent=1 // pred_region
      _
    $region13: #{rnn_model_forward.9} parent=1 // pred_fallthru
      _
    %v16 = vld [vmem:[%s0] sm:$0xf]
    %v17 = vld [vmem:[%s0 + $0x4] sm:$0xf]
    %v18 = vld [vmem:[%s0 + $0x8] sm:$0xf]
    %v19 = vld [vmem:[%s0 + $0xc] sm:$0xf]
    %v20 = vld [vmem:[%s0 + $0x10] sm:$0xf]
    %v21 = vld [vmem:[%s0 + $0x14] sm:$0xf]
    %v22 = vld [vmem:[%s0 + $0x18] sm:$0xf]
    %v23 = vld [vmem:[%s0 + $0x1c] sm:$0xf]
    %v24 = vld [vmem:[%s0 + $0x20] sm:$0xf]
    %v25 = vld [vmem:[%s0 + $0x24] sm:$0xf]
    %v26 = vld [vmem:[%s0 + $0x28] sm:$0xf]
    %v27 = vld [vmem:[%s0 + $0x2c] sm:$0xf]
    %v28 = vld [vmem:[%s0 + $0x30] sm:$0xf]
    %v29 = vld [vmem:[%s0 + $0x34] sm:$0xf]
    %v30 = vld [vmem:[%s0 + $0x38] sm:$0xf]
    %v31 = vld [vmem:[%s0 + $0x3c] sm:$0xf]
    %v32 = vld [vmem:[%s1] sm:$0xff]
    %v33 = vld [vmem:[%s1 + $0x8] sm:$0xff]
    %v34 = vld [vmem:[%s1 + $0x10] sm:$0xff]
    %v35 = vld [vmem:[%s1 + $0x18] sm:$0xff]
    %v36 = vld [vmem:[%s1 + $0x20] sm:$0xff]
    %v37 = vld [vmem:[%s1 + $0x28] sm:$0xff]
    %v38 = vld [vmem:[%s1 + $0x30] sm:$0xff]
    %v39 = vld [vmem:[%s1 + $0x38] sm:$0xff]
    %v40 = vld [vmem:[%s1 + $0x40] sm:$0xff]
    %v41 = vld [vmem:[%s1 + $0x48] sm:$0xff]
    %v42 = vld [vmem:[%s1 + $0x50] sm:$0xff]
    %v43 = vld [vmem:[%s1 + $0x58] sm:$0xff]
    %v44 = vld [vmem:[%s1 + $0x60] sm:$0xff]
    %v45 = vld [vmem:[%s1 + $0x68] sm:$0xff]
    %v46 = vld [vmem:[%s1 + $0x70] sm:$0xff]
    %v47 = vld [vmem:[%s1 + $0x78] sm:$0xff]
    %v48 = vld [vmem:[%s2] sm:$0x3]
    %v50 = vlaneseq
    %v51 = vshrl.u32 %v50, 7
    %v52 = vsub.s32 0, %v51
    %v53 = vrot.slane %v48, %v52
    %v54 = vlaneseq
    %v55 = vshrl.u32 %v54, 7
    %v56 = vsub.s32 1, %v55
    %v57 = vrot.slane %v48, %v56
    %v76 = vunpack.c.l.b16 %v16
    %v77 = vunpack.c.l.b16 %v17
    %v78 = vunpack.c.l.b16 %v18
    %v79 = vunpack.c.l.b16 %v19
    %v80 = vunpack.c.l.b16 %v20
    %v81 = vunpack.c.l.b16 %v21
    %v82 = vunpack.c.l.b16 %v22
    %v83 = vunpack.c.l.b16 %v23
    %v84 = vunpack.c.l.b16 %v24
    %v85 = vunpack.c.l.b16 %v25
    %v86 = vunpack.c.l.b16 %v26
    %v87 = vunpack.c.l.b16 %v27
    %v88 = vunpack.c.l.b16 %v28
    %v89 = vunpack.c.l.b16 %v29
    %v90 = vunpack.c.l.b16 %v30
    %v91 = vunpack.c.l.b16 %v31
    %v92 = vpack.c.b16 %v77, %v76
    %v93 = vpack.c.b16 %v79, %v78
    %v94 = vpack.c.b16 %v81, %v80
    %v95 = vpack.c.b16 %v83, %v82
    %v96 = vpack.c.b16 %v85, %v84
    %v97 = vpack.c.b16 %v87, %v86
    %v98 = vpack.c.b16 %v89, %v88
    %v99 = vpack.c.b16 %v91, %v90
    %v124 = vunpack.c.l.b16 %v32
    %v125 = vunpack.c.h.b16 %v32
    %v126 = vunpack.c.l.b16 %v33
    %v127 = vunpack.c.h.b16 %v33
    %v128 = vunpack.c.l.b16 %v34
    %v129 = vunpack.c.h.b16 %v34
    %v130 = vunpack.c.l.b16 %v35
    %v131 = vunpack.c.h.b16 %v35
    %v132 = vunpack.c.l.b16 %v36
    %v133 = vunpack.c.h.b16 %v36
    %v134 = vunpack.c.l.b16 %v37
    %v135 = vunpack.c.h.b16 %v37
    %v136 = vunpack.c.l.b16 %v38
    %v137 = vunpack.c.h.b16 %v38
    %v138 = vunpack.c.l.b16 %v39
    %v139 = vunpack.c.h.b16 %v39
    %v140 = vunpack.c.l.b16 %v40
    %v141 = vunpack.c.h.b16 %v40
    %v142 = vunpack.c.l.b16 %v41
    %v143 = vunpack.c.h.b16 %v41
    %v144 = vunpack.c.l.b16 %v42
    %v145 = vunpack.c.h.b16 %v42
    %v146 = vunpack.c.l.b16 %v43
    %v147 = vunpack.c.h.b16 %v43
    %v148 = vunpack.c.l.b16 %v44
    %v149 = vunpack.c.h.b16 %v44
    %v150 = vunpack.c.l.b16 %v45
    %v151 = vunpack.c.h.b16 %v45
    %v152 = vunpack.c.l.b16 %v46
    %v153 = vunpack.c.h.b16 %v46
    %v154 = vunpack.c.l.b16 %v47
    %v155 = vunpack.c.h.b16 %v47
    %v156 = vpack.c.b16 %v126, %v124
    %v157 = vpack.c.b16 %v127, %v125
    %v158 = vpack.c.b16 %v130, %v128
    %v159 = vpack.c.b16 %v131, %v129
    %v160 = vpack.c.b16 %v134, %v132
    %v161 = vpack.c.b16 %v135, %v133
    %v162 = vpack.c.b16 %v138, %v136
    %v163 = vpack.c.b16 %v139, %v137
    %v164 = vpack.c.b16 %v142, %v140
    %v165 = vpack.c.b16 %v143, %v141
    %v166 = vpack.c.b16 %v146, %v144
    %v167 = vpack.c.b16 %v147, %v145
    %v168 = vpack.c.b16 %v150, %v148
    %v169 = vpack.c.b16 %v151, %v149
    %v170 = vpack.c.b16 %v154, %v152
    %v171 = vpack.c.b16 %v155, %v153
    %188 = vmatprep.subr.bf16.mxu0 %v157
    %189 = vmatpush1.bf16.msra.mxu0 %v156
    %190 = vmatprep.subr.bf16.mxu0 %v159
    %191 = vmatpush1.bf16.msra.mxu0 %v158
    %192 = vmatprep.subr.bf16.mxu0 %v161
    %193 = vmatpush1.bf16.msra.mxu0 %v160
    %194 = vmatprep.subr.bf16.mxu0 %v163
    %195 = vmatpush1.bf16.msra.mxu0 %v162
    %196 = vmatprep.subr.bf16.mxu0 %v165
    %197 = vmatpush1.bf16.msra.mxu0 %v164
    %198 = vmatprep.subr.bf16.mxu0 %v167
    %199 = vmatpush1.bf16.msra.mxu0 %v166
    %200 = vmatprep.subr.bf16.mxu0 %v169
    %201 = vmatpush1.bf16.msra.mxu0 %v168
    %202 = vmatprep.subr.bf16.mxu0 %v171
    %203 = vmatpush1.bf16.msra.mxu0 %v170
    %204 = vmatprep.subr.bf16.mxu0 0
    %205 = vmatpush1.bf16.msra.mxu0 0
    %206 = vmatprep.subr.bf16.mxu0 0
    %207 = vmatpush1.bf16.msra.mxu0 0
    %208 = vmatprep.subr.bf16.mxu0 0
    %209 = vmatpush1.bf16.msra.mxu0 0
    %210 = vmatprep.subr.bf16.mxu0 0
    %211 = vmatpush1.bf16.msra.mxu0 0
    %212 = vmatprep.subr.bf16.mxu0 0
    %213 = vmatpush1.bf16.msra.mxu0 0
    %214 = vmatprep.subr.bf16.mxu0 0
    %215 = vmatpush1.bf16.msra.mxu0 0
    %216 = vmatprep.subr.bf16.mxu0 0
    %217 = vmatpush1.bf16.msra.mxu0 0
    %218 = vmatprep.subr.bf16.mxu0 0
    %219 = vmatpush1.bf16.msra.mxu0 0
    %220 = vmatprep.mubr.bf16.mxu0 0
    %221 = vmatmul.mubr.bf16.gmra.mrb[0].mxu0 %v92
    %v222 = vpop.f32.mrb[0].mxu0
    %v223 = vadd.f32 %v53, %v222
    %v224 = vpop.f32.mrb[0].mxu0
    %v225 = vadd.f32 %v57, %v224
    %v226 = vpop.f32.mrb[0].mxu0
    %v227 = vadd.f32 %v53, %v226
    %v228 = vpop.f32.mrb[0].mxu0
    %v229 = vadd.f32 %v57, %v228
    %230 = vmatprep.mubr.bf16.mxu0 0
    %231 = vmatmul.mubr.bf16.gmra.mrb[0].mxu0 %v93
    %v232 = vpop.f32.mrb[0].mxu0
    %v233 = vadd.f32 %v53, %v232
    %v234 = vpop.f32.mrb[0].mxu0
    %v235 = vadd.f32 %v57, %v234
    %v236 = vpop.f32.mrb[0].mxu0
    %v237 = vadd.f32 %v53, %v236
    %v238 = vpop.f32.mrb[0].mxu0
    %v239 = vadd.f32 %v57, %v238
    %240 = vmatprep.mubr.bf16.mxu0 0
    %241 = vmatmul.mubr.bf16.gmra.mrb[0].mxu0 %v94
    %v242 = vpop.f32.mrb[0].mxu0
    %v243 = vadd.f32 %v53, %v242
    %v244 = vpop.f32.mrb[0].mxu0
    %v245 = vadd.f32 %v57, %v244
    %v246 = vpop.f32.mrb[0].mxu0
    %v247 = vadd.f32 %v53, %v246
    %v248 = vpop.f32.mrb[0].mxu0
    %v249 = vadd.f32 %v57, %v248
    %250 = vmatprep.mubr.bf16.mxu0 0
    %251 = vmatmul.mubr.bf16.gmra.mrb[0].mxu0 %v95
    %v252 = vpop.f32.mrb[0].mxu0
    %v253 = vadd.f32 %v53, %v252
    %v254 = vpop.f32.mrb[0].mxu0
    %v255 = vadd.f32 %v57, %v254
    %v256 = vpop.f32.mrb[0].mxu0
    %v257 = vadd.f32 %v53, %v256
    %v258 = vpop.f32.mrb[0].mxu0
    %v259 = vadd.f32 %v57, %v258
    %260 = vmatprep.mubr.bf16.mxu0 0
    %261 = vmatmul.mubr.bf16.gmra.mrb[0].mxu0 %v96
    %v262 = vpop.f32.mrb[0].mxu0
    %v263 = vadd.f32 %v53, %v262
    %v264 = vpop.f32.mrb[0].mxu0
    %v265 = vadd.f32 %v57, %v264
    %v266 = vpop.f32.mrb[0].mxu0
    %v267 = vadd.f32 %v53, %v266
    %v268 = vpop.f32.mrb[0].mxu0
    %v269 = vadd.f32 %v57, %v268
    %270 = vmatprep.mubr.bf16.mxu0 0
    %271 = vmatmul.mubr.bf16.gmra.mrb[0].mxu0 %v97
    %v272 = vpop.f32.mrb[0].mxu0
    %v273 = vadd.f32 %v53, %v272
    %v274 = vpop.f32.mrb[0].mxu0
    %v275 = vadd.f32 %v57, %v274
    %v276 = vpop.f32.mrb[0].mxu0
    %v277 = vadd.f32 %v53, %v276
    %v278 = vpop.f32.mrb[0].mxu0
    %v279 = vadd.f32 %v57, %v278
    %280 = vmatprep.mubr.bf16.mxu0 0
    %281 = vmatmul.mubr.bf16.gmra.mrb[0].mxu0 %v98
    %v282 = vpop.f32.mrb[0].mxu0
    %v283 = vadd.f32 %v53, %v282
    %v284 = vpop.f32.mrb[0].mxu0
    %v285 = vadd.f32 %v57, %v284
    %v286 = vpop.f32.mrb[0].mxu0
    %v287 = vadd.f32 %v53, %v286
    %v288 = vpop.f32.mrb[0].mxu0
    %v289 = vadd.f32 %v57, %v288
    %290 = vmatprep.mubr.bf16.mxu0 0
    %291 = vmatmul.mubr.bf16.gmra.mrb[0].mxu0 %v99
    %v292 = vpop.f32.mrb[0].mxu0
    %v293 = vadd.f32 %v53, %v292
    %v294 = vpop.f32.mrb[0].mxu0
    %v295 = vadd.f32 %v57, %v294
    %v296 = vpop.f32.mrb[0].mxu0
    %v297 = vadd.f32 %v53, %v296
    %v298 = vpop.f32.mrb[0].mxu0
    %v299 = vadd.f32 %v57, %v298
    %300 = vdwg.mxu0
    %301 = vst [vmem:[#allocation2] sm:$0xff] %v223
    %302 = vst [vmem:[#allocation2 + $0x8] sm:$0xff] %v225
    %303 = vst [vmem:[#allocation2 + $0x10] sm:$0xff] %v227
    %304 = vst [vmem:[#allocation2 + $0x18] sm:$0xff] %v229
    %305 = vst [vmem:[#allocation2 + $0x20] sm:$0xff] %v233
    %306 = vst [vmem:[#allocation2 + $0x28] sm:$0xff] %v235
    %307 = vst [vmem:[#allocation2 + $0x30] sm:$0xff] %v237
    %308 = vst [vmem:[#allocation2 + $0x38] sm:$0xff] %v239
    %309 = vst [vmem:[#allocation2 + $0x40] sm:$0xff] %v243
    %310 = vst [vmem:[#allocation2 + $0x48] sm:$0xff] %v245
    %311 = vst [vmem:[#allocation2 + $0x50] sm:$0xff] %v247
    %312 = vst [vmem:[#allocation2 + $0x58] sm:$0xff] %v249
    %313 = vst [vmem:[#allocation2 + $0x60] sm:$0xff] %v253
    %314 = vst [vmem:[#allocation2 + $0x68] sm:$0xff] %v255
    %315 = vst [vmem:[#allocation2 + $0x70] sm:$0xff] %v257
    %316 = vst [vmem:[#allocation2 + $0x78] sm:$0xff] %v259
    %317 = vst [vmem:[#allocation2 + $0x80] sm:$0xff] %v263
    %318 = vst [vmem:[#allocation2 + $0x88] sm:$0xff] %v265
    %319 = vst [vmem:[#allocation2 + $0x90] sm:$0xff] %v267
    %320 = vst [vmem:[#allocation2 + $0x98] sm:$0xff] %v269
    %321 = vst [vmem:[#allocation2 + $0xa0] sm:$0xff] %v273
    %322 = vst [vmem:[#allocation2 + $0xa8] sm:$0xff] %v275
    %323 = vst [vmem:[#allocation2 + $0xb0] sm:$0xff] %v277
    %324 = vst [vmem:[#allocation2 + $0xb8] sm:$0xff] %v279
    %325 = vst [vmem:[#allocation2 + $0xc0] sm:$0xff] %v283
    %326 = vst [vmem:[#allocation2 + $0xc8] sm:$0xff] %v285
    %327 = vst [vmem:[#allocation2 + $0xd0] sm:$0xff] %v287
    %328 = vst [vmem:[#allocation2 + $0xd8] sm:$0xff] %v289
    %329 = vst [vmem:[#allocation2 + $0xe0] sm:$0xff] %v293
    %330 = vst [vmem:[#allocation2 + $0xe8] sm:$0xff] %v295
    %331 = vst [vmem:[#allocation2 + $0xf0] sm:$0xff] %v297
    %332 = vst [vmem:[#allocation2 + $0xf8] sm:$0xff] %v299
    // Predicated region
    $region14: #{rnn_model_forward.9} parent=1 // pred_check
      _
    $region15: #{rnn_model_forward.9} parent=1 // pred_check_branch
      %334 = sbr.rel (0) target = $region17
    $region16: #{rnn_model_forward.9} parent=1 // pred_region
      %s336 = ssub.s32 4096, 4096
      %337 = vsyncadd [#allocation3], %s336
      %s338 = sshll.u32 [#allocation2], 4
      %s339 = int_to_ptr.vmem [resolvable:$true] %s338
      %344 = dma.vmem_to_hbm [thread:$0]  %s339, 4096, %s3, [#allocation3], 256, 256, 16
    $region17: #{rnn_model_forward.9} parent=1 // pred_fallthru
      _
    // Predicated region
    $region18: #{rnn_model_forward.9} parent=1 // pred_check
      _
    $region19: #{rnn_model_forward.9} parent=1 // pred_check_branch
      %346 = sbr.rel (0) target = $region21
    $region20: #{rnn_model_forward.9} parent=1 // pred_region
      %347 = dma.done [#allocation3], 4096
    $region21: #{rnn_model_forward.9} parent=1 // pred_fallthru
      _
    %348 = vsyncpa [#allocation3], 1

// kernel: rnn_model_forward.5
$region0: #{rnn_model_forward.5}
  #allocation0 [shape = 'u32[]', space=smem, size = 0x4, offset = 0x4, fixed_abs, tag = 'smem constant byte address 0x4 - core index']
  #allocation1 [shape = 'u32[144,128]{1,0:T(1,128)}', space=vmem, size = 0x12000, scoped, tag = 'internal scratch']
  %s0 = inlined_call_operand.vmem [shape: bf16[128,128], index: 0, kind: input, shape index: {}]
  %s1 = inlined_call_operand.vmem [shape: bf16[128,512], index: 1, kind: input, shape index: {}]
  %s2 = inlined_call_operand.vmem [shape: f32[1,512], index: 2, kind: input, shape index: {}]
  %s3 = inlined_call_operand.vmem [shape: bf16[128,512], index: 3, kind: output, shape index: {}]
  %s4 = sld [smem:[#allocation0]]
  $region22: #{rnn_model_forward.5} parent=0
    _
  %s6 = ssub.s32 1, %s4
  %s7 = scalar_select 0, %s6, %s4
  // Predicated region
  $region2: #{rnn_model_forward.5} parent=0 // pred_check
    _
  $region3: #{rnn_model_forward.5} parent=0 // pred_check_branch
    %9 = sbr.rel (0) target = $region5
  $region4: #{rnn_model_forward.5} parent=0 // pred_region
    _
  $region5: #{rnn_model_forward.5} parent=0 // pred_fallthru
    _
  // Predicated region
  $region6: #{rnn_model_forward.5} parent=0 // pred_check
    _
  $region7: #{rnn_model_forward.5} parent=0 // pred_check_branch
    %11 = sbr.rel (0) target = $region9
  $region8: #{rnn_model_forward.5} parent=0 // pred_region
    _
  $region9: #{rnn_model_forward.5} parent=0 // pred_fallthru
    _
  // Predicated region
  $region10: #{rnn_model_forward.5} parent=0 // pred_check
    _
  $region11: #{rnn_model_forward.5} parent=0 // pred_check_branch
    %13 = sbr.rel (0) target = $region13
  $region12: #{rnn_model_forward.5} parent=0 // pred_region
    _
  $region13: #{rnn_model_forward.5} parent=0 // pred_fallthru
    _
  %v15 = vld [vmem:[%s0] sm:$0xf]
  %v16 = vld [vmem:[%s0 + $0x4] sm:$0xf]
  %v17 = vld [vmem:[%s0 + $0x8] sm:$0xf]
  %v18 = vld [vmem:[%s0 + $0xc] sm:$0xf]
  %v19 = vld [vmem:[%s0 + $0x10] sm:$0xf]
  %v20 = vld [vmem:[%s0 + $0x14] sm:$0xf]
  %v21 = vld [vmem:[%s0 + $0x18] sm:$0xf]
  %v22 = vld [vmem:[%s0 + $0x1c] sm:$0xf]
  %v23 = vld [vmem:[%s0 + $0x20] sm:$0xf]
  %v24 = vld [vmem:[%s0 + $0x24] sm:$0xf]
  %v25 = vld [vmem:[%s0 + $0x28] sm:$0xf]
  %v26 = vld [vmem:[%s0 + $0x2c] sm:$0xf]
  %v27 = vld [vmem:[%s0 + $0x30] sm:$0xf]
  %v28 = vld [vmem:[%s0 + $0x34] sm:$0xf]
  %v29 = vld [vmem:[%s0 + $0x38] sm:$0xf]
  %v30 = vld [vmem:[%s0 + $0x3c] sm:$0xf]
  %v31 = vld [vmem:[%s1] sm:$0xff]
  %v32 = vld [vmem:[%s1 + $0x8] sm:$0xff]
  %v33 = vld [vmem:[%s1 + $0x10] sm:$0xff]
  %v34 = vld [vmem:[%s1 + $0x18] sm:$0xff]
  %v35 = vld [vmem:[%s1 + $0x20] sm:$0xff]
  %v36 = vld [vmem:[%s1 + $0x28] sm:$0xff]
  %v37 = vld [vmem:[%s1 + $0x30] sm:$0xff]
  %v38 = vld [vmem:[%s1 + $0x38] sm:$0xff]
  %v39 = vld [vmem:[%s1 + $0x40] sm:$0xff]
  %v40 = vld [vmem:[%s1 + $0x48] sm:$0xff]
  %v41 = vld [vmem:[%s1 + $0x50] sm:$0xff]
  %v42 = vld [vmem:[%s1 + $0x58] sm:$0xff]
  %v43 = vld [vmem:[%s1 + $0x60] sm:$0xff]
  %v44 = vld [vmem:[%s1 + $0x68] sm:$0xff]
  %v45 = vld [vmem:[%s1 + $0x70] sm:$0xff]
  %v46 = vld [vmem:[%s1 + $0x78] sm:$0xff]
  %v47 = vld [vmem:[%s1 + $0x80] sm:$0xff]
  %v48 = vld [vmem:[%s1 + $0x88] sm:$0xff]
  %v49 = vld [vmem:[%s1 + $0x90] sm:$0xff]
  %v50 = vld [vmem:[%s1 + $0x98] sm:$0xff]
  %v51 = vld [vmem:[%s1 + $0xa0] sm:$0xff]
  %v52 = vld [vmem:[%s1 + $0xa8] sm:$0xff]
  %v53 = vld [vmem:[%s1 + $0xb0] sm:$0xff]
  %v54 = vld [vmem:[%s1 + $0xb8] sm:$0xff]
  %v55 = vld [vmem:[%s1 + $0xc0] sm:$0xff]
  %v56 = vld [vmem:[%s1 + $0xc8] sm:$0xff]
  %v57 = vld [vmem:[%s1 + $0xd0] sm:$0xff]
  %v58 = vld [vmem:[%s1 + $0xd8] sm:$0xff]
  %v59 = vld [vmem:[%s1 + $0xe0] sm:$0xff]
  %v60 = vld [vmem:[%s1 + $0xe8] sm:$0xff]
  %v61 = vld [vmem:[%s1 + $0xf0] sm:$0xff]
  %v62 = vld [vmem:[%s1 + $0xf8] sm:$0xff]
  %v63 = vld [vmem:[%s2] sm:$0xf]
  %v65 = vlaneseq
  %v66 = vshrl.u32 %v65, 7
  %v67 = vsub.s32 0, %v66
  %v68 = vrot.slane %v63, %v67
  %v69 = vlaneseq
  %v70 = vshrl.u32 %v69, 7
  %v71 = vsub.s32 1, %v70
  %v72 = vrot.slane %v63, %v71
  %v73 = vlaneseq
  %v74 = vshrl.u32 %v73, 7
  %v75 = vsub.s32 2, %v74
  %v76 = vrot.slane %v63, %v75
  %v77 = vlaneseq
  %v78 = vshrl.u32 %v77, 7
  %v79 = vsub.s32 3, %v78
  %v80 = vrot.slane %v63, %v79
  %v101 = vunpack.c.l.b16 %v15
  %v102 = vunpack.c.l.b16 %v16
  %v103 = vunpack.c.l.b16 %v17
  %v104 = vunpack.c.l.b16 %v18
  %v105 = vunpack.c.l.b16 %v19
  %v106 = vunpack.c.l.b16 %v20
  %v107 = vunpack.c.l.b16 %v21
  %v108 = vunpack.c.l.b16 %v22
  %v109 = vunpack.c.l.b16 %v23
  %v110 = vunpack.c.l.b16 %v24
  %v111 = vunpack.c.l.b16 %v25
  %v112 = vunpack.c.l.b16 %v26
  %v113 = vunpack.c.l.b16 %v27
  %v114 = vunpack.c.l.b16 %v28
  %v115 = vunpack.c.l.b16 %v29
  %v116 = vunpack.c.l.b16 %v30
  %v117 = vpack.c.b16 %v102, %v101
  %v118 = vpack.c.b16 %v104, %v103
  %v119 = vpack.c.b16 %v106, %v105
  %v120 = vpack.c.b16 %v108, %v107
  %v121 = vpack.c.b16 %v110, %v109
  %v122 = vpack.c.b16 %v112, %v111
  %v123 = vpack.c.b16 %v114, %v113
  %v124 = vpack.c.b16 %v116, %v115
  %v165 = vunpack.c.l.b16 %v31
  %v166 = vunpack.c.h.b16 %v31
  %v167 = vunpack.c.l.b16 %v32
  %v168 = vunpack.c.h.b16 %v32
  %v169 = vunpack.c.l.b16 %v33
  %v170 = vunpack.c.h.b16 %v33
  %v171 = vunpack.c.l.b16 %v34
  %v172 = vunpack.c.h.b16 %v34
  %v173 = vunpack.c.l.b16 %v35
  %v174 = vunpack.c.h.b16 %v35
  %v175 = vunpack.c.l.b16 %v36
  %v176 = vunpack.c.h.b16 %v36
  %v177 = vunpack.c.l.b16 %v37
  %v178 = vunpack.c.h.b16 %v37
  %v179 = vunpack.c.l.b16 %v38
  %v180 = vunpack.c.h.b16 %v38
  %v181 = vunpack.c.l.b16 %v39
  %v182 = vunpack.c.h.b16 %v39
  %v183 = vunpack.c.l.b16 %v40
  %v184 = vunpack.c.h.b16 %v40
  %v185 = vunpack.c.l.b16 %v41
  %v186 = vunpack.c.h.b16 %v41
  %v187 = vunpack.c.l.b16 %v42
  %v188 = vunpack.c.h.b16 %v42
  %v189 = vunpack.c.l.b16 %v43
  %v190 = vunpack.c.h.b16 %v43
  %v191 = vunpack.c.l.b16 %v44
  %v192 = vunpack.c.h.b16 %v44
  %v193 = vunpack.c.l.b16 %v45
  %v194 = vunpack.c.h.b16 %v45
  %v195 = vunpack.c.l.b16 %v46
  %v196 = vunpack.c.h.b16 %v46
  %v197 = vunpack.c.l.b16 %v47
  %v198 = vunpack.c.h.b16 %v47
  %v199 = vunpack.c.l.b16 %v48
  %v200 = vunpack.c.h.b16 %v48
  %v201 = vunpack.c.l.b16 %v49
  %v202 = vunpack.c.h.b16 %v49
  %v203 = vunpack.c.l.b16 %v50
  %v204 = vunpack.c.h.b16 %v50
  %v205 = vunpack.c.l.b16 %v51
  %v206 = vunpack.c.h.b16 %v51
  %v207 = vunpack.c.l.b16 %v52
  %v208 = vunpack.c.h.b16 %v52
  %v209 = vunpack.c.l.b16 %v53
  %v210 = vunpack.c.h.b16 %v53
  %v211 = vunpack.c.l.b16 %v54
  %v212 = vunpack.c.h.b16 %v54
  %v213 = vunpack.c.l.b16 %v55
  %v214 = vunpack.c.h.b16 %v55
  %v215 = vunpack.c.l.b16 %v56
  %v216 = vunpack.c.h.b16 %v56
  %v217 = vunpack.c.l.b16 %v57
  %v218 = vunpack.c.h.b16 %v57
  %v219 = vunpack.c.l.b16 %v58
  %v220 = vunpack.c.h.b16 %v58
  %v221 = vunpack.c.l.b16 %v59
  %v222 = vunpack.c.h.b16 %v59
  %v223 = vunpack.c.l.b16 %v60
  %v224 = vunpack.c.h.b16 %v60
  %v225 = vunpack.c.l.b16 %v61
  %v226 = vunpack.c.h.b16 %v61
  %v227 = vunpack.c.l.b16 %v62
  %v228 = vunpack.c.h.b16 %v62
  %v229 = vpack.c.b16 %v169, %v165
  %v230 = vpack.c.b16 %v170, %v166
  %v231 = vpack.c.b16 %v171, %v167
  %v232 = vpack.c.b16 %v172, %v168
  %v233 = vpack.c.b16 %v177, %v173
  %v234 = vpack.c.b16 %v178, %v174
  %v235 = vpack.c.b16 %v179, %v175
  %v236 = vpack.c.b16 %v180, %v176
  %v237 = vpack.c.b16 %v185, %v181
  %v238 = vpack.c.b16 %v186, %v182
  %v239 = vpack.c.b16 %v187, %v183
  %v240 = vpack.c.b16 %v188, %v184
  %v241 = vpack.c.b16 %v193, %v189
  %v242 = vpack.c.b16 %v194, %v190
  %v243 = vpack.c.b16 %v195, %v191
  %v244 = vpack.c.b16 %v196, %v192
  %v245 = vpack.c.b16 %v201, %v197
  %v246 = vpack.c.b16 %v202, %v198
  %v247 = vpack.c.b16 %v203, %v199
  %v248 = vpack.c.b16 %v204, %v200
  %v249 = vpack.c.b16 %v209, %v205
  %v250 = vpack.c.b16 %v210, %v206
  %v251 = vpack.c.b16 %v211, %v207
  %v252 = vpack.c.b16 %v212, %v208
  %v253 = vpack.c.b16 %v217, %v213
  %v254 = vpack.c.b16 %v218, %v214
  %v255 = vpack.c.b16 %v219, %v215
  %v256 = vpack.c.b16 %v220, %v216
  %v257 = vpack.c.b16 %v225, %v221
  %v258 = vpack.c.b16 %v226, %v222
  %v259 = vpack.c.b16 %v227, %v223
  %v260 = vpack.c.b16 %v228, %v224
  %293 = vmatprep.subr.bf16.mxu0 %v230
  %294 = vmatpush1.bf16.msra.mxu0 %v229
  %295 = vmatprep.subr.bf16.mxu0 %v234
  %296 = vmatpush1.bf16.msra.mxu0 %v233
  %297 = vmatprep.subr.bf16.mxu0 %v238
  %298 = vmatpush1.bf16.msra.mxu0 %v237
  %299 = vmatprep.subr.bf16.mxu0 %v242
  %300 = vmatpush1.bf16.msra.mxu0 %v241
  %301 = vmatprep.subr.bf16.mxu0 %v246
  %302 = vmatpush1.bf16.msra.mxu0 %v245
  %303 = vmatprep.subr.bf16.mxu0 %v250
  %304 = vmatpush1.bf16.msra.mxu0 %v249
  %305 = vmatprep.subr.bf16.mxu0 %v254
  %306 = vmatpush1.bf16.msra.mxu0 %v253
  %307 = vmatprep.subr.bf16.mxu0 %v258
  %308 = vmatpush1.bf16.msra.mxu0 %v257
  %309 = vmatprep.subr.bf16.mxu0 0
  %310 = vmatpush1.bf16.msra.mxu0 0
  %311 = vmatprep.subr.bf16.mxu0 0
  %312 = vmatpush1.bf16.msra.mxu0 0
  %313 = vmatprep.subr.bf16.mxu0 0
  %314 = vmatpush1.bf16.msra.mxu0 0
  %315 = vmatprep.subr.bf16.mxu0 0
  %316 = vmatpush1.bf16.msra.mxu0 0
  %317 = vmatprep.subr.bf16.mxu0 0
  %318 = vmatpush1.bf16.msra.mxu0 0
  %319 = vmatprep.subr.bf16.mxu0 0
  %320 = vmatpush1.bf16.msra.mxu0 0
  %321 = vmatprep.subr.bf16.mxu0 0
  %322 = vmatpush1.bf16.msra.mxu0 0
  %323 = vmatprep.subr.bf16.mxu0 0
  %324 = vmatpush1.bf16.msra.mxu0 0
  %325 = vmatprep.mubr.bf16.mxu0 0
  %326 = vmatmul.mubr.bf16.gmra.mrb[0].mxu0 %v117
  %v327 = vpop.f32.mrb[0].mxu0
  %v328 = vadd.f32 %v68, %v327
  %v329 = vpop.f32.mrb[0].mxu0
  %v330 = vadd.f32 %v72, %v329
  %v331 = vpop.f32.mrb[0].mxu0
  %v332 = vadd.f32 %v68, %v331
  %v333 = vpop.f32.mrb[0].mxu0
  %v334 = vadd.f32 %v72, %v333
  %335 = vmatprep.mubr.bf16.mxu0 0
  %336 = vmatmul.mubr.bf16.gmra.mrb[0].mxu0 %v118
  %v337 = vpop.f32.mrb[0].mxu0
  %v338 = vadd.f32 %v68, %v337
  %v339 = vpop.f32.mrb[0].mxu0
  %v340 = vadd.f32 %v72, %v339
  %v341 = vpop.f32.mrb[0].mxu0
  %v342 = vadd.f32 %v68, %v341
  %v343 = vpop.f32.mrb[0].mxu0
  %v344 = vadd.f32 %v72, %v343
  %345 = vmatprep.mubr.bf16.mxu0 0
  %346 = vmatmul.mubr.bf16.gmra.mrb[0].mxu0 %v119
  %v347 = vpop.f32.mrb[0].mxu0
  %v348 = vadd.f32 %v68, %v347
  %v349 = vpop.f32.mrb[0].mxu0
  %v350 = vadd.f32 %v72, %v349
  %v351 = vpop.f32.mrb[0].mxu0
  %v352 = vadd.f32 %v68, %v351
  %v353 = vpop.f32.mrb[0].mxu0
  %v354 = vadd.f32 %v72, %v353
  %355 = vmatprep.mubr.bf16.mxu0 0
  %356 = vmatmul.mubr.bf16.gmra.mrb[0].mxu0 %v120
  %v357 = vpop.f32.mrb[0].mxu0
  %v358 = vadd.f32 %v68, %v357
  %v359 = vpop.f32.mrb[0].mxu0
  %v360 = vadd.f32 %v72, %v359
  %v361 = vpop.f32.mrb[0].mxu0
  %v362 = vadd.f32 %v68, %v361
  %v363 = vpop.f32.mrb[0].mxu0
  %v364 = vadd.f32 %v72, %v363
  %365 = vmatprep.mubr.bf16.mxu0 0
  %366 = vmatmul.mubr.bf16.gmra.mrb[0].mxu0 %v121
  %v367 = vpop.f32.mrb[0].mxu0
  %v368 = vadd.f32 %v68, %v367
  %v369 = vpop.f32.mrb[0].mxu0
  %v370 = vadd.f32 %v72, %v369
  %v371 = vpop.f32.mrb[0].mxu0
  %v372 = vadd.f32 %v68, %v371
  %v373 = vpop.f32.mrb[0].mxu0
  %v374 = vadd.f32 %v72, %v373
  %375 = vmatprep.mubr.bf16.mxu0 0
  %376 = vmatmul.mubr.bf16.gmra.mrb[0].mxu0 %v122
  %v377 = vpop.f32.mrb[0].mxu0
  %v378 = vadd.f32 %v68, %v377
  %v379 = vpop.f32.mrb[0].mxu0
  %v380 = vadd.f32 %v72, %v379
  %v381 = vpop.f32.mrb[0].mxu0
  %v382 = vadd.f32 %v68, %v381
  %v383 = vpop.f32.mrb[0].mxu0
  %v384 = vadd.f32 %v72, %v383
  %385 = vmatprep.mubr.bf16.mxu0 0
  %386 = vmatmul.mubr.bf16.gmra.mrb[0].mxu0 %v123
  %v387 = vpop.f32.mrb[0].mxu0
  %v388 = vadd.f32 %v68, %v387
  %v389 = vpop.f32.mrb[0].mxu0
  %v390 = vadd.f32 %v72, %v389
  %v391 = vpop.f32.mrb[0].mxu0
  %v392 = vadd.f32 %v68, %v391
  %v393 = vpop.f32.mrb[0].mxu0
  %v394 = vadd.f32 %v72, %v393
  %395 = vmatprep.mubr.bf16.mxu0 0
  %396 = vmatmul.mubr.bf16.gmra.mrb[0].mxu0 %v124
  %v397 = vpop.f32.mrb[0].mxu0
  %v398 = vadd.f32 %v68, %v397
  %v399 = vpop.f32.mrb[0].mxu0
  %v400 = vadd.f32 %v72, %v399
  %v401 = vpop.f32.mrb[0].mxu0
  %v402 = vadd.f32 %v68, %v401
  %v403 = vpop.f32.mrb[0].mxu0
  %v404 = vadd.f32 %v72, %v403
  %405 = vdwg.mxu0
  %406 = vmatprep.subr.bf16.mxu0 %v232
  %407 = vmatpush1.bf16.msra.mxu0 %v231
  %408 = vmatprep.subr.bf16.mxu0 %v236
  %409 = vmatpush1.bf16.msra.mxu0 %v235
  %410 = vmatprep.subr.bf16.mxu0 %v240
  %411 = vmatpush1.bf16.msra.mxu0 %v239
  %412 = vmatprep.subr.bf16.mxu0 %v244
  %413 = vmatpush1.bf16.msra.mxu0 %v243
  %414 = vmatprep.subr.bf16.mxu0 %v248
  %415 = vmatpush1.bf16.msra.mxu0 %v247
  %416 = vmatprep.subr.bf16.mxu0 %v252
  %417 = vmatpush1.bf16.msra.mxu0 %v251
  %418 = vmatprep.subr.bf16.mxu0 %v256
  %419 = vmatpush1.bf16.msra.mxu0 %v255
  %420 = vmatprep.subr.bf16.mxu0 %v260
  %421 = vmatpush1.bf16.msra.mxu0 %v259
  %422 = vmatprep.subr.bf16.mxu0 0
  %423 = vmatpush1.bf16.msra.mxu0 0
  %424 = vmatprep.subr.bf16.mxu0 0
  %425 = vmatpush1.bf16.msra.mxu0 0
  %426 = vmatprep.subr.bf16.mxu0 0
  %427 = vmatpush1.bf16.msra.mxu0 0
  %428 = vmatprep.subr.bf16.mxu0 0
  %429 = vmatpush1.bf16.msra.mxu0 0
  %430 = vmatprep.subr.bf16.mxu0 0
  %431 = vmatpush1.bf16.msra.mxu0 0
  %432 = vmatprep.subr.bf16.mxu0 0
  %433 = vmatpush1.bf16.msra.mxu0 0
  %434 = vmatprep.subr.bf16.mxu0 0
  %435 = vmatpush1.bf16.msra.mxu0 0
  %436 = vmatprep.subr.bf16.mxu0 0
  %437 = vmatpush1.bf16.msra.mxu0 0
  %438 = vmatprep.mubr.bf16.mxu0 0
  %439 = vmatmul.mubr.bf16.gmra.mrb[0].mxu0 %v117
  %v440 = vpop.f32.mrb[0].mxu0
  %v441 = vadd.f32 %v76, %v440
  %v442 = vpop.f32.mrb[0].mxu0
  %v443 = vadd.f32 %v80, %v442
  %v444 = vpop.f32.mrb[0].mxu0
  %v445 = vadd.f32 %v76, %v444
  %v446 = vpop.f32.mrb[0].mxu0
  %v447 = vadd.f32 %v80, %v446
  %448 = vmatprep.mubr.bf16.mxu0 0
  %449 = vmatmul.mubr.bf16.gmra.mrb[0].mxu0 %v118
  %v450 = vpop.f32.mrb[0].mxu0
  %v451 = vadd.f32 %v76, %v450
  %v452 = vpop.f32.mrb[0].mxu0
  %v453 = vadd.f32 %v80, %v452
  %v454 = vpop.f32.mrb[0].mxu0
  %v455 = vadd.f32 %v76, %v454
  %v456 = vpop.f32.mrb[0].mxu0
  %v457 = vadd.f32 %v80, %v456
  %458 = vmatprep.mubr.bf16.mxu0 0
  %459 = vmatmul.mubr.bf16.gmra.mrb[0].mxu0 %v119
  %v460 = vpop.f32.mrb[0].mxu0
  %v461 = vadd.f32 %v76, %v460
  %v462 = vpop.f32.mrb[0].mxu0
  %v463 = vadd.f32 %v80, %v462
  %v464 = vpop.f32.mrb[0].mxu0
  %v465 = vadd.f32 %v76, %v464
  %v466 = vpop.f32.mrb[0].mxu0
  %v467 = vadd.f32 %v80, %v466
  %468 = vmatprep.mubr.bf16.mxu0 0
  %469 = vmatmul.mubr.bf16.gmra.mrb[0].mxu0 %v120
  %v470 = vpop.f32.mrb[0].mxu0
  %v471 = vadd.f32 %v76, %v470
  %v472 = vpop.f32.mrb[0].mxu0
  %v473 = vadd.f32 %v80, %v472
  %v474 = vpop.f32.mrb[0].mxu0
  %v475 = vadd.f32 %v76, %v474
  %v476 = vpop.f32.mrb[0].mxu0
  %v477 = vadd.f32 %v80, %v476
  %478 = vmatprep.mubr.bf16.mxu0 0
  %479 = vmatmul.mubr.bf16.gmra.mrb[0].mxu0 %v121
  %v480 = vpop.f32.mrb[0].mxu0
  %v481 = vadd.f32 %v76, %v480
  %v482 = vpop.f32.mrb[0].mxu0
  %v483 = vadd.f32 %v80, %v482
  %v484 = vpop.f32.mrb[0].mxu0
  %v485 = vadd.f32 %v76, %v484
  %v486 = vpop.f32.mrb[0].mxu0
  %v487 = vadd.f32 %v80, %v486
  %488 = vmatprep.mubr.bf16.mxu0 0
  %489 = vmatmul.mubr.bf16.gmra.mrb[0].mxu0 %v122
  %v490 = vpop.f32.mrb[0].mxu0
  %v491 = vadd.f32 %v76, %v490
  %v492 = vpop.f32.mrb[0].mxu0
  %v493 = vadd.f32 %v80, %v492
  %v494 = vpop.f32.mrb[0].mxu0
  %v495 = vadd.f32 %v76, %v494
  %v496 = vpop.f32.mrb[0].mxu0
  %v497 = vadd.f32 %v80, %v496
  %498 = vmatprep.mubr.bf16.mxu0 0
  %499 = vmatmul.mubr.bf16.gmra.mrb[0].mxu0 %v123
  %v500 = vpop.f32.mrb[0].mxu0
  %v501 = vadd.f32 %v76, %v500
  %v502 = vpop.f32.mrb[0].mxu0
  %v503 = vadd.f32 %v80, %v502
  %v504 = vpop.f32.mrb[0].mxu0
  %v505 = vadd.f32 %v76, %v504
  %v506 = vpop.f32.mrb[0].mxu0
  %v507 = vadd.f32 %v80, %v506
  %508 = vmatprep.mubr.bf16.mxu0 0
  %509 = vmatmul.mubr.bf16.gmra.mrb[0].mxu0 %v124
  %v510 = vpop.f32.mrb[0].mxu0
  %v511 = vadd.f32 %v76, %v510
  %v512 = vpop.f32.mrb[0].mxu0
  %v513 = vadd.f32 %v80, %v512
  %v514 = vpop.f32.mrb[0].mxu0
  %v515 = vadd.f32 %v76, %v514
  %v516 = vpop.f32.mrb[0].mxu0
  %v517 = vadd.f32 %v80, %v516
  %518 = vdwg.mxu0
  %v519 = vpack.c.bf16 %v332, %v328
  %v520 = vpack.c.bf16 %v334, %v330
  %v521 = vpack.c.bf16 %v445, %v441
  %v522 = vpack.c.bf16 %v447, %v443
  %v523 = vpack.c.bf16 %v342, %v338
  %v524 = vpack.c.bf16 %v344, %v340
  %v525 = vpack.c.bf16 %v455, %v451
  %v526 = vpack.c.bf16 %v457, %v453
  %v527 = vpack.c.bf16 %v352, %v348
  %v528 = vpack.c.bf16 %v354, %v350
  %v529 = vpack.c.bf16 %v465, %v461
  %v530 = vpack.c.bf16 %v467, %v463
  %v531 = vpack.c.bf16 %v362, %v358
  %v532 = vpack.c.bf16 %v364, %v360
  %v533 = vpack.c.bf16 %v475, %v471
  %v534 = vpack.c.bf16 %v477, %v473
  %v535 = vpack.c.bf16 %v372, %v368
  %v536 = vpack.c.bf16 %v374, %v370
  %v537 = vpack.c.bf16 %v485, %v481
  %v538 = vpack.c.bf16 %v487, %v483
  %v539 = vpack.c.bf16 %v382, %v378
  %v540 = vpack.c.bf16 %v384, %v380
  %v541 = vpack.c.bf16 %v495, %v491
  %v542 = vpack.c.bf16 %v497, %v493
  %v543 = vpack.c.bf16 %v392, %v388
  %v544 = vpack.c.bf16 %v394, %v390
  %v545 = vpack.c.bf16 %v505, %v501
  %v546 = vpack.c.bf16 %v507, %v503
  %v547 = vpack.c.bf16 %v402, %v398
  %v548 = vpack.c.bf16 %v404, %v400
  %v549 = vpack.c.bf16 %v515, %v511
  %v550 = vpack.c.bf16 %v517, %v513
  %v583 = vunpack.c.l.b16 %v519
  %v584 = vunpack.c.l.b16 %v520
  %v585 = vunpack.c.l.b16 %v521
  %v586 = vunpack.c.l.b16 %v522
  %v587 = vunpack.c.h.b16 %v519
  %v588 = vunpack.c.h.b16 %v520
  %v589 = vunpack.c.h.b16 %v521
  %v590 = vunpack.c.h.b16 %v522
  %v591 = vunpack.c.l.b16 %v523
  %v592 = vunpack.c.l.b16 %v524
  %v593 = vunpack.c.l.b16 %v525
  %v594 = vunpack.c.l.b16 %v526
  %v595 = vunpack.c.h.b16 %v523
  %v596 = vunpack.c.h.b16 %v524
  %v597 = vunpack.c.h.b16 %v525
  %v598 = vunpack.c.h.b16 %v526
  %v599 = vunpack.c.l.b16 %v527
  %v600 = vunpack.c.l.b16 %v528
  %v601 = vunpack.c.l.b16 %v529
  %v602 = vunpack.c.l.b16 %v530
  %v603 = vunpack.c.h.b16 %v527
  %v604 = vunpack.c.h.b16 %v528
  %v605 = vunpack.c.h.b16 %v529
  %v606 = vunpack.c.h.b16 %v530
  %v607 = vunpack.c.l.b16 %v531
  %v608 = vunpack.c.l.b16 %v532
  %v609 = vunpack.c.l.b16 %v533
  %v610 = vunpack.c.l.b16 %v534
  %v611 = vunpack.c.h.b16 %v531
  %v612 = vunpack.c.h.b16 %v532
  %v613 = vunpack.c.h.b16 %v533
  %v614 = vunpack.c.h.b16 %v534
  %v615 = vunpack.c.l.b16 %v535
  %v616 = vunpack.c.l.b16 %v536
  %v617 = vunpack.c.l.b16 %v537
  %v618 = vunpack.c.l.b16 %v538
  %v619 = vunpack.c.h.b16 %v535
  %v620 = vunpack.c.h.b16 %v536
  %v621 = vunpack.c.h.b16 %v537
  %v622 = vunpack.c.h.b16 %v538
  %v623 = vunpack.c.l.b16 %v539
  %v624 = vunpack.c.l.b16 %v540
  %v625 = vunpack.c.l.b16 %v541
  %v626 = vunpack.c.l.b16 %v542
  %v627 = vunpack.c.h.b16 %v539
  %v628 = vunpack.c.h.b16 %v540
  %v629 = vunpack.c.h.b16 %v541
  %v630 = vunpack.c.h.b16 %v542
  %v631 = vunpack.c.l.b16 %v543
  %v632 = vunpack.c.l.b16 %v544
  %v633 = vunpack.c.l.b16 %v545
  %v634 = vunpack.c.l.b16 %v546
  %v635 = vunpack.c.h.b16 %v543
  %v636 = vunpack.c.h.b16 %v544
  %v637 = vunpack.c.h.b16 %v545
  %v638 = vunpack.c.h.b16 %v546
  %v639 = vunpack.c.l.b16 %v547
  %v640 = vunpack.c.l.b16 %v548
  %v641 = vunpack.c.l.b16 %v549
  %v642 = vunpack.c.l.b16 %v550
  %v643 = vunpack.c.h.b16 %v547
  %v644 = vunpack.c.h.b16 %v548
  %v645 = vunpack.c.h.b16 %v549
  %v646 = vunpack.c.h.b16 %v550
  %v647 = vpack.c.b16 %v584, %v583
  %v648 = vpack.c.b16 %v586, %v585
  %v649 = vpack.c.b16 %v588, %v587
  %v650 = vpack.c.b16 %v590, %v589
  %v651 = vpack.c.b16 %v592, %v591
  %v652 = vpack.c.b16 %v594, %v593
  %v653 = vpack.c.b16 %v596, %v595
  %v654 = vpack.c.b16 %v598, %v597
  %v655 = vpack.c.b16 %v600, %v599
  %v656 = vpack.c.b16 %v602, %v601
  %v657 = vpack.c.b16 %v604, %v603
  %v658 = vpack.c.b16 %v606, %v605
  %v659 = vpack.c.b16 %v608, %v607
  %v660 = vpack.c.b16 %v610, %v609
  %v661 = vpack.c.b16 %v612, %v611
  %v662 = vpack.c.b16 %v614, %v613
  %v663 = vpack.c.b16 %v616, %v615
  %v664 = vpack.c.b16 %v618, %v617
  %v665 = vpack.c.b16 %v620, %v619
  %v666 = vpack.c.b16 %v622, %v621
  %v667 = vpack.c.b16 %v624, %v623
  %v668 = vpack.c.b16 %v626, %v625
  %v669 = vpack.c.b16 %v628, %v627
  %v670 = vpack.c.b16 %v630, %v629
  %v671 = vpack.c.b16 %v632, %v631
  %v672 = vpack.c.b16 %v634, %v633
  %v673 = vpack.c.b16 %v636, %v635
  %v674 = vpack.c.b16 %v638, %v637
  %v675 = vpack.c.b16 %v640, %v639
  %v676 = vpack.c.b16 %v642, %v641
  %v677 = vpack.c.b16 %v644, %v643
  %v678 = vpack.c.b16 %v646, %v645
  %711 = vst [vmem:[%s3] sm:$0xff] %v647
  %712 = vst [vmem:[%s3 + $0x8] sm:$0xff] %v648
  %713 = vst [vmem:[%s3 + $0x10] sm:$0xff] %v649
  %714 = vst [vmem:[%s3 + $0x18] sm:$0xff] %v650
  %715 = vst [vmem:[%s3 + $0x20] sm:$0xff] %v651
  %716 = vst [vmem:[%s3 + $0x28] sm:$0xff] %v652
  %717 = vst [vmem:[%s3 + $0x30] sm:$0xff] %v653
  %718 = vst [vmem:[%s3 + $0x38] sm:$0xff] %v654
  %719 = vst [vmem:[%s3 + $0x40] sm:$0xff] %v655
  %720 = vst [vmem:[%s3 + $0x48] sm:$0xff] %v656
  %721 = vst [vmem:[%s3 + $0x50] sm:$0xff] %v657
  %722 = vst [vmem:[%s3 + $0x58] sm:$0xff] %v658
  %723 = vst [vmem:[%s3 + $0x60] sm:$0xff] %v659
  %724 = vst [vmem:[%s3 + $0x68] sm:$0xff] %v660
  %725 = vst [vmem:[%s3 + $0x70] sm:$0xff] %v661
  %726 = vst [vmem:[%s3 + $0x78] sm:$0xff] %v662
  %727 = vst [vmem:[%s3 + $0x80] sm:$0xff] %v663
  %728 = vst [vmem:[%s3 + $0x88] sm:$0xff] %v664
  %729 = vst [vmem:[%s3 + $0x90] sm:$0xff] %v665
  %730 = vst [vmem:[%s3 + $0x98] sm:$0xff] %v666
  %731 = vst [vmem:[%s3 + $0xa0] sm:$0xff] %v667
  %732 = vst [vmem:[%s3 + $0xa8] sm:$0xff] %v668
  %733 = vst [vmem:[%s3 + $0xb0] sm:$0xff] %v669
  %734 = vst [vmem:[%s3 + $0xb8] sm:$0xff] %v670
  %735 = vst [vmem:[%s3 + $0xc0] sm:$0xff] %v671
  %736 = vst [vmem:[%s3 + $0xc8] sm:$0xff] %v672
  %737 = vst [vmem:[%s3 + $0xd0] sm:$0xff] %v673
  %738 = vst [vmem:[%s3 + $0xd8] sm:$0xff] %v674
  %739 = vst [vmem:[%s3 + $0xe0] sm:$0xff] %v675
  %740 = vst [vmem:[%s3 + $0xe8] sm:$0xff] %v676
  %741 = vst [vmem:[%s3 + $0xf0] sm:$0xff] %v677
  %742 = vst [vmem:[%s3 + $0xf8] sm:$0xff] %v678
  // Predicated region
  $region14: #{rnn_model_forward.5} parent=0 // pred_check
    _
  $region15: #{rnn_model_forward.5} parent=0 // pred_check_branch
    %744 = sbr.rel (0) target = $region17
  $region16: #{rnn_model_forward.5} parent=0 // pred_region
    _
  $region17: #{rnn_model_forward.5} parent=0 // pred_fallthru
    _
  // Predicated region
  $region18: #{rnn_model_forward.5} parent=0 // pred_check
    _
  $region19: #{rnn_model_forward.5} parent=0 // pred_check_branch
    %746 = sbr.rel (0) target = $region21
  $region20: #{rnn_model_forward.5} parent=0 // pred_region
    _
  $region21: #{rnn_model_forward.5} parent=0 // pred_fallthru
    _

// kernel: rnn_model_forward.6
$region0: #{rnn_model_forward.6}
  #allocation0 [shape = 'u32[]', space=smem, size = 0x4, offset = 0x4, fixed_abs, tag = 'smem constant byte address 0x4 - core index']
  #allocation1 [shape = 'u32[144,128]{1,0:T(1,128)}', space=vmem, size = 0x12000, scoped, tag = 'internal scratch']
  #allocation2 [shape = 'bf16[8,128]{1,0:T(8,128)(2,1)}', space=vmem, size = 0x800, scoped, tag = 'scratch operand']
  #allocation3 [shape = 'f32[8,128]{1,0:T(8,128)}', space=vmem, size = 0x1000, scoped, tag = 'scratch operand']
  %s0 = inlined_call_operand.vmem [shape: bf16[16,8,512], index: 0, kind: input, shape index: {}]
  %s1 = inlined_call_operand.vmem [shape: bf16[128,512], index: 1, kind: input, shape index: {}]
  %s2 = inlined_call_operand.vmem [shape: f32[8,128], index: 2, kind: input, shape index: {}]
  %s3 = inlined_call_operand.vmem [shape: f32[8,128], index: 3, kind: input, shape index: {}]
  %s4 = inlined_call_operand.vmem [shape: bf16[16,8,128], index: 4, kind: output, shape index: {0}]
  %s5 = inlined_call_operand.vmem [shape: f32[8,128], index: 5, kind: output, shape index: {1}]
  %s6 = inlined_call_operand.vmem [shape: f32[8,128], index: 6, kind: output, shape index: {2}]
  %7 = xla_tuple %s4, %s5, %s6
  %s8 = sld [smem:[#allocation0]]
  $region69: #{rnn_model_forward.6} parent=0
    _
  %s10 = ssub.s32 1, %s8
  %s11 = scalar_select 0, %s10, %s8
  loop: start=0, step=1, limit=4
  $region2: #{rnn_model_forward.6} parent=0 // loop_pre_header
    _
  $region3: #{rnn_model_forward.6} parent=0 // loop_header
    %s13 = sphi 0, %s17
    %p14 = scmp.ge.s32.totalorder %s13, 4
    %s23 = sphi 0, %s25
    %s26 = sphi 0, %s23
    %s27 = sphi 0, %s26
    %s43 = sphi 0, %s27
    %s47 = sphi 0, %s47
    %s49 = sphi 0, %s47
    %s50 = sphi 0, %s49
    %s64 = sphi 0, %s50
    %s68 = sphi 0, %s68
    %s70 = sphi 0, %s68
    %s71 = sphi 0, %s70
    %s85 = sphi 0, %s71
    %s89 = sphi 0, %s89
    %s91 = sphi 0, %s89
    %s92 = sphi 0, %s91
    %s106 = sphi 0, %s92
    %s112 = sphi 0, %s114
    %s115 = sphi 0, %s112
    %s116 = sphi 0, %s115
    %s132 = sphi 0, %s116
    %s136 = sphi 0, %s136
    %s138 = sphi 0, %s136
    %s139 = sphi 0, %s138
    %s153 = sphi 0, %s139
    %s157 = sphi 0, %s157
    %s159 = sphi 0, %s157
    %s160 = sphi 0, %s159
    %s174 = sphi 0, %s160
  $region4: #{rnn_model_forward.6} parent=0 // loop_header_branch
    %16 = sbr.rel (%p14) target = $region8
  $region5: #{rnn_model_forward.6} parent=0 // loop_body
    %s18 = ssub.s32 %s13, 1
    %s19 = ssub.s32 %s13, 2
    %s20 = sadd.s32 %s13, 1
    %s21 = ssub.s32 %s13, %s20
    %p22 = scmp.eq.s32.totalorder %s21, 0
    %s24 = sadd.s32 %s23, 1
    %s25 = scalar_select %p22, %s23, %s24
    %p28 = pneg %p22
    %p29 = scmp.eq.s32.totalorder %s13, 1
    %p30 = por %p28, %p29
    %p31 = scmp.ne.s32.totalorder %s23, %s26
    %p32 = scmp.eq.s32.totalorder %s13, 0
    %p33 = por %p31, %p32
    %p34 = scmp.ne.s32.totalorder %s23, %s26
    %p35 = scmp.eq.s32.totalorder %s18, 1
    %p36 = por %p34, %p35
    %p37 = scmp.ne.s32.totalorder %s26, %s27
    %p38 = scmp.eq.s32.totalorder %s18, 0
    %p39 = por %p37, %p38
    %p40 = scmp.ne.s32.totalorder %s26, %s27
    %p41 = scmp.eq.s32.totalorder %s19, 1
    %p42 = por %p40, %p41
    %p44 = scmp.ne.s32.totalorder %s27, %s43
    %p45 = scmp.eq.s32.totalorder %s19, 0
    %p46 = por %p44, %p45
    %s48 = sadd.s32 %s47, 1
    %p51 = scmp.eq.s32.totalorder %s13, 1
    %p52 = scmp.ne.s32.totalorder %s47, %s49
    %p53 = scmp.eq.s32.totalorder %s13, 0
    %p54 = por %p52, %p53
    %p55 = scmp.ne.s32.totalorder %s47, %s49
    %p56 = scmp.eq.s32.totalorder %s18, 1
    %p57 = por %p55, %p56
    %p58 = scmp.ne.s32.totalorder %s49, %s50
    %p59 = scmp.eq.s32.totalorder %s18, 0
    %p60 = por %p58, %p59
    %p61 = scmp.ne.s32.totalorder %s49, %s50
    %p62 = scmp.eq.s32.totalorder %s19, 1
    %p63 = por %p61, %p62
    %p65 = scmp.ne.s32.totalorder %s50, %s64
    %p66 = scmp.eq.s32.totalorder %s19, 0
    %p67 = por %p65, %p66
    %s69 = sadd.s32 %s68, 1
    %p72 = scmp.eq.s32.totalorder %s13, 1
    %p73 = scmp.ne.s32.totalorder %s68, %s70
    %p74 = scmp.eq.s32.totalorder %s13, 0
    %p75 = por %p73, %p74
    %p76 = scmp.ne.s32.totalorder %s68, %s70
    %p77 = scmp.eq.s32.totalorder %s18, 1
    %p78 = por %p76, %p77
    %p79 = scmp.ne.s32.totalorder %s70, %s71
    %p80 = scmp.eq.s32.totalorder %s18, 0
    %p81 = por %p79, %p80
    %p82 = scmp.ne.s32.totalorder %s70, %s71
    %p83 = scmp.eq.s32.totalorder %s19, 1
    %p84 = por %p82, %p83
    %p86 = scmp.ne.s32.totalorder %s71, %s85
    %p87 = scmp.eq.s32.totalorder %s19, 0
    %p88 = por %p86, %p87
    %s90 = sadd.s32 %s89, 1
    %p93 = scmp.eq.s32.totalorder %s13, 1
    %p94 = scmp.ne.s32.totalorder %s89, %s91
    %p95 = scmp.eq.s32.totalorder %s13, 0
    %p96 = por %p94, %p95
    %p97 = scmp.ne.s32.totalorder %s89, %s91
    %p98 = scmp.eq.s32.totalorder %s18, 1
    %p99 = por %p97, %p98
    %p100 = scmp.ne.s32.totalorder %s91, %s92
    %p101 = scmp.eq.s32.totalorder %s18, 0
    %p102 = por %p100, %p101
    %p103 = scmp.ne.s32.totalorder %s91, %s92
    %p104 = scmp.eq.s32.totalorder %s19, 1
    %p105 = por %p103, %p104
    %p107 = scmp.ne.s32.totalorder %s92, %s106
    %p108 = scmp.eq.s32.totalorder %s19, 0
    %p109 = por %p107, %p108
    %s110 = ssub.s32 %s13, %s20
    %p111 = scmp.eq.s32.totalorder %s110, 0
    %s113 = sadd.s32 %s112, 1
    %s114 = scalar_select %p111, %s112, %s113
    %p117 = pneg %p111
    %p118 = scmp.eq.s32.totalorder %s13, 1
    %p119 = por %p117, %p118
    %p120 = scmp.ne.s32.totalorder %s112, %s115
    %p121 = scmp.eq.s32.totalorder %s13, 0
    %p122 = por %p120, %p121
    %p123 = scmp.ne.s32.totalorder %s112, %s115
    %p124 = scmp.eq.s32.totalorder %s18, 1
    %p125 = por %p123, %p124
    %p126 = scmp.ne.s32.totalorder %s115, %s116
    %p127 = scmp.eq.s32.totalorder %s18, 0
    %p128 = por %p126, %p127
    %p129 = scmp.ne.s32.totalorder %s115, %s116
    %p130 = scmp.eq.s32.totalorder %s19, 1
    %p131 = por %p129, %p130
    %p133 = scmp.ne.s32.totalorder %s116, %s132
    %p134 = scmp.eq.s32.totalorder %s19, 0
    %p135 = por %p133, %p134
    %s137 = sadd.s32 %s136, 1
    %p140 = scmp.eq.s32.totalorder %s13, 1
    %p141 = scmp.ne.s32.totalorder %s136, %s138
    %p142 = scmp.eq.s32.totalorder %s13, 0
    %p143 = por %p141, %p142
    %p144 = scmp.ne.s32.totalorder %s136, %s138
    %p145 = scmp.eq.s32.totalorder %s18, 1
    %p146 = por %p144, %p145
    %p147 = scmp.ne.s32.totalorder %s138, %s139
    %p148 = scmp.eq.s32.totalorder %s18, 0
    %p149 = por %p147, %p148
    %p150 = scmp.ne.s32.totalorder %s138, %s139
    %p151 = scmp.eq.s32.totalorder %s19, 1
    %p152 = por %p150, %p151
    %p154 = scmp.ne.s32.totalorder %s139, %s153
    %p155 = scmp.eq.s32.totalorder %s19, 0
    %p156 = por %p154, %p155
    %s158 = sadd.s32 %s157, 1
    %p161 = scmp.eq.s32.totalorder %s13, 1
    %p162 = scmp.ne.s32.totalorder %s157, %s159
    %p163 = scmp.eq.s32.totalorder %s13, 0
    %p164 = por %p162, %p163
    %p165 = scmp.ne.s32.totalorder %s157, %s159
    %p166 = scmp.eq.s32.totalorder %s18, 1
    %p167 = por %p165, %p166
    %p168 = scmp.ne.s32.totalorder %s159, %s160
    %p169 = scmp.eq.s32.totalorder %s18, 0
    %p170 = por %p168, %p169
    %p171 = scmp.ne.s32.totalorder %s159, %s160
    %p172 = scmp.eq.s32.totalorder %s19, 1
    %p173 = por %p171, %p172
    %p175 = scmp.ne.s32.totalorder %s160, %s174
    %p176 = scmp.eq.s32.totalorder %s19, 0
    %p177 = por %p175, %p176
    %p178 = scmp.le.s32.totalorder 1, %s13
    %p179 = scmp.lt.s32.totalorder %s13, 3
    %p180 = pnand %p178, %p179
    %p181 = pneg %p180
    // Predicated region
    $region9: #{rnn_model_forward.6} parent=5 // pred_check
      _
    $region10: #{rnn_model_forward.6} parent=5 // pred_check_branch
      %183 = sbr.rel (%p180) target = $region12
    $region11: #{rnn_model_forward.6} parent=5 // pred_region
      %s184 = ssub.s32 %s13, 1
      // Predicated region
      $region13: #{rnn_model_forward.6} parent=11 // pred_check
        %p185 = pneg %p60
      $region14: #{rnn_model_forward.6} parent=11 // pred_check_branch
        %187 = sbr.rel (%p185) target = $region16
      $region15: #{rnn_model_forward.6} parent=11 // pred_region
        _
      $region16: #{rnn_model_forward.6} parent=11 // pred_fallthru
        _
      // Predicated region
      $region17: #{rnn_model_forward.6} parent=11 // pred_check
        %p188 = pneg %p81
      $region18: #{rnn_model_forward.6} parent=11 // pred_check_branch
        %190 = sbr.rel (%p188) target = $region20
      $region19: #{rnn_model_forward.6} parent=11 // pred_region
        _
      $region20: #{rnn_model_forward.6} parent=11 // pred_fallthru
        _
      // Predicated region
      $region21: #{rnn_model_forward.6} parent=11 // pred_check
        %p191 = pneg %p102
      $region22: #{rnn_model_forward.6} parent=11 // pred_check_branch
        %193 = sbr.rel (%p191) target = $region24
      $region23: #{rnn_model_forward.6} parent=11 // pred_region
        _
      $region24: #{rnn_model_forward.6} parent=11 // pred_fallthru
        _
    $region12: #{rnn_model_forward.6} parent=5 // pred_fallthru
      _
    %p194 = scmp.lt.s32.totalorder %s13, 2
    // Predicated region
    $region25: #{rnn_model_forward.6} parent=5 // pred_check
      %p195 = pneg %p194
    $region26: #{rnn_model_forward.6} parent=5 // pred_check_branch
      %197 = sbr.rel (%p195) target = $region28
    $region27: #{rnn_model_forward.6} parent=5 // pred_region
      // Predicated region
      $region29: #{rnn_model_forward.6} parent=27 // pred_check
        %p198 = pneg %p33
      $region30: #{rnn_model_forward.6} parent=27 // pred_check_branch
        %200 = sbr.rel (%p198) target = $region32
      $region31: #{rnn_model_forward.6} parent=27 // pred_region
        %s201 = smul.u32 8, %s13
        %p202 = scmp.lt.s32.totalorder %s201, 15
        %s203 = scalar_select %p202, %s201, 15
        %s204 = smul.addr %s203, 4
        %s205 = smul.addr %s204, 4
        %s206 = scalar_lea.vmem %s0, %s205
        %s207 = smul.u32 8, %s13
      $region32: #{rnn_model_forward.6} parent=27 // pred_fallthru
        _
    $region28: #{rnn_model_forward.6} parent=5 // pred_fallthru
      _
    %p208 = scmp.le.s32.totalorder 1, %s13
    %p209 = scmp.lt.s32.totalorder %s13, 3
    %p210 = pnand %p208, %p209
    %p211 = pneg %p210
    // Predicated region
    $region33: #{rnn_model_forward.6} parent=5 // pred_check
      _
    $region34: #{rnn_model_forward.6} parent=5 // pred_check_branch
      %213 = sbr.rel (%p210) target = $region36
    $region35: #{rnn_model_forward.6} parent=5 // pred_region
      %s214 = ssub.s32 %s13, 1
      %s215 = smul.u32 8, %s18
      %p216 = scmp.lt.s32.totalorder %s215, 15
      %s217 = scalar_select %p216, %s215, 15
      %s218 = smul.addr %s217, 4
      %s219 = smul.addr %s218, 4
      %s220 = scalar_lea.vmem %s0, %s219
      %p221 = pneg %p39
      %p222 = pneg %p36
      %p223 = pneg %p60
      %p224 = pneg %p57
      %p225 = pneg %p81
      %p226 = pneg %p78
      %p227 = pneg %p102
      %p228 = pneg %p99
      %p229 = pneg %p128
      %p230 = pneg %p125
      %s231 = smul.u32 8, %s18
      %p232 = scmp.lt.s32.totalorder %s231, 15
      %s233 = scalar_select %p232, %s231, 15
      %s234 = smul.addr %s233, 4
      %s235 = scalar_lea.vmem %s4, %s234
      %p236 = pneg %p149
      %p237 = pneg %p146
      %p238 = pneg %p170
      %p239 = pneg %p167
      %s240 = smul.u32 8, %s18
      %p241 = scmp.lt.s32.totalorder %s240, 15
      %s242 = scalar_select %p241, %s240, 15
      %s243 = smul.addr %s242, 4
      %s244 = smul.addr %s243, 4
      %s245 = scalar_lea.vmem %s0, %s244
      %s246 = smul.u32 8, %s18
      %s247 = smul.u32 8, %s18
      %p248 = scmp.lt.s32.totalorder %s247, 15
      %s249 = scalar_select %p248, %s247, 15
      %s250 = smul.addr %s249, 4
      %s251 = scalar_lea.vmem %s4, %s250
      %s252 = smul.u32 8, %s18
      %p254 = scmp.eq.s32.totalorder %s18, 0
      // Predicated region
      $region37: #{rnn_model_forward.6} parent=35 // pred_check
        %p255 = pneg %p254
      $region38: #{rnn_model_forward.6} parent=35 // pred_check_branch
        %257 = sbr.rel (%p255) target = $region40
      $region39: #{rnn_model_forward.6} parent=35 // pred_region
        %v258 = vld [vmem:[%s2] sm:$0xff]
        %v259 = vpack.c.bf16 %v258, %v258
        %260 = vst [vmem:[#allocation2] sm:$0xf] %v259
        %v261 = vld [vmem:[%s3] sm:$0xff]
        %262 = vst [vmem:[#allocation3] sm:$0xff] %v261
      $region40: #{rnn_model_forward.6} parent=35 // pred_fallthru
        _
      %v263 = vld [vmem:[%s1] sm:$0xff]
      %v264 = vld [vmem:[%s1 + $0x8] sm:$0xff]
      %v265 = vld [vmem:[%s1 + $0x10] sm:$0xff]
      %v266 = vld [vmem:[%s1 + $0x18] sm:$0xff]
      %v267 = vld [vmem:[%s1 + $0x20] sm:$0xff]
      %v268 = vld [vmem:[%s1 + $0x28] sm:$0xff]
      %v269 = vld [vmem:[%s1 + $0x30] sm:$0xff]
      %v270 = vld [vmem:[%s1 + $0x38] sm:$0xff]
      %v271 = vld [vmem:[%s1 + $0x40] sm:$0xff]
      %v272 = vld [vmem:[%s1 + $0x48] sm:$0xff]
      %v273 = vld [vmem:[%s1 + $0x50] sm:$0xff]
      %v274 = vld [vmem:[%s1 + $0x58] sm:$0xff]
      %v275 = vld [vmem:[%s1 + $0x60] sm:$0xff]
      %v276 = vld [vmem:[%s1 + $0x68] sm:$0xff]
      %v277 = vld [vmem:[%s1 + $0x70] sm:$0xff]
      %v278 = vld [vmem:[%s1 + $0x78] sm:$0xff]
      %v279 = vld [vmem:[%s1 + $0x80] sm:$0xff]
      %v280 = vld [vmem:[%s1 + $0x88] sm:$0xff]
      %v281 = vld [vmem:[%s1 + $0x90] sm:$0xff]
      %v282 = vld [vmem:[%s1 + $0x98] sm:$0xff]
      %v283 = vld [vmem:[%s1 + $0xa0] sm:$0xff]
      %v284 = vld [vmem:[%s1 + $0xa8] sm:$0xff]
      %v285 = vld [vmem:[%s1 + $0xb0] sm:$0xff]
      %v286 = vld [vmem:[%s1 + $0xb8] sm:$0xff]
      %v287 = vld [vmem:[%s1 + $0xc0] sm:$0xff]
      %v288 = vld [vmem:[%s1 + $0xc8] sm:$0xff]
      %v289 = vld [vmem:[%s1 + $0xd0] sm:$0xff]
      %v290 = vld [vmem:[%s1 + $0xd8] sm:$0xff]
      %v291 = vld [vmem:[%s1 + $0xe0] sm:$0xff]
      %v292 = vld [vmem:[%s1 + $0xe8] sm:$0xff]
      %v293 = vld [vmem:[%s1 + $0xf0] sm:$0xff]
      %v294 = vld [vmem:[%s1 + $0xf8] sm:$0xff]
      %v295 = vld [vmem:[%s245] sm:$0xff]
      %v296 = vld [vmem:[%s245 + $0x8] sm:$0xff]
      %v297 = vunpack.c.l.bf16 %v295
      %v298 = vunpack.c.h.bf16 %v295
      %v299 = vunpack.c.l.bf16 %v296
      %v300 = vunpack.c.h.bf16 %v296
      %v301 = vld [vmem:[#allocation2] sm:$0xf]
      %v334 = vunpack.c.l.b16 %v263
      %v335 = vunpack.c.h.b16 %v263
      %v336 = vunpack.c.l.b16 %v264
      %v337 = vunpack.c.h.b16 %v264
      %v338 = vunpack.c.l.b16 %v265
      %v339 = vunpack.c.h.b16 %v265
      %v340 = vunpack.c.l.b16 %v266
      %v341 = vunpack.c.h.b16 %v266
      %v342 = vunpack.c.l.b16 %v267
      %v343 = vunpack.c.h.b16 %v267
      %v344 = vunpack.c.l.b16 %v268
      %v345 = vunpack.c.h.b16 %v268
      %v346 = vunpack.c.l.b16 %v269
      %v347 = vunpack.c.h.b16 %v269
      %v348 = vunpack.c.l.b16 %v270
      %v349 = vunpack.c.h.b16 %v270
      %v350 = vunpack.c.l.b16 %v271
      %v351 = vunpack.c.h.b16 %v271
      %v352 = vunpack.c.l.b16 %v272
      %v353 = vunpack.c.h.b16 %v272
      %v354 = vunpack.c.l.b16 %v273
      %v355 = vunpack.c.h.b16 %v273
      %v356 = vunpack.c.l.b16 %v274
      %v357 = vunpack.c.h.b16 %v274
      %v358 = vunpack.c.l.b16 %v275
      %v359 = vunpack.c.h.b16 %v275
      %v360 = vunpack.c.l.b16 %v276
      %v361 = vunpack.c.h.b16 %v276
      %v362 = vunpack.c.l.b16 %v277
      %v363 = vunpack.c.h.b16 %v277
      %v364 = vunpack.c.l.b16 %v278
      %v365 = vunpack.c.h.b16 %v278
      %v366 = vunpack.c.l.b16 %v279
      %v367 = vunpack.c.h.b16 %v279
      %v368 = vunpack.c.l.b16 %v280
      %v369 = vunpack.c.h.b16 %v280
      %v370 = vunpack.c.l.b16 %v281
      %v371 = vunpack.c.h.b16 %v281
      %v372 = vunpack.c.l.b16 %v282
      %v373 = vunpack.c.h.b16 %v282
      %v374 = vunpack.c.l.b16 %v283
      %v375 = vunpack.c.h.b16 %v283
      %v376 = vunpack.c.l.b16 %v284
      %v377 = vunpack.c.h.b16 %v284
      %v378 = vunpack.c.l.b16 %v285
      %v379 = vunpack.c.h.b16 %v285
      %v380 = vunpack.c.l.b16 %v286
      %v381 = vunpack.c.h.b16 %v286
      %v382 = vunpack.c.l.b16 %v287
      %v383 = vunpack.c.h.b16 %v287
      %v384 = vunpack.c.l.b16 %v288
      %v385 = vunpack.c.h.b16 %v288
      %v386 = vunpack.c.l.b16 %v289
      %v387 = vunpack.c.h.b16 %v289
      %v388 = vunpack.c.l.b16 %v290
      %v389 = vunpack.c.h.b16 %v290
      %v390 = vunpack.c.l.b16 %v291
      %v391 = vunpack.c.h.b16 %v291
      %v392 = vunpack.c.l.b16 %v292
      %v393 = vunpack.c.h.b16 %v292
      %v394 = vunpack.c.l.b16 %v293
      %v395 = vunpack.c.h.b16 %v293
      %v396 = vunpack.c.l.b16 %v294
      %v397 = vunpack.c.h.b16 %v294
      %v398 = vpack.c.b16 %v338, %v334
      %v399 = vpack.c.b16 %v339, %v335
      %v400 = vpack.c.b16 %v340, %v336
      %v401 = vpack.c.b16 %v341, %v337
      %v402 = vpack.c.b16 %v346, %v342
      %v403 = vpack.c.b16 %v347, %v343
      %v404 = vpack.c.b16 %v348, %v344
      %v405 = vpack.c.b16 %v349, %v345
      %v406 = vpack.c.b16 %v354, %v350
      %v407 = vpack.c.b16 %v355, %v351
      %v408 = vpack.c.b16 %v356, %v352
      %v409 = vpack.c.b16 %v357, %v353
      %v410 = vpack.c.b16 %v362, %v358
      %v411 = vpack.c.b16 %v363, %v359
      %v412 = vpack.c.b16 %v364, %v360
      %v413 = vpack.c.b16 %v365, %v361
      %v414 = vpack.c.b16 %v370, %v366
      %v415 = vpack.c.b16 %v371, %v367
      %v416 = vpack.c.b16 %v372, %v368
      %v417 = vpack.c.b16 %v373, %v369
      %v418 = vpack.c.b16 %v378, %v374
      %v419 = vpack.c.b16 %v379, %v375
      %v420 = vpack.c.b16 %v380, %v376
      %v421 = vpack.c.b16 %v381, %v377
      %v422 = vpack.c.b16 %v386, %v382
      %v423 = vpack.c.b16 %v387, %v383
      %v424 = vpack.c.b16 %v388, %v384
      %v425 = vpack.c.b16 %v389, %v385
      %v426 = vpack.c.b16 %v394, %v390
      %v427 = vpack.c.b16 %v395, %v391
      %v428 = vpack.c.b16 %v396, %v392
      %v429 = vpack.c.b16 %v397, %v393
      %462 = vmatprep.subr.bf16.mxu0 %v399
      %463 = vmatpush1.bf16.msra.mxu0 %v398
      %464 = vmatprep.subr.bf16.mxu0 %v403
      %465 = vmatpush1.bf16.msra.mxu0 %v402
      %466 = vmatprep.subr.bf16.mxu0 %v407
      %467 = vmatpush1.bf16.msra.mxu0 %v406
      %468 = vmatprep.subr.bf16.mxu0 %v411
      %469 = vmatpush1.bf16.msra.mxu0 %v410
      %470 = vmatprep.subr.bf16.mxu0 %v415
      %471 = vmatpush1.bf16.msra.mxu0 %v414
      %472 = vmatprep.subr.bf16.mxu0 %v419
      %473 = vmatpush1.bf16.msra.mxu0 %v418
      %474 = vmatprep.subr.bf16.mxu0 %v423
      %475 = vmatpush1.bf16.msra.mxu0 %v422
      %476 = vmatprep.subr.bf16.mxu0 %v427
      %477 = vmatpush1.bf16.msra.mxu0 %v426
      %478 = vmatprep.subr.bf16.mxu0 0
      %479 = vmatpush1.bf16.msra.mxu0 0
      %480 = vmatprep.subr.bf16.mxu0 0
      %481 = vmatpush1.bf16.msra.mxu0 0
      %482 = vmatprep.subr.bf16.mxu0 0
      %483 = vmatpush1.bf16.msra.mxu0 0
      %484 = vmatprep.subr.bf16.mxu0 0
      %485 = vmatpush1.bf16.msra.mxu0 0
      %486 = vmatprep.subr.bf16.mxu0 0
      %487 = vmatpush1.bf16.msra.mxu0 0
      %488 = vmatprep.subr.bf16.mxu0 0
      %489 = vmatpush1.bf16.msra.mxu0 0
      %490 = vmatprep.subr.bf16.mxu0 0
      %491 = vmatpush1.bf16.msra.mxu0 0
      %492 = vmatprep.subr.bf16.mxu0 0
      %493 = vmatpush1.bf16.msra.mxu0 0
      %494 = vmatprep.mubr.bf16.mxu0 0
      %495 = vmatmul.mubr.bf16.gmra.mrb[0].mxu0 %v301
      %v496 = vpop.f32.mrb[0].mxu0
      %v497 = vadd.f32 0.0, %v496
      %v498 = vpop.f32.mrb[0].mxu0
      %v499 = vadd.f32 0.0, %v498
      %v500 = vpop.f32.mrb[0].mxu0
      %v501 = vpop.f32.mrb[0].mxu0
      %502 = vdwg.mxu0
      %503 = vmatprep.subr.bf16.mxu0 %v401
      %504 = vmatpush1.bf16.msra.mxu0 %v400
      %505 = vmatprep.subr.bf16.mxu0 %v405
      %506 = vmatpush1.bf16.msra.mxu0 %v404
      %507 = vmatprep.subr.bf16.mxu0 %v409
      %508 = vmatpush1.bf16.msra.mxu0 %v408
      %509 = vmatprep.subr.bf16.mxu0 %v413
      %510 = vmatpush1.bf16.msra.mxu0 %v412
      %511 = vmatprep.subr.bf16.mxu0 %v417
      %512 = vmatpush1.bf16.msra.mxu0 %v416
      %513 = vmatprep.subr.bf16.mxu0 %v421
      %514 = vmatpush1.bf16.msra.mxu0 %v420
      %515 = vmatprep.subr.bf16.mxu0 %v425
      %516 = vmatpush1.bf16.msra.mxu0 %v424
      %517 = vmatprep.subr.bf16.mxu0 %v429
      %518 = vmatpush1.bf16.msra.mxu0 %v428
      %519 = vmatprep.subr.bf16.mxu0 0
      %520 = vmatpush1.bf16.msra.mxu0 0
      %521 = vmatprep.subr.bf16.mxu0 0
      %522 = vmatpush1.bf16.msra.mxu0 0
      %523 = vmatprep.subr.bf16.mxu0 0
      %524 = vmatpush1.bf16.msra.mxu0 0
      %525 = vmatprep.subr.bf16.mxu0 0
      %526 = vmatpush1.bf16.msra.mxu0 0
      %527 = vmatprep.subr.bf16.mxu0 0
      %528 = vmatpush1.bf16.msra.mxu0 0
      %529 = vmatprep.subr.bf16.mxu0 0
      %530 = vmatpush1.bf16.msra.mxu0 0
      %531 = vmatprep.subr.bf16.mxu0 0
      %532 = vmatpush1.bf16.msra.mxu0 0
      %533 = vmatprep.subr.bf16.mxu0 0
      %534 = vmatpush1.bf16.msra.mxu0 0
      %535 = vmatprep.mubr.bf16.mxu0 0
      %536 = vmatmul.mubr.bf16.gmra.mrb[0].mxu0 %v301
      %v537 = vpop.f32.mrb[0].mxu0
      %v538 = vadd.f32 0.0, %v537
      %v539 = vpop.f32.mrb[0].mxu0
      %v540 = vadd.f32 0.0, %v539
      %v541 = vpop.f32.mrb[0].mxu0
      %v542 = vpop.f32.mrb[0].mxu0
      %543 = vdwg.mxu0
      %v544 = vadd.f32 %v297, %v497
      %v545 = vadd.f32 %v298, %v499
      %v546 = vadd.f32 %v299, %v538
      %v547 = vadd.f32 %v300, %v540
      %v548 = vxor.u32 %v544, 2147483648
      %v549 = vxor.u32 %v545, 2147483648
      %v550 = vxor.u32 %v546, 2147483648
      %v551 = vmul.f32 %v548, 1.442695
      %v552 = vpow.pop %v551
      %v553 = vmul.f32 %v549, 1.442695
      %v554 = vpow.pop %v553
      %v555 = vmul.f32 %v550, 1.442695
      %v556 = vpow.pop %v555
      %v557 = vadd.f32 %v552, 1.0
      %v558 = vadd.f32 %v554, 1.0
      %v559 = vadd.f32 %v556, 1.0
      %v560 = vrcp.pop %v557
      %v561 = vmul.f32 1.0, %v560
      %v562 = vrcp.pop %v558
      %v563 = vmul.f32 1.0, %v562
      %v564 = vrcp.pop %v559
      %v565 = vmul.f32 1.0, %v564
      %v566 = vtanh.pop %v547
      %v567 = vld [vmem:[#allocation3] sm:$0xff]
      %v568 = vmul.f32 %v563, %v567
      %v569 = vmul.f32 %v561, %v566
      %v570 = vadd.f32 %v568, %v569
      %v571 = vtanh.pop %v570
      %v572 = vmul.f32 %v565, %v571
      %573 = vst [vmem:[#allocation3] sm:$0xff] %v570
      %v574 = vpack.c.bf16 %v572, %v572
      %575 = vst [vmem:[#allocation2] sm:$0xf] %v574
      %576 = vst [vmem:[%s251] sm:$0xf] %v574
      %s577 = scalar_lea.vmem %s245, 16
      %v578 = vld [vmem:[%s577] sm:$0xff]
      %v579 = vld [vmem:[%s577 + $0x8] sm:$0xff]
      %v580 = vunpack.c.l.bf16 %v578
      %v581 = vunpack.c.h.bf16 %v578
      %v582 = vunpack.c.l.bf16 %v579
      %v583 = vunpack.c.h.bf16 %v579
      %v584 = vld [vmem:[#allocation2] sm:$0xf]
      %585 = vmatprep.subr.bf16.mxu0 %v399
      %586 = vmatpush1.bf16.msra.mxu0 %v398
      %587 = vmatprep.subr.bf16.mxu0 %v403
      %588 = vmatpush1.bf16.msra.mxu0 %v402
      %589 = vmatprep.subr.bf16.mxu0 %v407
      %590 = vmatpush1.bf16.msra.mxu0 %v406
      %591 = vmatprep.subr.bf16.mxu0 %v411
      %592 = vmatpush1.bf16.msra.mxu0 %v410
      %593 = vmatprep.subr.bf16.mxu0 %v415
      %594 = vmatpush1.bf16.msra.mxu0 %v414
      %595 = vmatprep.subr.bf16.mxu0 %v419
      %596 = vmatpush1.bf16.msra.mxu0 %v418
      %597 = vmatprep.subr.bf16.mxu0 %v423
      %598 = vmatpush1.bf16.msra.mxu0 %v422
      %599 = vmatprep.subr.bf16.mxu0 %v427
      %600 = vmatpush1.bf16.msra.mxu0 %v426
      %601 = vmatprep.subr.bf16.mxu0 0
      %602 = vmatpush1.bf16.msra.mxu0 0
      %603 = vmatprep.subr.bf16.mxu0 0
      %604 = vmatpush1.bf16.msra.mxu0 0
      %605 = vmatprep.subr.bf16.mxu0 0
      %606 = vmatpush1.bf16.msra.mxu0 0
      %607 = vmatprep.subr.bf16.mxu0 0
      %608 = vmatpush1.bf16.msra.mxu0 0
      %609 = vmatprep.subr.bf16.mxu0 0
      %610 = vmatpush1.bf16.msra.mxu0 0
      %611 = vmatprep.subr.bf16.mxu0 0
      %612 = vmatpush1.bf16.msra.mxu0 0
      %613 = vmatprep.subr.bf16.mxu0 0
      %614 = vmatpush1.bf16.msra.mxu0 0
      %615 = vmatprep.subr.bf16.mxu0 0
      %616 = vmatpush1.bf16.msra.mxu0 0
      %617 = vmatprep.mubr.bf16.mxu0 0
      %618 = vmatmul.mubr.bf16.gmra.mrb[0].mxu0 %v584
      %v619 = vpop.f32.mrb[0].mxu0
      %v620 = vadd.f32 0.0, %v619
      %v621 = vpop.f32.mrb[0].mxu0
      %v622 = vadd.f32 0.0, %v621
      %v623 = vpop.f32.mrb[0].mxu0
      %v624 = vpop.f32.mrb[0].mxu0
      %625 = vdwg.mxu0
      %626 = vmatprep.subr.bf16.mxu0 %v401
      %627 = vmatpush1.bf16.msra.mxu0 %v400
      %628 = vmatprep.subr.bf16.mxu0 %v405
      %629 = vmatpush1.bf16.msra.mxu0 %v404
      %630 = vmatprep.subr.bf16.mxu0 %v409
      %631 = vmatpush1.bf16.msra.mxu0 %v408
      %632 = vmatprep.subr.bf16.mxu0 %v413
      %633 = vmatpush1.bf16.msra.mxu0 %v412
      %634 = vmatprep.subr.bf16.mxu0 %v417
      %635 = vmatpush1.bf16.msra.mxu0 %v416
      %636 = vmatprep.subr.bf16.mxu0 %v421
      %637 = vmatpush1.bf16.msra.mxu0 %v420
      %638 = vmatprep.subr.bf16.mxu0 %v425
      %639 = vmatpush1.bf16.msra.mxu0 %v424
      %640 = vmatprep.subr.bf16.mxu0 %v429
      %641 = vmatpush1.bf16.msra.mxu0 %v428
      %642 = vmatprep.subr.bf16.mxu0 0
      %643 = vmatpush1.bf16.msra.mxu0 0
      %644 = vmatprep.subr.bf16.mxu0 0
      %645 = vmatpush1.bf16.msra.mxu0 0
      %646 = vmatprep.subr.bf16.mxu0 0
      %647 = vmatpush1.bf16.msra.mxu0 0
      %648 = vmatprep.subr.bf16.mxu0 0
      %649 = vmatpush1.bf16.msra.mxu0 0
      %650 = vmatprep.subr.bf16.mxu0 0
      %651 = vmatpush1.bf16.msra.mxu0 0
      %652 = vmatprep.subr.bf16.mxu0 0
      %653 = vmatpush1.bf16.msra.mxu0 0
      %654 = vmatprep.subr.bf16.mxu0 0
      %655 = vmatpush1.bf16.msra.mxu0 0
      %656 = vmatprep.subr.bf16.mxu0 0
      %657 = vmatpush1.bf16.msra.mxu0 0
      %658 = vmatprep.mubr.bf16.mxu0 0
      %659 = vmatmul.mubr.bf16.gmra.mrb[0].mxu0 %v584
      %v660 = vpop.f32.mrb[0].mxu0
      %v661 = vadd.f32 0.0, %v660
      %v662 = vpop.f32.mrb[0].mxu0
      %v663 = vadd.f32 0.0, %v662
      %v664 = vpop.f32.mrb[0].mxu0
      %v665 = vpop.f32.mrb[0].mxu0
      %666 = vdwg.mxu0
      %v667 = vadd.f32 %v580, %v620
      %v668 = vadd.f32 %v581, %v622
      %v669 = vadd.f32 %v582, %v661
      %v670 = vadd.f32 %v583, %v663
      %v671 = vxor.u32 %v667, 2147483648
      %v672 = vxor.u32 %v668, 2147483648
      %v673 = vxor.u32 %v669, 2147483648
      %v674 = vmul.f32 %v671, 1.442695
      %v675 = vpow.pop %v674
      %v676 = vmul.f32 %v672, 1.442695
      %v677 = vpow.pop %v676
      %v678 = vmul.f32 %v673, 1.442695
      %v679 = vpow.pop %v678
      %v680 = vadd.f32 %v675, 1.0
      %v681 = vadd.f32 %v677, 1.0
      %v682 = vadd.f32 %v679, 1.0
      %v683 = vrcp.pop %v680
      %v684 = vmul.f32 1.0, %v683
      %v685 = vrcp.pop %v681
      %v686 = vmul.f32 1.0, %v685
      %v687 = vrcp.pop %v682
      %v688 = vmul.f32 1.0, %v687
      %v689 = vtanh.pop %v670
      %v690 = vld [vmem:[#allocation3] sm:$0xff]
      %v691 = vmul.f32 %v686, %v690
      %v692 = vmul.f32 %v684, %v689
      %v693 = vadd.f32 %v691, %v692
      %v694 = vtanh.pop %v693
      %v695 = vmul.f32 %v688, %v694
      %696 = vst [vmem:[#allocation3] sm:$0xff] %v693
      %v697 = vpack.c.bf16 %v695, %v695
      %698 = vst [vmem:[#allocation2] sm:$0xf] %v697
      %s699 = scalar_lea.vmem %s251, 4
      %700 = vst [vmem:[%s699] sm:$0xf] %v697
      %s701 = scalar_lea.vmem %s245, 32
      %v702 = vld [vmem:[%s701] sm:$0xff]
      %v703 = vld [vmem:[%s701 + $0x8] sm:$0xff]
      %v704 = vunpack.c.l.bf16 %v702
      %v705 = vunpack.c.h.bf16 %v702
      %v706 = vunpack.c.l.bf16 %v703
      %v707 = vunpack.c.h.bf16 %v703
      %v708 = vld [vmem:[#allocation2] sm:$0xf]
      %709 = vmatprep.subr.bf16.mxu0 %v399
      %710 = vmatpush1.bf16.msra.mxu0 %v398
      %711 = vmatprep.subr.bf16.mxu0 %v403
      %712 = vmatpush1.bf16.msra.mxu0 %v402
      %713 = vmatprep.subr.bf16.mxu0 %v407
      %714 = vmatpush1.bf16.msra.mxu0 %v406
      %715 = vmatprep.subr.bf16.mxu0 %v411
      %716 = vmatpush1.bf16.msra.mxu0 %v410
      %717 = vmatprep.subr.bf16.mxu0 %v415
      %718 = vmatpush1.bf16.msra.mxu0 %v414
      %719 = vmatprep.subr.bf16.mxu0 %v419
      %720 = vmatpush1.bf16.msra.mxu0 %v418
      %721 = vmatprep.subr.bf16.mxu0 %v423
      %722 = vmatpush1.bf16.msra.mxu0 %v422
      %723 = vmatprep.subr.bf16.mxu0 %v427
      %724 = vmatpush1.bf16.msra.mxu0 %v426
      %725 = vmatprep.subr.bf16.mxu0 0
      %726 = vmatpush1.bf16.msra.mxu0 0
      %727 = vmatprep.subr.bf16.mxu0 0
      %728 = vmatpush1.bf16.msra.mxu0 0
      %729 = vmatprep.subr.bf16.mxu0 0
      %730 = vmatpush1.bf16.msra.mxu0 0
      %731 = vmatprep.subr.bf16.mxu0 0
      %732 = vmatpush1.bf16.msra.mxu0 0
      %733 = vmatprep.subr.bf16.mxu0 0
      %734 = vmatpush1.bf16.msra.mxu0 0
      %735 = vmatprep.subr.bf16.mxu0 0
      %736 = vmatpush1.bf16.msra.mxu0 0
      %737 = vmatprep.subr.bf16.mxu0 0
      %738 = vmatpush1.bf16.msra.mxu0 0
      %739 = vmatprep.subr.bf16.mxu0 0
      %740 = vmatpush1.bf16.msra.mxu0 0
      %741 = vmatprep.mubr.bf16.mxu0 0
      %742 = vmatmul.mubr.bf16.gmra.mrb[0].mxu0 %v708
      %v743 = vpop.f32.mrb[0].mxu0
      %v744 = vadd.f32 0.0, %v743
      %v745 = vpop.f32.mrb[0].mxu0
      %v746 = vadd.f32 0.0, %v745
      %v747 = vpop.f32.mrb[0].mxu0
      %v748 = vpop.f32.mrb[0].mxu0
      %749 = vdwg.mxu0
      %750 = vmatprep.subr.bf16.mxu0 %v401
      %751 = vmatpush1.bf16.msra.mxu0 %v400
      %752 = vmatprep.subr.bf16.mxu0 %v405
      %753 = vmatpush1.bf16.msra.mxu0 %v404
      %754 = vmatprep.subr.bf16.mxu0 %v409
      %755 = vmatpush1.bf16.msra.mxu0 %v408
      %756 = vmatprep.subr.bf16.mxu0 %v413
      %757 = vmatpush1.bf16.msra.mxu0 %v412
      %758 = vmatprep.subr.bf16.mxu0 %v417
      %759 = vmatpush1.bf16.msra.mxu0 %v416
      %760 = vmatprep.subr.bf16.mxu0 %v421
      %761 = vmatpush1.bf16.msra.mxu0 %v420
      %762 = vmatprep.subr.bf16.mxu0 %v425
      %763 = vmatpush1.bf16.msra.mxu0 %v424
      %764 = vmatprep.subr.bf16.mxu0 %v429
      %765 = vmatpush1.bf16.msra.mxu0 %v428
      %766 = vmatprep.subr.bf16.mxu0 0
      %767 = vmatpush1.bf16.msra.mxu0 0
      %768 = vmatprep.subr.bf16.mxu0 0
      %769 = vmatpush1.bf16.msra.mxu0 0
      %770 = vmatprep.subr.bf16.mxu0 0
      %771 = vmatpush1.bf16.msra.mxu0 0
      %772 = vmatprep.subr.bf16.mxu0 0
      %773 = vmatpush1.bf16.msra.mxu0 0
      %774 = vmatprep.subr.bf16.mxu0 0
      %775 = vmatpush1.bf16.msra.mxu0 0
      %776 = vmatprep.subr.bf16.mxu0 0
      %777 = vmatpush1.bf16.msra.mxu0 0
      %778 = vmatprep.subr.bf16.mxu0 0
      %779 = vmatpush1.bf16.msra.mxu0 0
      %780 = vmatprep.subr.bf16.mxu0 0
      %781 = vmatpush1.bf16.msra.mxu0 0
      %782 = vmatprep.mubr.bf16.mxu0 0
      %783 = vmatmul.mubr.bf16.gmra.mrb[0].mxu0 %v708
      %v784 = vpop.f32.mrb[0].mxu0
      %v785 = vadd.f32 0.0, %v784
      %v786 = vpop.f32.mrb[0].mxu0
      %v787 = vadd.f32 0.0, %v786
      %v788 = vpop.f32.mrb[0].mxu0
      %v789 = vpop.f32.mrb[0].mxu0
      %790 = vdwg.mxu0
      %v791 = vadd.f32 %v704, %v744
      %v792 = vadd.f32 %v705, %v746
      %v793 = vadd.f32 %v706, %v785
      %v794 = vadd.f32 %v707, %v787
      %v795 = vxor.u32 %v791, 2147483648
      %v796 = vxor.u32 %v792, 2147483648
      %v797 = vxor.u32 %v793, 2147483648
      %v798 = vmul.f32 %v795, 1.442695
      %v799 = vpow.pop %v798
      %v800 = vmul.f32 %v796, 1.442695
      %v801 = vpow.pop %v800
      %v802 = vmul.f32 %v797, 1.442695
      %v803 = vpow.pop %v802
      %v804 = vadd.f32 %v799, 1.0
      %v805 = vadd.f32 %v801, 1.0
      %v806 = vadd.f32 %v803, 1.0
      %v807 = vrcp.pop %v804
      %v808 = vmul.f32 1.0, %v807
      %v809 = vrcp.pop %v805
      %v810 = vmul.f32 1.0, %v809
      %v811 = vrcp.pop %v806
      %v812 = vmul.f32 1.0, %v811
      %v813 = vtanh.pop %v794
      %v814 = vld [vmem:[#allocation3] sm:$0xff]
      %v815 = vmul.f32 %v810, %v814
      %v816 = vmul.f32 %v808, %v813
      %v817 = vadd.f32 %v815, %v816
      %v818 = vtanh.pop %v817
      %v819 = vmul.f32 %v812, %v818
      %820 = vst [vmem:[#allocation3] sm:$0xff] %v817
      %v821 = vpack.c.bf16 %v819, %v819
      %822 = vst [vmem:[#allocation2] sm:$0xf] %v821
      %s823 = scalar_lea.vmem %s251, 8
      %824 = vst [vmem:[%s823] sm:$0xf] %v821
      %s825 = scalar_lea.vmem %s245, 48
      %v826 = vld [vmem:[%s825] sm:$0xff]
      %v827 = vld [vmem:[%s825 + $0x8] sm:$0xff]
      %v828 = vunpack.c.l.bf16 %v826
      %v829 = vunpack.c.h.bf16 %v826
      %v830 = vunpack.c.l.bf16 %v827
      %v831 = vunpack.c.h.bf16 %v827
      %v832 = vld [vmem:[#allocation2] sm:$0xf]
      %833 = vmatprep.subr.bf16.mxu0 %v399
      %834 = vmatpush1.bf16.msra.mxu0 %v398
      %835 = vmatprep.subr.bf16.mxu0 %v403
      %836 = vmatpush1.bf16.msra.mxu0 %v402
      %837 = vmatprep.subr.bf16.mxu0 %v407
      %838 = vmatpush1.bf16.msra.mxu0 %v406
      %839 = vmatprep.subr.bf16.mxu0 %v411
      %840 = vmatpush1.bf16.msra.mxu0 %v410
      %841 = vmatprep.subr.bf16.mxu0 %v415
      %842 = vmatpush1.bf16.msra.mxu0 %v414
      %843 = vmatprep.subr.bf16.mxu0 %v419
      %844 = vmatpush1.bf16.msra.mxu0 %v418
      %845 = vmatprep.subr.bf16.mxu0 %v423
      %846 = vmatpush1.bf16.msra.mxu0 %v422
      %847 = vmatprep.subr.bf16.mxu0 %v427
      %848 = vmatpush1.bf16.msra.mxu0 %v426
      %849 = vmatprep.subr.bf16.mxu0 0
      %850 = vmatpush1.bf16.msra.mxu0 0
      %851 = vmatprep.subr.bf16.mxu0 0
      %852 = vmatpush1.bf16.msra.mxu0 0
      %853 = vmatprep.subr.bf16.mxu0 0
      %854 = vmatpush1.bf16.msra.mxu0 0
      %855 = vmatprep.subr.bf16.mxu0 0
      %856 = vmatpush1.bf16.msra.mxu0 0
      %857 = vmatprep.subr.bf16.mxu0 0
      %858 = vmatpush1.bf16.msra.mxu0 0
      %859 = vmatprep.subr.bf16.mxu0 0
      %860 = vmatpush1.bf16.msra.mxu0 0
      %861 = vmatprep.subr.bf16.mxu0 0
      %862 = vmatpush1.bf16.msra.mxu0 0
      %863 = vmatprep.subr.bf16.mxu0 0
      %864 = vmatpush1.bf16.msra.mxu0 0
      %865 = vmatprep.mubr.bf16.mxu0 0
      %866 = vmatmul.mubr.bf16.gmra.mrb[0].mxu0 %v832
      %v867 = vpop.f32.mrb[0].mxu0
      %v868 = vadd.f32 0.0, %v867
      %v869 = vpop.f32.mrb[0].mxu0
      %v870 = vadd.f32 0.0, %v869
      %v871 = vpop.f32.mrb[0].mxu0
      %v872 = vpop.f32.mrb[0].mxu0
      %873 = vdwg.mxu0
      %874 = vmatprep.subr.bf16.mxu0 %v401
      %875 = vmatpush1.bf16.msra.mxu0 %v400
      %876 = vmatprep.subr.bf16.mxu0 %v405
      %877 = vmatpush1.bf16.msra.mxu0 %v404
      %878 = vmatprep.subr.bf16.mxu0 %v409
      %879 = vmatpush1.bf16.msra.mxu0 %v408
      %880 = vmatprep.subr.bf16.mxu0 %v413
      %881 = vmatpush1.bf16.msra.mxu0 %v412
      %882 = vmatprep.subr.bf16.mxu0 %v417
      %883 = vmatpush1.bf16.msra.mxu0 %v416
      %884 = vmatprep.subr.bf16.mxu0 %v421
      %885 = vmatpush1.bf16.msra.mxu0 %v420
      %886 = vmatprep.subr.bf16.mxu0 %v425
      %887 = vmatpush1.bf16.msra.mxu0 %v424
      %888 = vmatprep.subr.bf16.mxu0 %v429
      %889 = vmatpush1.bf16.msra.mxu0 %v428
      %890 = vmatprep.subr.bf16.mxu0 0
      %891 = vmatpush1.bf16.msra.mxu0 0
      %892 = vmatprep.subr.bf16.mxu0 0
      %893 = vmatpush1.bf16.msra.mxu0 0
      %894 = vmatprep.subr.bf16.mxu0 0
      %895 = vmatpush1.bf16.msra.mxu0 0
      %896 = vmatprep.subr.bf16.mxu0 0
      %897 = vmatpush1.bf16.msra.mxu0 0
      %898 = vmatprep.subr.bf16.mxu0 0
      %899 = vmatpush1.bf16.msra.mxu0 0
      %900 = vmatprep.subr.bf16.mxu0 0
      %901 = vmatpush1.bf16.msra.mxu0 0
      %902 = vmatprep.subr.bf16.mxu0 0
      %903 = vmatpush1.bf16.msra.mxu0 0
      %904 = vmatprep.subr.bf16.mxu0 0
      %905 = vmatpush1.bf16.msra.mxu0 0
      %906 = vmatprep.mubr.bf16.mxu0 0
      %907 = vmatmul.mubr.bf16.gmra.mrb[0].mxu0 %v832
      %v908 = vpop.f32.mrb[0].mxu0
      %v909 = vadd.f32 0.0, %v908
      %v910 = vpop.f32.mrb[0].mxu0
      %v911 = vadd.f32 0.0, %v910
      %v912 = vpop.f32.mrb[0].mxu0
      %v913 = vpop.f32.mrb[0].mxu0
      %914 = vdwg.mxu0
      %v915 = vadd.f32 %v828, %v868
      %v916 = vadd.f32 %v829, %v870
      %v917 = vadd.f32 %v830, %v909
      %v918 = vadd.f32 %v831, %v911
      %v919 = vxor.u32 %v915, 2147483648
      %v920 = vxor.u32 %v916, 2147483648
      %v921 = vxor.u32 %v917, 2147483648
      %v922 = vmul.f32 %v919, 1.442695
      %v923 = vpow.pop %v922
      %v924 = vmul.f32 %v920, 1.442695
      %v925 = vpow.pop %v924
      %v926 = vmul.f32 %v921, 1.442695
      %v927 = vpow.pop %v926
      %v928 = vadd.f32 %v923, 1.0
      %v929 = vadd.f32 %v925, 1.0
      %v930 = vadd.f32 %v927, 1.0
      %v931 = vrcp.pop %v928
      %v932 = vmul.f32 1.0, %v931
      %v933 = vrcp.pop %v929
      %v934 = vmul.f32 1.0, %v933
      %v935 = vrcp.pop %v930
      %v936 = vmul.f32 1.0, %v935
      %v937 = vtanh.pop %v918
      %v938 = vld [vmem:[#allocation3] sm:$0xff]
      %v939 = vmul.f32 %v934, %v938
      %v940 = vmul.f32 %v932, %v937
      %v941 = vadd.f32 %v939, %v940
      %v942 = vtanh.pop %v941
      %v943 = vmul.f32 %v936, %v942
      %944 = vst [vmem:[#allocation3] sm:$0xff] %v941
      %v945 = vpack.c.bf16 %v943, %v943
      %946 = vst [vmem:[#allocation2] sm:$0xf] %v945
      %s947 = scalar_lea.vmem %s251, 12
      %948 = vst [vmem:[%s947] sm:$0xf] %v945
      %s949 = scalar_lea.vmem %s245, 64
      %v950 = vld [vmem:[%s949] sm:$0xff]
      %v951 = vld [vmem:[%s949 + $0x8] sm:$0xff]
      %v952 = vunpack.c.l.bf16 %v950
      %v953 = vunpack.c.h.bf16 %v950
      %v954 = vunpack.c.l.bf16 %v951
      %v955 = vunpack.c.h.bf16 %v951
      %v956 = vld [vmem:[#allocation2] sm:$0xf]
      %957 = vmatprep.subr.bf16.mxu0 %v399
      %958 = vmatpush1.bf16.msra.mxu0 %v398
      %959 = vmatprep.subr.bf16.mxu0 %v403
      %960 = vmatpush1.bf16.msra.mxu0 %v402
      %961 = vmatprep.subr.bf16.mxu0 %v407
      %962 = vmatpush1.bf16.msra.mxu0 %v406
      %963 = vmatprep.subr.bf16.mxu0 %v411
      %964 = vmatpush1.bf16.msra.mxu0 %v410
      %965 = vmatprep.subr.bf16.mxu0 %v415
      %966 = vmatpush1.bf16.msra.mxu0 %v414
      %967 = vmatprep.subr.bf16.mxu0 %v419
      %968 = vmatpush1.bf16.msra.mxu0 %v418
      %969 = vmatprep.subr.bf16.mxu0 %v423
      %970 = vmatpush1.bf16.msra.mxu0 %v422
      %971 = vmatprep.subr.bf16.mxu0 %v427
      %972 = vmatpush1.bf16.msra.mxu0 %v426
      %973 = vmatprep.subr.bf16.mxu0 0
      %974 = vmatpush1.bf16.msra.mxu0 0
      %975 = vmatprep.subr.bf16.mxu0 0
      %976 = vmatpush1.bf16.msra.mxu0 0
      %977 = vmatprep.subr.bf16.mxu0 0
      %978 = vmatpush1.bf16.msra.mxu0 0
      %979 = vmatprep.subr.bf16.mxu0 0
      %980 = vmatpush1.bf16.msra.mxu0 0
      %981 = vmatprep.subr.bf16.mxu0 0
      %982 = vmatpush1.bf16.msra.mxu0 0
      %983 = vmatprep.subr.bf16.mxu0 0
      %984 = vmatpush1.bf16.msra.mxu0 0
      %985 = vmatprep.subr.bf16.mxu0 0
      %986 = vmatpush1.bf16.msra.mxu0 0
      %987 = vmatprep.subr.bf16.mxu0 0
      %988 = vmatpush1.bf16.msra.mxu0 0
      %989 = vmatprep.mubr.bf16.mxu0 0
      %990 = vmatmul.mubr.bf16.gmra.mrb[0].mxu0 %v956
      %v991 = vpop.f32.mrb[0].mxu0
      %v992 = vadd.f32 0.0, %v991
      %v993 = vpop.f32.mrb[0].mxu0
      %v994 = vadd.f32 0.0, %v993
      %v995 = vpop.f32.mrb[0].mxu0
      %v996 = vpop.f32.mrb[0].mxu0
      %997 = vdwg.mxu0
      %998 = vmatprep.subr.bf16.mxu0 %v401
      %999 = vmatpush1.bf16.msra.mxu0 %v400
      %1000 = vmatprep.subr.bf16.mxu0 %v405
      %1001 = vmatpush1.bf16.msra.mxu0 %v404
      %1002 = vmatprep.subr.bf16.mxu0 %v409
      %1003 = vmatpush1.bf16.msra.mxu0 %v408
      %1004 = vmatprep.subr.bf16.mxu0 %v413
      %1005 = vmatpush1.bf16.msra.mxu0 %v412
      %1006 = vmatprep.subr.bf16.mxu0 %v417
      %1007 = vmatpush1.bf16.msra.mxu0 %v416
      %1008 = vmatprep.subr.bf16.mxu0 %v421
      %1009 = vmatpush1.bf16.msra.mxu0 %v420
      %1010 = vmatprep.subr.bf16.mxu0 %v425
      %1011 = vmatpush1.bf16.msra.mxu0 %v424
      %1012 = vmatprep.subr.bf16.mxu0 %v429
      %1013 = vmatpush1.bf16.msra.mxu0 %v428
      %1014 = vmatprep.subr.bf16.mxu0 0
      %1015 = vmatpush1.bf16.msra.mxu0 0
      %1016 = vmatprep.subr.bf16.mxu0 0
      %1017 = vmatpush1.bf16.msra.mxu0 0
      %1018 = vmatprep.subr.bf16.mxu0 0
      %1019 = vmatpush1.bf16.msra.mxu0 0
      %1020 = vmatprep.subr.bf16.mxu0 0
      %1021 = vmatpush1.bf16.msra.mxu0 0
      %1022 = vmatprep.subr.bf16.mxu0 0
      %1023 = vmatpush1.bf16.msra.mxu0 0
      %1024 = vmatprep.subr.bf16.mxu0 0
      %1025 = vmatpush1.bf16.msra.mxu0 0
      %1026 = vmatprep.subr.bf16.mxu0 0
      %1027 = vmatpush1.bf16.msra.mxu0 0
      %1028 = vmatprep.subr.bf16.mxu0 0
      %1029 = vmatpush1.bf16.msra.mxu0 0
      %1030 = vmatprep.mubr.bf16.mxu0 0
      %1031 = vmatmul.mubr.bf16.gmra.mrb[0].mxu0 %v956
      %v1032 = vpop.f32.mrb[0].mxu0
      %v1033 = vadd.f32 0.0, %v1032
      %v1034 = vpop.f32.mrb[0].mxu0
      %v1035 = vadd.f32 0.0, %v1034
      %v1036 = vpop.f32.mrb[0].mxu0
      %v1037 = vpop.f32.mrb[0].mxu0
      %1038 = vdwg.mxu0
      %v1039 = vadd.f32 %v952, %v992
      %v1040 = vadd.f32 %v953, %v994
      %v1041 = vadd.f32 %v954, %v1033
      %v1042 = vadd.f32 %v955, %v1035
      %v1043 = vxor.u32 %v1039, 2147483648
      %v1044 = vxor.u32 %v1040, 2147483648
      %v1045 = vxor.u32 %v1041, 2147483648
      %v1046 = vmul.f32 %v1043, 1.442695
      %v1047 = vpow.pop %v1046
      %v1048 = vmul.f32 %v1044, 1.442695
      %v1049 = vpow.pop %v1048
      %v1050 = vmul.f32 %v1045, 1.442695
      %v1051 = vpow.pop %v1050
      %v1052 = vadd.f32 %v1047, 1.0
      %v1053 = vadd.f32 %v1049, 1.0
      %v1054 = vadd.f32 %v1051, 1.0
      %v1055 = vrcp.pop %v1052
      %v1056 = vmul.f32 1.0, %v1055
      %v1057 = vrcp.pop %v1053
      %v1058 = vmul.f32 1.0, %v1057
      %v1059 = vrcp.pop %v1054
      %v1060 = vmul.f32 1.0, %v1059
      %v1061 = vtanh.pop %v1042
      %v1062 = vld [vmem:[#allocation3] sm:$0xff]
      %v1063 = vmul.f32 %v1058, %v1062
      %v1064 = vmul.f32 %v1056, %v1061
      %v1065 = vadd.f32 %v1063, %v1064
      %v1066 = vtanh.pop %v1065
      %v1067 = vmul.f32 %v1060, %v1066
      %1068 = vst [vmem:[#allocation3] sm:$0xff] %v1065
      %v1069 = vpack.c.bf16 %v1067, %v1067
      %1070 = vst [vmem:[#allocation2] sm:$0xf] %v1069
      %s1071 = scalar_lea.vmem %s251, 16
      %1072 = vst [vmem:[%s1071] sm:$0xf] %v1069
      %s1073 = scalar_lea.vmem %s245, 80
      %v1074 = vld [vmem:[%s1073] sm:$0xff]
      %v1075 = vld [vmem:[%s1073 + $0x8] sm:$0xff]
      %v1076 = vunpack.c.l.bf16 %v1074
      %v1077 = vunpack.c.h.bf16 %v1074
      %v1078 = vunpack.c.l.bf16 %v1075
      %v1079 = vunpack.c.h.bf16 %v1075
      %v1080 = vld [vmem:[#allocation2] sm:$0xf]
      %1081 = vmatprep.subr.bf16.mxu0 %v399
      %1082 = vmatpush1.bf16.msra.mxu0 %v398
      %1083 = vmatprep.subr.bf16.mxu0 %v403
      %1084 = vmatpush1.bf16.msra.mxu0 %v402
      %1085 = vmatprep.subr.bf16.mxu0 %v407
      %1086 = vmatpush1.bf16.msra.mxu0 %v406
      %1087 = vmatprep.subr.bf16.mxu0 %v411
      %1088 = vmatpush1.bf16.msra.mxu0 %v410
      %1089 = vmatprep.subr.bf16.mxu0 %v415
      %1090 = vmatpush1.bf16.msra.mxu0 %v414
      %1091 = vmatprep.subr.bf16.mxu0 %v419
      %1092 = vmatpush1.bf16.msra.mxu0 %v418
      %1093 = vmatprep.subr.bf16.mxu0 %v423
      %1094 = vmatpush1.bf16.msra.mxu0 %v422
      %1095 = vmatprep.subr.bf16.mxu0 %v427
      %1096 = vmatpush1.bf16.msra.mxu0 %v426
      %1097 = vmatprep.subr.bf16.mxu0 0
      %1098 = vmatpush1.bf16.msra.mxu0 0
      %1099 = vmatprep.subr.bf16.mxu0 0
      %1100 = vmatpush1.bf16.msra.mxu0 0
      %1101 = vmatprep.subr.bf16.mxu0 0
      %1102 = vmatpush1.bf16.msra.mxu0 0
      %1103 = vmatprep.subr.bf16.mxu0 0
      %1104 = vmatpush1.bf16.msra.mxu0 0
      %1105 = vmatprep.subr.bf16.mxu0 0
      %1106 = vmatpush1.bf16.msra.mxu0 0
      %1107 = vmatprep.subr.bf16.mxu0 0
      %1108 = vmatpush1.bf16.msra.mxu0 0
      %1109 = vmatprep.subr.bf16.mxu0 0
      %1110 = vmatpush1.bf16.msra.mxu0 0
      %1111 = vmatprep.subr.bf16.mxu0 0
      %1112 = vmatpush1.bf16.msra.mxu0 0
      %1113 = vmatprep.mubr.bf16.mxu0 0
      %1114 = vmatmul.mubr.bf16.gmra.mrb[0].mxu0 %v1080
      %v1115 = vpop.f32.mrb[0].mxu0
      %v1116 = vadd.f32 0.0, %v1115
      %v1117 = vpop.f32.mrb[0].mxu0
      %v1118 = vadd.f32 0.0, %v1117
      %v1119 = vpop.f32.mrb[0].mxu0
      %v1120 = vpop.f32.mrb[0].mxu0
      %1121 = vdwg.mxu0
      %1122 = vmatprep.subr.bf16.mxu0 %v401
      %1123 = vmatpush1.bf16.msra.mxu0 %v400
      %1124 = vmatprep.subr.bf16.mxu0 %v405
      %1125 = vmatpush1.bf16.msra.mxu0 %v404
      %1126 = vmatprep.subr.bf16.mxu0 %v409
      %1127 = vmatpush1.bf16.msra.mxu0 %v408
      %1128 = vmatprep.subr.bf16.mxu0 %v413
      %1129 = vmatpush1.bf16.msra.mxu0 %v412
      %1130 = vmatprep.subr.bf16.mxu0 %v417
      %1131 = vmatpush1.bf16.msra.mxu0 %v416
      %1132 = vmatprep.subr.bf16.mxu0 %v421
      %1133 = vmatpush1.bf16.msra.mxu0 %v420
      %1134 = vmatprep.subr.bf16.mxu0 %v425
      %1135 = vmatpush1.bf16.msra.mxu0 %v424
      %1136 = vmatprep.subr.bf16.mxu0 %v429
      %1137 = vmatpush1.bf16.msra.mxu0 %v428
      %1138 = vmatprep.subr.bf16.mxu0 0
      %1139 = vmatpush1.bf16.msra.mxu0 0
      %1140 = vmatprep.subr.bf16.mxu0 0
      %1141 = vmatpush1.bf16.msra.mxu0 0
      %1142 = vmatprep.subr.bf16.mxu0 0
      %1143 = vmatpush1.bf16.msra.mxu0 0
      %1144 = vmatprep.subr.bf16.mxu0 0
      %1145 = vmatpush1.bf16.msra.mxu0 0
      %1146 = vmatprep.subr.bf16.mxu0 0
      %1147 = vmatpush1.bf16.msra.mxu0 0
      %1148 = vmatprep.subr.bf16.mxu0 0
      %1149 = vmatpush1.bf16.msra.mxu0 0
      %1150 = vmatprep.subr.bf16.mxu0 0
      %1151 = vmatpush1.bf16.msra.mxu0 0
      %1152 = vmatprep.subr.bf16.mxu0 0
      %1153 = vmatpush1.bf16.msra.mxu0 0
      %1154 = vmatprep.mubr.bf16.mxu0 0
      %1155 = vmatmul.mubr.bf16.gmra.mrb[0].mxu0 %v1080
      %v1156 = vpop.f32.mrb[0].mxu0
      %v1157 = vadd.f32 0.0, %v1156
      %v1158 = vpop.f32.mrb[0].mxu0
      %v1159 = vadd.f32 0.0, %v1158
      %v1160 = vpop.f32.mrb[0].mxu0
      %v1161 = vpop.f32.mrb[0].mxu0
      %1162 = vdwg.mxu0
      %v1163 = vadd.f32 %v1076, %v1116
      %v1164 = vadd.f32 %v1077, %v1118
      %v1165 = vadd.f32 %v1078, %v1157
      %v1166 = vadd.f32 %v1079, %v1159
      %v1167 = vxor.u32 %v1163, 2147483648
      %v1168 = vxor.u32 %v1164, 2147483648
      %v1169 = vxor.u32 %v1165, 2147483648
      %v1170 = vmul.f32 %v1167, 1.442695
      %v1171 = vpow.pop %v1170
      %v1172 = vmul.f32 %v1168, 1.442695
      %v1173 = vpow.pop %v1172
      %v1174 = vmul.f32 %v1169, 1.442695
      %v1175 = vpow.pop %v1174
      %v1176 = vadd.f32 %v1171, 1.0
      %v1177 = vadd.f32 %v1173, 1.0
      %v1178 = vadd.f32 %v1175, 1.0
      %v1179 = vrcp.pop %v1176
      %v1180 = vmul.f32 1.0, %v1179
      %v1181 = vrcp.pop %v1177
      %v1182 = vmul.f32 1.0, %v1181
      %v1183 = vrcp.pop %v1178
      %v1184 = vmul.f32 1.0, %v1183
      %v1185 = vtanh.pop %v1166
      %v1186 = vld [vmem:[#allocation3] sm:$0xff]
      %v1187 = vmul.f32 %v1182, %v1186
      %v1188 = vmul.f32 %v1180, %v1185
      %v1189 = vadd.f32 %v1187, %v1188
      %v1190 = vtanh.pop %v1189
      %v1191 = vmul.f32 %v1184, %v1190
      %1192 = vst [vmem:[#allocation3] sm:$0xff] %v1189
      %v1193 = vpack.c.bf16 %v1191, %v1191
      %1194 = vst [vmem:[#allocation2] sm:$0xf] %v1193
      %s1195 = scalar_lea.vmem %s251, 20
      %1196 = vst [vmem:[%s1195] sm:$0xf] %v1193
      %s1197 = scalar_lea.vmem %s245, 96
      %v1198 = vld [vmem:[%s1197] sm:$0xff]
      %v1199 = vld [vmem:[%s1197 + $0x8] sm:$0xff]
      %v1200 = vunpack.c.l.bf16 %v1198
      %v1201 = vunpack.c.h.bf16 %v1198
      %v1202 = vunpack.c.l.bf16 %v1199
      %v1203 = vunpack.c.h.bf16 %v1199
      %v1204 = vld [vmem:[#allocation2] sm:$0xf]
      %1205 = vmatprep.subr.bf16.mxu0 %v399
      %1206 = vmatpush1.bf16.msra.mxu0 %v398
      %1207 = vmatprep.subr.bf16.mxu0 %v403
      %1208 = vmatpush1.bf16.msra.mxu0 %v402
      %1209 = vmatprep.subr.bf16.mxu0 %v407
      %1210 = vmatpush1.bf16.msra.mxu0 %v406
      %1211 = vmatprep.subr.bf16.mxu0 %v411
      %1212 = vmatpush1.bf16.msra.mxu0 %v410
      %1213 = vmatprep.subr.bf16.mxu0 %v415
      %1214 = vmatpush1.bf16.msra.mxu0 %v414
      %1215 = vmatprep.subr.bf16.mxu0 %v419
      %1216 = vmatpush1.bf16.msra.mxu0 %v418
      %1217 = vmatprep.subr.bf16.mxu0 %v423
      %1218 = vmatpush1.bf16.msra.mxu0 %v422
      %1219 = vmatprep.subr.bf16.mxu0 %v427
      %1220 = vmatpush1.bf16.msra.mxu0 %v426
      %1221 = vmatprep.subr.bf16.mxu0 0
      %1222 = vmatpush1.bf16.msra.mxu0 0
      %1223 = vmatprep.subr.bf16.mxu0 0
      %1224 = vmatpush1.bf16.msra.mxu0 0
      %1225 = vmatprep.subr.bf16.mxu0 0
      %1226 = vmatpush1.bf16.msra.mxu0 0
      %1227 = vmatprep.subr.bf16.mxu0 0
      %1228 = vmatpush1.bf16.msra.mxu0 0
      %1229 = vmatprep.subr.bf16.mxu0 0
      %1230 = vmatpush1.bf16.msra.mxu0 0
      %1231 = vmatprep.subr.bf16.mxu0 0
      %1232 = vmatpush1.bf16.msra.mxu0 0
      %1233 = vmatprep.subr.bf16.mxu0 0
      %1234 = vmatpush1.bf16.msra.mxu0 0
      %1235 = vmatprep.subr.bf16.mxu0 0
      %1236 = vmatpush1.bf16.msra.mxu0 0
      %1237 = vmatprep.mubr.bf16.mxu0 0
      %1238 = vmatmul.mubr.bf16.gmra.mrb[0].mxu0 %v1204
      %v1239 = vpop.f32.mrb[0].mxu0
      %v1240 = vadd.f32 0.0, %v1239
      %v1241 = vpop.f32.mrb[0].mxu0
      %v1242 = vadd.f32 0.0, %v1241
      %v1243 = vpop.f32.mrb[0].mxu0
      %v1244 = vpop.f32.mrb[0].mxu0
      %1245 = vdwg.mxu0
      %1246 = vmatprep.subr.bf16.mxu0 %v401
      %1247 = vmatpush1.bf16.msra.mxu0 %v400
      %1248 = vmatprep.subr.bf16.mxu0 %v405
      %1249 = vmatpush1.bf16.msra.mxu0 %v404
      %1250 = vmatprep.subr.bf16.mxu0 %v409
      %1251 = vmatpush1.bf16.msra.mxu0 %v408
      %1252 = vmatprep.subr.bf16.mxu0 %v413
      %1253 = vmatpush1.bf16.msra.mxu0 %v412
      %1254 = vmatprep.subr.bf16.mxu0 %v417
      %1255 = vmatpush1.bf16.msra.mxu0 %v416
      %1256 = vmatprep.subr.bf16.mxu0 %v421
      %1257 = vmatpush1.bf16.msra.mxu0 %v420
      %1258 = vmatprep.subr.bf16.mxu0 %v425
      %1259 = vmatpush1.bf16.msra.mxu0 %v424
      %1260 = vmatprep.subr.bf16.mxu0 %v429
      %1261 = vmatpush1.bf16.msra.mxu0 %v428
      %1262 = vmatprep.subr.bf16.mxu0 0
      %1263 = vmatpush1.bf16.msra.mxu0 0
      %1264 = vmatprep.subr.bf16.mxu0 0
      %1265 = vmatpush1.bf16.msra.mxu0 0
      %1266 = vmatprep.subr.bf16.mxu0 0
      %1267 = vmatpush1.bf16.msra.mxu0 0
      %1268 = vmatprep.subr.bf16.mxu0 0
      %1269 = vmatpush1.bf16.msra.mxu0 0
      %1270 = vmatprep.subr.bf16.mxu0 0
      %1271 = vmatpush1.bf16.msra.mxu0 0
      %1272 = vmatprep.subr.bf16.mxu0 0
      %1273 = vmatpush1.bf16.msra.mxu0 0
      %1274 = vmatprep.subr.bf16.mxu0 0
      %1275 = vmatpush1.bf16.msra.mxu0 0
      %1276 = vmatprep.subr.bf16.mxu0 0
      %1277 = vmatpush1.bf16.msra.mxu0 0
      %1278 = vmatprep.mubr.bf16.mxu0 0
      %1279 = vmatmul.mubr.bf16.gmra.mrb[0].mxu0 %v1204
      %v1280 = vpop.f32.mrb[0].mxu0
      %v1281 = vadd.f32 0.0, %v1280
      %v1282 = vpop.f32.mrb[0].mxu0
      %v1283 = vadd.f32 0.0, %v1282
      %v1284 = vpop.f32.mrb[0].mxu0
      %v1285 = vpop.f32.mrb[0].mxu0
      %1286 = vdwg.mxu0
      %v1287 = vadd.f32 %v1200, %v1240
      %v1288 = vadd.f32 %v1201, %v1242
      %v1289 = vadd.f32 %v1202, %v1281
      %v1290 = vadd.f32 %v1203, %v1283
      %v1291 = vxor.u32 %v1287, 2147483648
      %v1292 = vxor.u32 %v1288, 2147483648
      %v1293 = vxor.u32 %v1289, 2147483648
      %v1294 = vmul.f32 %v1291, 1.442695
      %v1295 = vpow.pop %v1294
      %v1296 = vmul.f32 %v1292, 1.442695
      %v1297 = vpow.pop %v1296
      %v1298 = vmul.f32 %v1293, 1.442695
      %v1299 = vpow.pop %v1298
      %v1300 = vadd.f32 %v1295, 1.0
      %v1301 = vadd.f32 %v1297, 1.0
      %v1302 = vadd.f32 %v1299, 1.0
      %v1303 = vrcp.pop %v1300
      %v1304 = vmul.f32 1.0, %v1303
      %v1305 = vrcp.pop %v1301
      %v1306 = vmul.f32 1.0, %v1305
      %v1307 = vrcp.pop %v1302
      %v1308 = vmul.f32 1.0, %v1307
      %v1309 = vtanh.pop %v1290
      %v1310 = vld [vmem:[#allocation3] sm:$0xff]
      %v1311 = vmul.f32 %v1306, %v1310
      %v1312 = vmul.f32 %v1304, %v1309
      %v1313 = vadd.f32 %v1311, %v1312
      %v1314 = vtanh.pop %v1313
      %v1315 = vmul.f32 %v1308, %v1314
      %1316 = vst [vmem:[#allocation3] sm:$0xff] %v1313
      %v1317 = vpack.c.bf16 %v1315, %v1315
      %1318 = vst [vmem:[#allocation2] sm:$0xf] %v1317
      %s1319 = scalar_lea.vmem %s251, 24
      %1320 = vst [vmem:[%s1319] sm:$0xf] %v1317
      %s1321 = scalar_lea.vmem %s245, 112
      %v1322 = vld [vmem:[%s1321] sm:$0xff]
      %v1323 = vld [vmem:[%s1321 + $0x8] sm:$0xff]
      %v1324 = vunpack.c.l.bf16 %v1322
      %v1325 = vunpack.c.h.bf16 %v1322
      %v1326 = vunpack.c.l.bf16 %v1323
      %v1327 = vunpack.c.h.bf16 %v1323
      %v1328 = vld [vmem:[#allocation2] sm:$0xf]
      %1329 = vmatprep.subr.bf16.mxu0 %v399
      %1330 = vmatpush1.bf16.msra.mxu0 %v398
      %1331 = vmatprep.subr.bf16.mxu0 %v403
      %1332 = vmatpush1.bf16.msra.mxu0 %v402
      %1333 = vmatprep.subr.bf16.mxu0 %v407
      %1334 = vmatpush1.bf16.msra.mxu0 %v406
      %1335 = vmatprep.subr.bf16.mxu0 %v411
      %1336 = vmatpush1.bf16.msra.mxu0 %v410
      %1337 = vmatprep.subr.bf16.mxu0 %v415
      %1338 = vmatpush1.bf16.msra.mxu0 %v414
      %1339 = vmatprep.subr.bf16.mxu0 %v419
      %1340 = vmatpush1.bf16.msra.mxu0 %v418
      %1341 = vmatprep.subr.bf16.mxu0 %v423
      %1342 = vmatpush1.bf16.msra.mxu0 %v422
      %1343 = vmatprep.subr.bf16.mxu0 %v427
      %1344 = vmatpush1.bf16.msra.mxu0 %v426
      %1345 = vmatprep.subr.bf16.mxu0 0
      %1346 = vmatpush1.bf16.msra.mxu0 0
      %1347 = vmatprep.subr.bf16.mxu0 0
      %1348 = vmatpush1.bf16.msra.mxu0 0
      %1349 = vmatprep.subr.bf16.mxu0 0
      %1350 = vmatpush1.bf16.msra.mxu0 0
      %1351 = vmatprep.subr.bf16.mxu0 0
      %1352 = vmatpush1.bf16.msra.mxu0 0
      %1353 = vmatprep.subr.bf16.mxu0 0
      %1354 = vmatpush1.bf16.msra.mxu0 0
      %1355 = vmatprep.subr.bf16.mxu0 0
      %1356 = vmatpush1.bf16.msra.mxu0 0
      %1357 = vmatprep.subr.bf16.mxu0 0
      %1358 = vmatpush1.bf16.msra.mxu0 0
      %1359 = vmatprep.subr.bf16.mxu0 0
      %1360 = vmatpush1.bf16.msra.mxu0 0
      %1361 = vmatprep.mubr.bf16.mxu0 0
      %1362 = vmatmul.mubr.bf16.gmra.mrb[0].mxu0 %v1328
      %v1363 = vpop.f32.mrb[0].mxu0
      %v1364 = vadd.f32 0.0, %v1363
      %v1365 = vpop.f32.mrb[0].mxu0
      %v1366 = vadd.f32 0.0, %v1365
      %v1367 = vpop.f32.mrb[0].mxu0
      %v1368 = vpop.f32.mrb[0].mxu0
      %1369 = vdwg.mxu0
      %1370 = vmatprep.subr.bf16.mxu0 %v401
      %1371 = vmatpush1.bf16.msra.mxu0 %v400
      %1372 = vmatprep.subr.bf16.mxu0 %v405
      %1373 = vmatpush1.bf16.msra.mxu0 %v404
      %1374 = vmatprep.subr.bf16.mxu0 %v409
      %1375 = vmatpush1.bf16.msra.mxu0 %v408
      %1376 = vmatprep.subr.bf16.mxu0 %v413
      %1377 = vmatpush1.bf16.msra.mxu0 %v412
      %1378 = vmatprep.subr.bf16.mxu0 %v417
      %1379 = vmatpush1.bf16.msra.mxu0 %v416
      %1380 = vmatprep.subr.bf16.mxu0 %v421
      %1381 = vmatpush1.bf16.msra.mxu0 %v420
      %1382 = vmatprep.subr.bf16.mxu0 %v425
      %1383 = vmatpush1.bf16.msra.mxu0 %v424
      %1384 = vmatprep.subr.bf16.mxu0 %v429
      %1385 = vmatpush1.bf16.msra.mxu0 %v428
      %1386 = vmatprep.subr.bf16.mxu0 0
      %1387 = vmatpush1.bf16.msra.mxu0 0
      %1388 = vmatprep.subr.bf16.mxu0 0
      %1389 = vmatpush1.bf16.msra.mxu0 0
      %1390 = vmatprep.subr.bf16.mxu0 0
      %1391 = vmatpush1.bf16.msra.mxu0 0
      %1392 = vmatprep.subr.bf16.mxu0 0
      %1393 = vmatpush1.bf16.msra.mxu0 0
      %1394 = vmatprep.subr.bf16.mxu0 0
      %1395 = vmatpush1.bf16.msra.mxu0 0
      %1396 = vmatprep.subr.bf16.mxu0 0
      %1397 = vmatpush1.bf16.msra.mxu0 0
      %1398 = vmatprep.subr.bf16.mxu0 0
      %1399 = vmatpush1.bf16.msra.mxu0 0
      %1400 = vmatprep.subr.bf16.mxu0 0
      %1401 = vmatpush1.bf16.msra.mxu0 0
      %1402 = vmatprep.mubr.bf16.mxu0 0
      %1403 = vmatmul.mubr.bf16.gmra.mrb[0].mxu0 %v1328
      %v1404 = vpop.f32.mrb[0].mxu0
      %v1405 = vadd.f32 0.0, %v1404
      %v1406 = vpop.f32.mrb[0].mxu0
      %v1407 = vadd.f32 0.0, %v1406
      %v1408 = vpop.f32.mrb[0].mxu0
      %v1409 = vpop.f32.mrb[0].mxu0
      %1410 = vdwg.mxu0
      %v1411 = vadd.f32 %v1324, %v1364
      %v1412 = vadd.f32 %v1325, %v1366
      %v1413 = vadd.f32 %v1326, %v1405
      %v1414 = vadd.f32 %v1327, %v1407
      %v1415 = vxor.u32 %v1411, 2147483648
      %v1416 = vxor.u32 %v1412, 2147483648
      %v1417 = vxor.u32 %v1413, 2147483648
      %v1418 = vmul.f32 %v1415, 1.442695
      %v1419 = vpow.pop %v1418
      %v1420 = vmul.f32 %v1416, 1.442695
      %v1421 = vpow.pop %v1420
      %v1422 = vmul.f32 %v1417, 1.442695
      %v1423 = vpow.pop %v1422
      %v1424 = vadd.f32 %v1419, 1.0
      %v1425 = vadd.f32 %v1421, 1.0
      %v1426 = vadd.f32 %v1423, 1.0
      %v1427 = vrcp.pop %v1424
      %v1428 = vmul.f32 1.0, %v1427
      %v1429 = vrcp.pop %v1425
      %v1430 = vmul.f32 1.0, %v1429
      %v1431 = vrcp.pop %v1426
      %v1432 = vmul.f32 1.0, %v1431
      %v1433 = vtanh.pop %v1414
      %v1434 = vld [vmem:[#allocation3] sm:$0xff]
      %v1435 = vmul.f32 %v1430, %v1434
      %v1436 = vmul.f32 %v1428, %v1433
      %v1437 = vadd.f32 %v1435, %v1436
      %v1438 = vtanh.pop %v1437
      %v1439 = vmul.f32 %v1432, %v1438
      %1440 = vst [vmem:[#allocation3] sm:$0xff] %v1437
      %v1441 = vpack.c.bf16 %v1439, %v1439
      %1442 = vst [vmem:[#allocation2] sm:$0xf] %v1441
      %s1443 = scalar_lea.vmem %s251, 28
      %1444 = vst [vmem:[%s1443] sm:$0xf] %v1441
      %v1445 = vld [vmem:[#allocation2] sm:$0xf]
      %v1446 = vunpack.c.l.bf16 %v1445
      %1447 = vst [vmem:[%s5] sm:$0xff] %v1446
      %v1448 = vld [vmem:[#allocation3] sm:$0xff]
      %1449 = vst [vmem:[%s6] sm:$0xff] %v1448
      %s1450 = smul.u32 8, %s18
      %p1451 = scmp.lt.s32.totalorder %s1450, 15
      %s1452 = scalar_select %p1451, %s1450, 15
      %s1453 = smul.addr %s1452, 4
      %s1454 = scalar_lea.vmem %s4, %s1453
      // Predicated region
      $region41: #{rnn_model_forward.6} parent=35 // pred_check
        %p1455 = pneg %p125
      $region42: #{rnn_model_forward.6} parent=35 // pred_check_branch
        %1457 = sbr.rel (%p1455) target = $region44
      $region43: #{rnn_model_forward.6} parent=35 // pred_region
        %s1458 = smul.u32 8, %s18
      $region44: #{rnn_model_forward.6} parent=35 // pred_fallthru
        _
      // Predicated region
      $region45: #{rnn_model_forward.6} parent=35 // pred_check
        %p1459 = pneg %p146
      $region46: #{rnn_model_forward.6} parent=35 // pred_check_branch
        %1461 = sbr.rel (%p1459) target = $region48
      $region47: #{rnn_model_forward.6} parent=35 // pred_region
        _
      $region48: #{rnn_model_forward.6} parent=35 // pred_fallthru
        _
      // Predicated region
      $region49: #{rnn_model_forward.6} parent=35 // pred_check
        %p1462 = pneg %p167
      $region50: #{rnn_model_forward.6} parent=35 // pred_check_branch
        %1464 = sbr.rel (%p1462) target = $region52
      $region51: #{rnn_model_forward.6} parent=35 // pred_region
        _
      $region52: #{rnn_model_forward.6} parent=35 // pred_fallthru
        _
      // Predicated region
      $region53: #{rnn_model_forward.6} parent=35 // pred_check
        %p1465 = pneg %p146
      $region54: #{rnn_model_forward.6} parent=35 // pred_check_branch
        %1467 = sbr.rel (%p1465) target = $region56
      $region55: #{rnn_model_forward.6} parent=35 // pred_region
        _
      $region56: #{rnn_model_forward.6} parent=35 // pred_fallthru
        _
      // Predicated region
      $region57: #{rnn_model_forward.6} parent=35 // pred_check
        %p1468 = pneg %p167
      $region58: #{rnn_model_forward.6} parent=35 // pred_check_branch
        %1470 = sbr.rel (%p1468) target = $region60
      $region59: #{rnn_model_forward.6} parent=35 // pred_region
        _
      $region60: #{rnn_model_forward.6} parent=35 // pred_fallthru
        _
    $region36: #{rnn_model_forward.6} parent=5 // pred_fallthru
      _
    %p1471 = scmp.le.s32.totalorder 2, %s13
    // Predicated region
    $region61: #{rnn_model_forward.6} parent=5 // pred_check
      %p1472 = pneg %p1471
    $region62: #{rnn_model_forward.6} parent=5 // pred_check_branch
      %1474 = sbr.rel (%p1472) target = $region64
    $region63: #{rnn_model_forward.6} parent=5 // pred_region
      %s1475 = ssub.s32 %s13, 2
      // Predicated region
      $region65: #{rnn_model_forward.6} parent=63 // pred_check
        %p1476 = pneg %p131
      $region66: #{rnn_model_forward.6} parent=63 // pred_check_branch
        %1478 = sbr.rel (%p1476) target = $region68
      $region67: #{rnn_model_forward.6} parent=63 // pred_region
        %s1479 = smul.u32 8, %s19
        %p1480 = scmp.lt.s32.totalorder %s1479, 15
        %s1481 = scalar_select %p1480, %s1479, 15
        %s1482 = smul.addr %s1481, 4
        %s1483 = scalar_lea.vmem %s4, %s1482
      $region68: #{rnn_model_forward.6} parent=63 // pred_fallthru
        _
    $region64: #{rnn_model_forward.6} parent=5 // pred_fallthru
      _
  $region6: #{rnn_model_forward.6} parent=0 // loop_footer
    %s17 = sadd.s32 1, %s13
  $region7: #{rnn_model_forward.6} parent=0 // loop_footer_branch
    %12 = sbr.rel target = $region3
  $region8: #{rnn_model_forward.6} parent=0 // loop_exit
    _

</llo_original>
